<compile_context>
chip_gen: v7x
topology: tpu7x:2x2x1
jax: 0.10.0
libtpu: 0.0.40
codegen_flags: <defaults>
</compile_context>

<pallas_src>
import functools

import jax
import jax.numpy as jnp
import numpy as np
from jax.experimental import pallas as pl
from jax.experimental.pallas import tpu as pltpu


def _mha_kernel(*refs, n_head, d_k, d_v, eps, qkv_mode, return_attn,
                attn_type, compute_dtype):
    """One (batch, q_tile) grid step.

    qkv_mode:
      "fused_all": self-attention, q tile == full sequence -> 1 wide QKV matmul.
      "fused_kv":  k is v (shared memory) -> q projection + 1 fused K|V matmul.
      "separate":  general cross-attention -> 3 matmuls.
    """
    if qkv_mode == "fused_all":
        q_ref, wqkv_ref, wfc_ref, g_ref, b_ref, out_ref, *rest = refs
        k_ref = v_ref = q_ref
    elif qkv_mode == "fused_kv":
        q_ref, kv_ref, wqkv_ref, wfc_ref, g_ref, b_ref, out_ref, *rest = refs
        k_ref = v_ref = kv_ref
    else:
        q_ref, k_ref, v_ref, wqkv_ref, wfc_ref, g_ref, b_ref, out_ref, *rest = refs
    if return_attn:
        attn_ref, ctx_ref = rest
    else:
        attn_ref = None
        (ctx_ref,) = rest

    cq = n_head * d_k
    ck = n_head * d_k

    x_q = q_ref[0]                                 # (tq, d_model) f32, residual
    xq_c = x_q.astype(compute_dtype)
    w_all = wqkv_ref[...]                          # (d_model, cq+ck+cv)

    if qkv_mode == "fused_all":
        # One wide MXU pass covering Q, K and V projections.
        qkvp = jnp.dot(xq_c, w_all, preferred_element_type=jnp.float32)
        qp = qkvp[:, :cq]
        kp = qkvp[:, cq:cq + ck]
        vp = qkvp[:, cq + ck:]
    elif qkv_mode == "fused_kv":
        xkv_c = k_ref[0].astype(compute_dtype)
        qp = jnp.dot(xq_c, w_all[:, :cq], preferred_element_type=jnp.float32)
        kvp = jnp.dot(xkv_c, w_all[:, cq:], preferred_element_type=jnp.float32)
        kp = kvp[:, :ck]
        vp = kvp[:, ck:]
    else:
        xk_c = k_ref[0].astype(compute_dtype)
        xv_c = v_ref[0].astype(compute_dtype)
        qp = jnp.dot(xq_c, w_all[:, :cq], preferred_element_type=jnp.float32)
        kp = jnp.dot(xk_c, w_all[:, cq:cq + ck], preferred_element_type=jnp.float32)
        vp = jnp.dot(xv_c, w_all[:, cq + ck:], preferred_element_type=jnp.float32)

    # Per-head attention; contexts land in a lane-concatenated VMEM scratch
    # so the output projection below is a single wide MXU pass.
    for h in range(n_head):                        # static unroll, n_head small
        qh = qp[:, h * d_k:(h + 1) * d_k].astype(compute_dtype)   # (tq, d_k)
        kh = kp[:, h * d_k:(h + 1) * d_k].astype(compute_dtype)   # (len_k, d_k)
        vh = vp[:, h * d_v:(h + 1) * d_v].astype(compute_dtype)   # (len_k, d_v)

        # Temperature (1/sqrt(d_k)) already folded into Wq host-side.
        # Contract d_k of both operands directly (no explicit transpose).
        s = jax.lax.dot_general(qh, kh, (((1,), (1,)), ((), ())),
                                preferred_element_type=jnp.float32)  # (tq, len_k)
        if attn_type == "softmax":
            s = s - jnp.max(s, axis=-1, keepdims=True)             # stable softmax
            e = jnp.exp(s)
            denom = jnp.sum(e, axis=-1, keepdims=True)
            if return_attn:
                p = e / denom                      # exact: exported rows sum to 1
            else:
                p = e * pl.reciprocal(denom, approx=True)          # EUP slot
        else:                                      # 'sigmoid' attention variant
            p = 1.0 / (1.0 + jnp.exp(-s))
        if return_attn:
            attn_ref[h, 0] = p.astype(attn_ref.dtype)

        ctx = jnp.dot(p.astype(compute_dtype), vh,
                      preferred_element_type=jnp.float32)          # (tq, d_v)
        ctx_ref[:, h * d_v:(h + 1) * d_v] = ctx.astype(compute_dtype)

    # Single wide output projection: (tq, n_head*d_v) @ (n_head*d_v, d_model).
    o = jnp.dot(ctx_ref[...], wfc_ref[...], preferred_element_type=jnp.float32)

    # dropout -> identity (eval); residual add + two-pass LayerNorm (f32).
    x = o + x_q
    mean = jnp.mean(x, axis=-1, keepdims=True)
    xc = x - mean
    var = jnp.mean(xc * xc, axis=-1, keepdims=True)
    xn = xc * jax.lax.rsqrt(var + eps)
    out_ref[0] = (xn * g_ref[...] + b_ref[...]).astype(out_ref.dtype)


def _vmem_limit_bytes():
    """Per-generation VMEM budget: ~75% of physical, capped at 100 MiB.

    v5e/v6e (128 MiB physical) -> 96 MiB; v7x (64 MiB physical) -> 48 MiB.
    """
    cap = 128 * 1024 * 1024
    try:
        info = pltpu.get_tpu_info()
        cap = int(getattr(info, "vmem_capacity_bytes", cap) or cap)
    except Exception:
        pass
    return int(min(cap * 3 // 4, 100 * 1024 * 1024))


def multi_head_attention(q, k, v, params, *, n_head, d_k, d_v,
                         return_attn=True, attn_type="softmax",
                         compute_dtype=jnp.bfloat16, attn_dtype=jnp.bfloat16,
                         q_block=None, eps=1e-5,
                         self_attn=None, kv_shared=None):
    """Pallas TPU forward of the PyTorch MultiHeadAttention module (eval mode).

    For long sequences pass q_block as a multiple of 256 (v6e/v7x) or 128
    (v5e); the default keeps the whole q axis in one tile.
    """
    assert attn_type in ("softmax", "sigmoid")
    sz_b, len_q, d_model = q.shape
    _, len_k, _ = k.shape
    assert v.shape[1] == len_k

    wq, wk, wv, wfc, gamma, beta = params
    if wfc is None:
        # PyTorch module has no fc when n_head == 1; identity projection then.
        assert n_head * d_v == d_model
        wfc = jnp.eye(n_head * d_v, d_model, dtype=jnp.float32)

    # q tiling (second, "parallel" grid axis).
    tq = len_q if q_block is None else q_block
    assert len_q % tq == 0 and (tq == len_q or tq % 8 == 0)
    n_qt = len_q // tq

    # Host-side weight prep (one-time): fold 1/temperature into Wq, fuse the
    # Q|K|V columns into one block, cast to the MXU compute dtype (halves the
    # weight DMA).
    scale = 1.0 / np.power(d_k, 0.5)
    w_qkv = jnp.concatenate([wq * scale, wk, wv], axis=1).astype(compute_dtype)
    wfc2 = wfc.astype(compute_dtype)                     # (n_head*d_v, d_model)
    gamma2 = gamma.astype(jnp.float32).reshape(1, d_model)
    beta2 = beta.astype(jnp.float32).reshape(1, d_model)
    cqkv = w_qkv.shape[1]

    # Explicit flags avoid the object-identity perf trap for equal-but-distinct
    # arrays; default falls back to identity dispatch.
    if self_attn is None:
        self_attn = (q is k) and (k is v)
    if kv_shared is None:
        kv_shared = self_attn or (k is v)

    if self_attn and tq == len_q:
        qkv_mode = "fused_all"
    elif kv_shared:
        qkv_mode = "fused_kv"
    else:
        qkv_mode = "separate"

    out_shape = [jax.ShapeDtypeStruct((sz_b, len_q, d_model), jnp.float32)]
    if return_attn:
        out_shape.append(
            jax.ShapeDtypeStruct((n_head, sz_b, len_q, len_k), attn_dtype))

    kernel = functools.partial(
        _mha_kernel, n_head=n_head, d_k=d_k, d_v=d_v, eps=eps,
        qkv_mode=qkv_mode, return_attn=return_attn, attn_type=attn_type,
        compute_dtype=compute_dtype)

    def build(single_buffer_consts):
        # Grid-invariant blocks never get re-DMA'd; single-buffer them to
        # reclaim VMEM (meaningful on v7x's 64 MiB).
        const_kw = ({"pipeline_mode": pl.Buffered(1)}
                    if single_buffer_consts else {})
        q_spec = pl.BlockSpec((1, tq, d_model), lambda b, qi: (b, qi, 0))
        kv_spec = pl.BlockSpec((1, len_k, d_model), lambda b, qi: (b, 0, 0))
        wqkv_spec = pl.BlockSpec((d_model, cqkv), lambda b, qi: (0, 0), **const_kw)
        wfc_spec = pl.BlockSpec((n_head * d_v, d_model),
                                lambda b, qi: (0, 0), **const_kw)
        vec_spec = pl.BlockSpec((1, d_model), lambda b, qi: (0, 0), **const_kw)

        if qkv_mode == "fused_all":
            in_specs = [q_spec, wqkv_spec, wfc_spec, vec_spec, vec_spec]
        elif qkv_mode == "fused_kv":
            in_specs = [q_spec, kv_spec, wqkv_spec, wfc_spec, vec_spec, vec_spec]
        else:
            in_specs = [q_spec, kv_spec, kv_spec, wqkv_spec, wfc_spec,
                        vec_spec, vec_spec]

        out_specs = [pl.BlockSpec((1, tq, d_model), lambda b, qi: (b, qi, 0))]
        if return_attn:
            out_specs.append(
                pl.BlockSpec((n_head, 1, tq, len_k), lambda b, qi: (0, b, qi, 0)))

        return pl.pallas_call(
            kernel,
            out_shape=tuple(out_shape),
            grid_spec=pltpu.PrefetchScalarGridSpec(
                num_scalar_prefetch=0,
                grid=(sz_b, n_qt),
                in_specs=in_specs,
                out_specs=tuple(out_specs),
                scratch_shapes=[pltpu.VMEM((tq, n_head * d_v), compute_dtype)]),
            compiler_params=pltpu.CompilerParams(
                dimension_semantics=("parallel", "parallel"),
                vmem_limit_bytes=_vmem_limit_bytes()),
        )

    if qkv_mode == "fused_all":
        inputs = (q, w_qkv, wfc2, gamma2, beta2)
    elif qkv_mode == "fused_kv":
        inputs = (q, k, w_qkv, wfc2, gamma2, beta2)
    else:
        inputs = (q, k, v, w_qkv, wfc2, gamma2, beta2)

    try:
        result = build(True)(*inputs)
    except Exception:
        # pl.Buffered(1) single-buffering unsupported on this JAX version ->
        # fall back to default (double-buffered) constant blocks.
        result = build(False)(*inputs)

    if return_attn:
        out, attn4 = result
        # PyTorch returns attn with shape (n_head*sz_b, len_q, len_k), head-major.
        attn = attn4.reshape(n_head * sz_b, len_q, len_k)
        return out, attn
    (out,) = result
    return out, None


def reference_mha(q, k, v, params, *, n_head, d_k, d_v,
                  attn_type="softmax", eps=1e-5):
    """Pure-JAX f32 reference mirroring the PyTorch forward (eval mode)."""
    wq, wk, wv, wfc, gamma, beta = params
    sz_b, len_q, d_model = q.shape
    len_k = k.shape[1]
    if wfc is None:
        wfc = jnp.eye(n_head * d_v, d_model, dtype=jnp.float32)
    residual = q
    qp = (q @ wq).reshape(sz_b, len_q, n_head, d_k)
    kp = (k @ wk).reshape(sz_b, len_k, n_head, d_k)
    vp = (v @ wv).reshape(sz_b, len_k, n_head, d_v)
    qp = jnp.transpose(qp, (2, 0, 1, 3)).reshape(-1, len_q, d_k)
    kp = jnp.transpose(kp, (2, 0, 1, 3)).reshape(-1, len_k, d_k)
    vp = jnp.transpose(vp, (2, 0, 1, 3)).reshape(-1, len_k, d_v)
    attn = jnp.einsum('bqd,bkd->bqk', qp, kp) / np.power(d_k, 0.5)
    if attn_type == "softmax":
        attn = jax.nn.softmax(attn, axis=2)
    else:
        attn = jax.nn.sigmoid(attn)
    out = jnp.einsum('bqk,bkd->bqd', attn, vp)
    out = out.reshape(n_head, sz_b, len_q, d_v)
    out = jnp.transpose(out, (1, 2, 0, 3)).reshape(sz_b, len_q, -1)
    out = out @ wfc
    x = out + residual
    mean = jnp.mean(x, axis=-1, keepdims=True)
    var = jnp.mean((x - mean) ** 2, axis=-1, keepdims=True)
    xn = (x - mean) / jnp.sqrt(var + eps)
    return xn * gamma.reshape(1, -1) + beta.reshape(1, -1), attn


if __name__ == "__main__":
    # Small shapes consistent with the module.
    n_head, d_model, d_k, d_v = 4, 32, 8, 8
    sz_b = 2

    key = jax.random.PRNGKey(0)
    kq, kk, kv, kwq, kwk, kwv, kwfc, kq2 = jax.random.split(key, 8)

    # Deterministic parameter init (stored pre-transposed: x @ W),
    # mirroring the module's normal_/xavier_normal_ init statistics.
    std_qk = np.sqrt(2.0 / (d_model + d_k))
    std_v = np.sqrt(2.0 / (d_model + d_v))
    std_fc = np.sqrt(2.0 / (n_head * d_v + d_model))
    wq = std_qk * jax.random.normal(kwq, (d_model, n_head * d_k), dtype=jnp.float32)
    wk_w = std_qk * jax.random.normal(kwk, (d_model, n_head * d_k), dtype=jnp.float32)
    wv_w = std_v * jax.random.normal(kwv, (d_model, n_head * d_v), dtype=jnp.float32)
    wfc = std_fc * jax.random.normal(kwfc, (n_head * d_v, d_model), dtype=jnp.float32)
    gamma = jnp.ones((1, d_model), dtype=jnp.float32)   # LayerNorm weight
    beta = jnp.zeros((1, d_model), dtype=jnp.float32)   # LayerNorm bias
    params = (wq, wk_w, wv_w, wfc, gamma, beta)

    def check(qa, ka, va, *, compute_dtype, attn_dtype, q_block=None,
              attn_type="softmax", tol=1e-1):
        out, attn = multi_head_attention(
            qa, ka, va, params, n_head=n_head, d_k=d_k, d_v=d_v,
            compute_dtype=compute_dtype, attn_dtype=attn_dtype,
            q_block=q_block, attn_type=attn_type, return_attn=True)
        out = jax.block_until_ready(out)
        attn = jax.block_until_ready(attn).astype(jnp.float32)
        out_r, attn_r = reference_mha(qa, ka, va, params, n_head=n_head,
                                      d_k=d_k, d_v=d_v, attn_type=attn_type)
        np.testing.assert_allclose(np.asarray(out), np.asarray(out_r),
                                   rtol=tol, atol=tol)
        np.testing.assert_allclose(np.asarray(attn), np.asarray(attn_r),
                                   rtol=tol, atol=tol)
        return out

    seq = 8
    q = jax.random.normal(kq, (sz_b, seq, d_model), dtype=jnp.float32)
    k = jax.random.normal(kk, (sz_b, seq, d_model), dtype=jnp.float32)
    v = jax.random.normal(kv, (sz_b, seq, d_model), dtype=jnp.float32)

    # 1) General cross-attention, f32 operands -> "separate" path, f32 attn out.
    check(q, k, v, compute_dtype=jnp.float32, attn_dtype=jnp.float32, tol=1e-2)

    # 2) Self-attention (q is k is v), bf16 MXU operands -> fully fused QKV
    #    matmul, bf16 attention-probability output.
    check(q, q, q, compute_dtype=jnp.bfloat16, attn_dtype=jnp.bfloat16, tol=1e-1)

    # 3) Tiled q axis (multi-step parallel grid) -> fused K|V path.
    q16 = jax.random.normal(kq2, (sz_b, 16, d_model), dtype=jnp.float32)
    check(q16, q16, q16, compute_dtype=jnp.bfloat16, attn_dtype=jnp.bfloat16,
          q_block=8, tol=1e-1)

    # 4) Sigmoid attention variant of ScaledDotProductAttention.
    check(q, q, q, compute_dtype=jnp.bfloat16, attn_dtype=jnp.bfloat16,
          attn_type="sigmoid", tol=1e-1)

    # 5) Fast path: attention probabilities dropped (no O(S^2) HBM write,
    #    approx-reciprocal softmax normalisation on the EUP slot).
    out_fast, none_attn = multi_head_attention(
        q, q, q, params, n_head=n_head, d_k=d_k, d_v=d_v,
        compute_dtype=jnp.bfloat16, return_attn=False)
    out_fast = jax.block_until_ready(out_fast)
    assert none_attn is None
    out_r, _ = reference_mha(q, q, q, params, n_head=n_head, d_k=d_k, d_v=d_v)
    np.testing.assert_allclose(np.asarray(out_fast), np.asarray(out_r),
                               rtol=1e-1, atol=1e-1)

    print("KERNEL_OK")
</pallas_src>

<mosaic_0001>
module attributes {stable_mosaic.version = 11 : i64} {
  func.func @_mha_kernel(%arg0: i32, %arg1: i32, %arg2: memref<1x8x32xf32, #tpu.memory_space<vmem>>, %arg3: memref<1x8x32xf32, #tpu.memory_space<vmem>>, %arg4: memref<1x8x32xf32, #tpu.memory_space<vmem>>, %arg5: memref<32x96xf32, #tpu.memory_space<vmem>>, %arg6: memref<32x32xf32, #tpu.memory_space<vmem>>, %arg7: memref<1x32xf32, #tpu.memory_space<vmem>>, %arg8: memref<1x32xf32, #tpu.memory_space<vmem>>, %arg9: memref<1x8x32xf32, #tpu.memory_space<vmem>>, %arg10: memref<4x1x8x8xf32, #tpu.memory_space<vmem>>, %arg11: memref<8x32xf32, #tpu.memory_space<vmem>>) attributes {dimension_semantics = [#tpu.dimension_semantics<parallel>, #tpu.dimension_semantics<parallel>], iteration_bounds = array<i64: 2, 1>, scalar_prefetch = 0 : i64, scratch_operands = 1 : i64, tpu.core_type = #tpu.core_type<tc>, window_params = [{transform_indices = @transform_0, window_bounds = array<i64: 1, 8, 32>}, {transform_indices = @transform_1, window_bounds = array<i64: 1, 8, 32>}, {transform_indices = @transform_2, window_bounds = array<i64: 1, 8, 32>}, {pipeline_mode = #tpu.pipeline_mode<synchronous>, transform_indices = @transform_3, window_bounds = array<i64: 32, 96>}, {pipeline_mode = #tpu.pipeline_mode<synchronous>, transform_indices = @transform_4, window_bounds = array<i64: 32, 32>}, {pipeline_mode = #tpu.pipeline_mode<synchronous>, transform_indices = @transform_5, window_bounds = array<i64: 1, 32>}, {pipeline_mode = #tpu.pipeline_mode<synchronous>, transform_indices = @transform_6, window_bounds = array<i64: 1, 32>}, {transform_indices = @transform_7, window_bounds = array<i64: 1, 8, 32>}, {transform_indices = @transform_8, window_bounds = array<i64: 4, 1, 8, 8>}]} {
    %c0 = arith.constant 0 : index
    %c0_0 = arith.constant 0 : index
    %c0_1 = arith.constant 0 : index
    %0 = vector.load %arg2[%c0, %c0_0, %c0_1] : memref<1x8x32xf32, #tpu.memory_space<vmem>>, vector<1x8x32xf32>
    %1 = vector.shape_cast %0 : vector<1x8x32xf32> to vector<8x32xf32>
    %c0_2 = arith.constant 0 : index
    %c0_3 = arith.constant 0 : index
    %2 = vector.load %arg5[%c0_2, %c0_3] : memref<32x96xf32, #tpu.memory_space<vmem>>, vector<32x96xf32>
    %c0_4 = arith.constant 0 : index
    %c0_5 = arith.constant 0 : index
    %c0_6 = arith.constant 0 : index
    %3 = vector.load %arg3[%c0_4, %c0_5, %c0_6] : memref<1x8x32xf32, #tpu.memory_space<vmem>>, vector<1x8x32xf32>
    %4 = vector.shape_cast %3 : vector<1x8x32xf32> to vector<8x32xf32>
    %c0_7 = arith.constant 0 : index
    %c0_8 = arith.constant 0 : index
    %c0_9 = arith.constant 0 : index
    %5 = vector.load %arg4[%c0_7, %c0_8, %c0_9] : memref<1x8x32xf32, #tpu.memory_space<vmem>>, vector<1x8x32xf32>
    %6 = vector.shape_cast %5 : vector<1x8x32xf32> to vector<8x32xf32>
    %7 = vector.extract_strided_slice %2 {offsets = [0, 0], sizes = [32, 32], strides = [1, 1]} : vector<32x96xf32> to vector<32x32xf32>
    %cst = arith.constant dense<0.000000e+00> : vector<8x32xf32>
    %8 = tpu.matmul %1, %7, %cst {dimension_numbers = #tpu.dot_dimension_numbers<[1], [0], [0], [1], [0, 0, 1, 1], [], []>} : vector<8x32xf32>, vector<32x32xf32>, vector<8x32xf32> -> vector<8x32xf32>
    %9 = vector.extract_strided_slice %2 {offsets = [0, 32], sizes = [32, 32], strides = [1, 1]} : vector<32x96xf32> to vector<32x32xf32>
    %cst_10 = arith.constant dense<0.000000e+00> : vector<8x32xf32>
    %10 = tpu.matmul %4, %9, %cst_10 {dimension_numbers = #tpu.dot_dimension_numbers<[1], [0], [0], [1], [0, 0, 1, 1], [], []>} : vector<8x32xf32>, vector<32x32xf32>, vector<8x32xf32> -> vector<8x32xf32>
    %11 = vector.extract_strided_slice %2 {offsets = [0, 64], sizes = [32, 32], strides = [1, 1]} : vector<32x96xf32> to vector<32x32xf32>
    %cst_11 = arith.constant dense<0.000000e+00> : vector<8x32xf32>
    %12 = tpu.matmul %6, %11, %cst_11 {dimension_numbers = #tpu.dot_dimension_numbers<[1], [0], [0], [1], [0, 0, 1, 1], [], []>} : vector<8x32xf32>, vector<32x32xf32>, vector<8x32xf32> -> vector<8x32xf32>
    %13 = vector.extract_strided_slice %8 {offsets = [0, 0], sizes = [8, 8], strides = [1, 1]} : vector<8x32xf32> to vector<8x8xf32>
    %14 = vector.extract_strided_slice %10 {offsets = [0, 0], sizes = [8, 8], strides = [1, 1]} : vector<8x32xf32> to vector<8x8xf32>
    %15 = vector.extract_strided_slice %12 {offsets = [0, 0], sizes = [8, 8], strides = [1, 1]} : vector<8x32xf32> to vector<8x8xf32>
    %cst_12 = arith.constant dense<0.000000e+00> : vector<8x8xf32>
    %16 = tpu.matmul %13, %14, %cst_12 {dimension_numbers = #tpu.dot_dimension_numbers<[1], [1], [0], [0], [0, 0, 1, 0], [], []>} : vector<8x8xf32>, vector<8x8xf32>, vector<8x8xf32> -> vector<8x8xf32>
    %cst_13 = arith.constant dense<0xFF800000> : vector<8xf32>
    %17 = vector.multi_reduction <maximumf>, %16, %cst_13 [1] : vector<8x8xf32> to vector<8xf32>
    %18 = vector.shape_cast %17 : vector<8xf32> to vector<8x1xf32>
    %19 = vector.broadcast %18 : vector<8x1xf32> to vector<8x8xf32>
    %20 = arith.subf %16, %19 : vector<8x8xf32>
    %21 = math.exp %20 : vector<8x8xf32>
    %cst_14 = arith.constant dense<0.000000e+00> : vector<8xf32>
    %22 = vector.multi_reduction <add>, %21, %cst_14 [1] : vector<8x8xf32> to vector<8xf32>
    %23 = vector.shape_cast %22 : vector<8xf32> to vector<8x1xf32>
    %24 = vector.broadcast %23 : vector<8x1xf32> to vector<8x8xf32>
    %25 = arith.divf %21, %24 : vector<8x8xf32>
    %c0_15 = arith.constant 0 : index
    %c0_16 = arith.constant 0 : index
    %c0_17 = arith.constant 0 : index
    %c0_18 = arith.constant 0 : index
    %26 = vector.load %arg10[%c0_15, %c0_16, %c0_17, %c0_18] : memref<4x1x8x8xf32, #tpu.memory_space<vmem>>, vector<1x1x8x8xf32>
    %27 = vector.shape_cast %26 : vector<1x1x8x8xf32> to vector<8x8xf32>
    %28 = vector.shape_cast %25 : vector<8x8xf32> to vector<1x1x8x8xf32>
    tpu.vector_store %arg10[%c0_15, %c0_16, %c0_17, %c0_18], %28 {strides = array<i32>} : memref<4x1x8x8xf32, #tpu.memory_space<vmem>>, vector<1x1x8x8xf32>,
    %cst_19 = arith.constant dense<0.000000e+00> : vector<8x8xf32>
    %29 = tpu.matmul %25, %15, %cst_19 {dimension_numbers = #tpu.dot_dimension_numbers<[1], [0], [0], [1], [0, 0, 1, 1], [], []>} : vector<8x8xf32>, vector<8x8xf32>, vector<8x8xf32> -> vector<8x8xf32>
    %c0_20 = arith.constant 0 : index
    %c0_21 = arith.constant 0 : index
    %30 = vector.load %arg11[%c0_20, %c0_21] : memref<8x32xf32, #tpu.memory_space<vmem>>, vector<8x8xf32>
    tpu.vector_store %arg11[%c0_20, %c0_21], %29 {strides = array<i32>} : memref<8x32xf32, #tpu.memory_space<vmem>>, vector<8x8xf32>,
    %31 = vector.extract_strided_slice %8 {offsets = [0, 8], sizes = [8, 8], strides = [1, 1]} : vector<8x32xf32> to vector<8x8xf32>
    %32 = vector.extract_strided_slice %10 {offsets = [0, 8], sizes = [8, 8], strides = [1, 1]} : vector<8x32xf32> to vector<8x8xf32>
    %33 = vector.extract_strided_slice %12 {offsets = [0, 8], sizes = [8, 8], strides = [1, 1]} : vector<8x32xf32> to vector<8x8xf32>
    %cst_22 = arith.constant dense<0.000000e+00> : vector<8x8xf32>
    %34 = tpu.matmul %31, %32, %cst_22 {dimension_numbers = #tpu.dot_dimension_numbers<[1], [1], [0], [0], [0, 0, 1, 0], [], []>} : vector<8x8xf32>, vector<8x8xf32>, vector<8x8xf32> -> vector<8x8xf32>
    %cst_23 = arith.constant dense<0xFF800000> : vector<8xf32>
    %35 = vector.multi_reduction <maximumf>, %34, %cst_23 [1] : vector<8x8xf32> to vector<8xf32>
    %36 = vector.shape_cast %35 : vector<8xf32> to vector<8x1xf32>
    %37 = vector.broadcast %36 : vector<8x1xf32> to vector<8x8xf32>
    %38 = arith.subf %34, %37 : vector<8x8xf32>
    %39 = math.exp %38 : vector<8x8xf32>
    %cst_24 = arith.constant dense<0.000000e+00> : vector<8xf32>
    %40 = vector.multi_reduction <add>, %39, %cst_24 [1] : vector<8x8xf32> to vector<8xf32>
    %41 = vector.shape_cast %40 : vector<8xf32> to vector<8x1xf32>
    %42 = vector.broadcast %41 : vector<8x1xf32> to vector<8x8xf32>
    %43 = arith.divf %39, %42 : vector<8x8xf32>
    %c1 = arith.constant 1 : index
    %c0_25 = arith.constant 0 : index
    %c0_26 = arith.constant 0 : index
    %c0_27 = arith.constant 0 : index
    %44 = vector.load %arg10[%c1, %c0_25, %c0_26, %c0_27] : memref<4x1x8x8xf32, #tpu.memory_space<vmem>>, vector<1x1x8x8xf32>
    %45 = vector.shape_cast %44 : vector<1x1x8x8xf32> to vector<8x8xf32>
    %46 = vector.shape_cast %43 : vector<8x8xf32> to vector<1x1x8x8xf32>
    tpu.vector_store %arg10[%c1, %c0_25, %c0_26, %c0_27], %46 {strides = array<i32>} : memref<4x1x8x8xf32, #tpu.memory_space<vmem>>, vector<1x1x8x8xf32>,
    %cst_28 = arith.constant dense<0.000000e+00> : vector<8x8xf32>
    %47 = tpu.matmul %43, %33, %cst_28 {dimension_numbers = #tpu.dot_dimension_numbers<[1], [0], [0], [1], [0, 0, 1, 1], [], []>} : vector<8x8xf32>, vector<8x8xf32>, vector<8x8xf32> -> vector<8x8xf32>
    %c0_29 = arith.constant 0 : index
    %c8 = arith.constant 8 : index
    %48 = vector.load %arg11[%c0_29, %c8] : memref<8x32xf32, #tpu.memory_space<vmem>>, vector<8x8xf32>
    tpu.vector_store %arg11[%c0_29, %c8], %47 {strides = array<i32>} : memref<8x32xf32, #tpu.memory_space<vmem>>, vector<8x8xf32>,
    %49 = vector.extract_strided_slice %8 {offsets = [0, 16], sizes = [8, 8], strides = [1, 1]} : vector<8x32xf32> to vector<8x8xf32>
    %50 = vector.extract_strided_slice %10 {offsets = [0, 16], sizes = [8, 8], strides = [1, 1]} : vector<8x32xf32> to vector<8x8xf32>
    %51 = vector.extract_strided_slice %12 {offsets = [0, 16], sizes = [8, 8], strides = [1, 1]} : vector<8x32xf32> to vector<8x8xf32>
    %cst_30 = arith.constant dense<0.000000e+00> : vector<8x8xf32>
    %52 = tpu.matmul %49, %50, %cst_30 {dimension_numbers = #tpu.dot_dimension_numbers<[1], [1], [0], [0], [0, 0, 1, 0], [], []>} : vector<8x8xf32>, vector<8x8xf32>, vector<8x8xf32> -> vector<8x8xf32>
    %cst_31 = arith.constant dense<0xFF800000> : vector<8xf32>
    %53 = vector.multi_reduction <maximumf>, %52, %cst_31 [1] : vector<8x8xf32> to vector<8xf32>
    %54 = vector.shape_cast %53 : vector<8xf32> to vector<8x1xf32>
    %55 = vector.broadcast %54 : vector<8x1xf32> to vector<8x8xf32>
    %56 = arith.subf %52, %55 : vector<8x8xf32>
    %57 = math.exp %56 : vector<8x8xf32>
    %cst_32 = arith.constant dense<0.000000e+00> : vector<8xf32>
    %58 = vector.multi_reduction <add>, %57, %cst_32 [1] : vector<8x8xf32> to vector<8xf32>
    %59 = vector.shape_cast %58 : vector<8xf32> to vector<8x1xf32>
    %60 = vector.broadcast %59 : vector<8x1xf32> to vector<8x8xf32>
    %61 = arith.divf %57, %60 : vector<8x8xf32>
    %c2 = arith.constant 2 : index
    %c0_33 = arith.constant 0 : index
    %c0_34 = arith.constant 0 : index
    %c0_35 = arith.constant 0 : index
    %62 = vector.load %arg10[%c2, %c0_33, %c0_34, %c0_35] : memref<4x1x8x8xf32, #tpu.memory_space<vmem>>, vector<1x1x8x8xf32>
    %63 = vector.shape_cast %62 : vector<1x1x8x8xf32> to vector<8x8xf32>
    %64 = vector.shape_cast %61 : vector<8x8xf32> to vector<1x1x8x8xf32>
    tpu.vector_store %arg10[%c2, %c0_33, %c0_34, %c0_35], %64 {strides = array<i32>} : memref<4x1x8x8xf32, #tpu.memory_space<vmem>>, vector<1x1x8x8xf32>,
    %cst_36 = arith.constant dense<0.000000e+00> : vector<8x8xf32>
    %65 = tpu.matmul %61, %51, %cst_36 {dimension_numbers = #tpu.dot_dimension_numbers<[1], [0], [0], [1], [0, 0, 1, 1], [], []>} : vector<8x8xf32>, vector<8x8xf32>, vector<8x8xf32> -> vector<8x8xf32>
    %c0_37 = arith.constant 0 : index
    %c16 = arith.constant 16 : index
    %66 = vector.load %arg11[%c0_37, %c16] : memref<8x32xf32, #tpu.memory_space<vmem>>, vector<8x8xf32>
    tpu.vector_store %arg11[%c0_37, %c16], %65 {strides = array<i32>} : memref<8x32xf32, #tpu.memory_space<vmem>>, vector<8x8xf32>,
    %67 = vector.extract_strided_slice %8 {offsets = [0, 24], sizes = [8, 8], strides = [1, 1]} : vector<8x32xf32> to vector<8x8xf32>
    %68 = vector.extract_strided_slice %10 {offsets = [0, 24], sizes = [8, 8], strides = [1, 1]} : vector<8x32xf32> to vector<8x8xf32>
    %69 = vector.extract_strided_slice %12 {offsets = [0, 24], sizes = [8, 8], strides = [1, 1]} : vector<8x32xf32> to vector<8x8xf32>
    %cst_38 = arith.constant dense<0.000000e+00> : vector<8x8xf32>
    %70 = tpu.matmul %67, %68, %cst_38 {dimension_numbers = #tpu.dot_dimension_numbers<[1], [1], [0], [0], [0, 0, 1, 0], [], []>} : vector<8x8xf32>, vector<8x8xf32>, vector<8x8xf32> -> vector<8x8xf32>
    %cst_39 = arith.constant dense<0xFF800000> : vector<8xf32>
    %71 = vector.multi_reduction <maximumf>, %70, %cst_39 [1] : vector<8x8xf32> to vector<8xf32>
    %72 = vector.shape_cast %71 : vector<8xf32> to vector<8x1xf32>
    %73 = vector.broadcast %72 : vector<8x1xf32> to vector<8x8xf32>
    %74 = arith.subf %70, %73 : vector<8x8xf32>
    %75 = math.exp %74 : vector<8x8xf32>
    %cst_40 = arith.constant dense<0.000000e+00> : vector<8xf32>
    %76 = vector.multi_reduction <add>, %75, %cst_40 [1] : vector<8x8xf32> to vector<8xf32>
    %77 = vector.shape_cast %76 : vector<8xf32> to vector<8x1xf32>
    %78 = vector.broadcast %77 : vector<8x1xf32> to vector<8x8xf32>
    %79 = arith.divf %75, %78 : vector<8x8xf32>
    %c3 = arith.constant 3 : index
    %c0_41 = arith.constant 0 : index
    %c0_42 = arith.constant 0 : index
    %c0_43 = arith.constant 0 : index
    %80 = vector.load %arg10[%c3, %c0_41, %c0_42, %c0_43] : memref<4x1x8x8xf32, #tpu.memory_space<vmem>>, vector<1x1x8x8xf32>
    %81 = vector.shape_cast %80 : vector<1x1x8x8xf32> to vector<8x8xf32>
    %82 = vector.shape_cast %79 : vector<8x8xf32> to vector<1x1x8x8xf32>
    tpu.vector_store %arg10[%c3, %c0_41, %c0_42, %c0_43], %82 {strides = array<i32>} : memref<4x1x8x8xf32, #tpu.memory_space<vmem>>, vector<1x1x8x8xf32>,
    %cst_44 = arith.constant dense<0.000000e+00> : vector<8x8xf32>
    %83 = tpu.matmul %79, %69, %cst_44 {dimension_numbers = #tpu.dot_dimension_numbers<[1], [0], [0], [1], [0, 0, 1, 1], [], []>} : vector<8x8xf32>, vector<8x8xf32>, vector<8x8xf32> -> vector<8x8xf32>
    %c0_45 = arith.constant 0 : index
    %c24 = arith.constant 24 : index
    %84 = vector.load %arg11[%c0_45, %c24] : memref<8x32xf32, #tpu.memory_space<vmem>>, vector<8x8xf32>
    tpu.vector_store %arg11[%c0_45, %c24], %83 {strides = array<i32>} : memref<8x32xf32, #tpu.memory_space<vmem>>, vector<8x8xf32>,
    %c0_46 = arith.constant 0 : index
    %c0_47 = arith.constant 0 : index
    %85 = vector.load %arg11[%c0_46, %c0_47] : memref<8x32xf32, #tpu.memory_space<vmem>>, vector<8x32xf32>
    %c0_48 = arith.constant 0 : index
    %c0_49 = arith.constant 0 : index
    %86 = vector.load %arg6[%c0_48, %c0_49] : memref<32x32xf32, #tpu.memory_space<vmem>>, vector<32x32xf32>
    %cst_50 = arith.constant dense<0.000000e+00> : vector<8x32xf32>
    %87 = tpu.matmul %85, %86, %cst_50 {dimension_numbers = #tpu.dot_dimension_numbers<[1], [0], [0], [1], [0, 0, 1, 1], [], []>} : vector<8x32xf32>, vector<32x32xf32>, vector<8x32xf32> -> vector<8x32xf32>
    %88 = arith.addf %87, %1 : vector<8x32xf32>
    %cst_51 = arith.constant dense<0.000000e+00> : vector<8xf32>
    %89 = vector.multi_reduction <add>, %88, %cst_51 [1] : vector<8x32xf32> to vector<8xf32>
    %90 = vector.shape_cast %89 : vector<8xf32> to vector<8x1xf32>
    %cst_52 = arith.constant 3.200000e+01 : f32
    %91 = vector.broadcast %cst_52 : f32 to vector<8x1xf32>
    %92 = arith.divf %90, %91 : vector<8x1xf32>
    %93 = vector.broadcast %92 : vector<8x1xf32> to vector<8x32xf32>
    %94 = arith.subf %88, %93 : vector<8x32xf32>
    %95 = arith.mulf %94, %94 : vector<8x32xf32>
    %cst_53 = arith.constant dense<0.000000e+00> : vector<8xf32>
    %96 = vector.multi_reduction <add>, %95, %cst_53 [1] : vector<8x32xf32> to vector<8xf32>
    %97 = vector.shape_cast %96 : vector<8xf32> to vector<8x1xf32>
    %cst_54 = arith.constant 3.200000e+01 : f32
    %98 = vector.broadcast %cst_54 : f32 to vector<8x1xf32>
    %99 = arith.divf %97, %98 : vector<8x1xf32>
    %cst_55 = arith.constant 9.99999974E-6 : f32
    %100 = vector.broadcast %cst_55 : f32 to vector<8x1xf32>
    %101 = arith.addf %99, %100 : vector<8x1xf32>
    %102 = math.rsqrt %101 : vector<8x1xf32>
    %103 = vector.broadcast %102 : vector<8x1xf32> to vector<8x32xf32>
    %104 = arith.mulf %94, %103 : vector<8x32xf32>
    %c0_56 = arith.constant 0 : index
    %c0_57 = arith.constant 0 : index
    %105 = vector.load %arg7[%c0_56, %c0_57] : memref<1x32xf32, #tpu.memory_space<vmem>>, vector<1x32xf32>
    %106 = vector.broadcast %105 : vector<1x32xf32> to vector<8x32xf32>
    %107 = arith.mulf %104, %106 : vector<8x32xf32>
    %c0_58 = arith.constant 0 : index
    %c0_59 = arith.constant 0 : index
    %108 = vector.load %arg8[%c0_58, %c0_59] : memref<1x32xf32, #tpu.memory_space<vmem>>, vector<1x32xf32>
    %109 = vector.broadcast %108 : vector<1x32xf32> to vector<8x32xf32>
    %110 = arith.addf %107, %109 : vector<8x32xf32>
    %c0_60 = arith.constant 0 : index
    %c0_61 = arith.constant 0 : index
    %c0_62 = arith.constant 0 : index
    %111 = vector.load %arg9[%c0_60, %c0_61, %c0_62] : memref<1x8x32xf32, #tpu.memory_space<vmem>>, vector<1x8x32xf32>
    %112 = vector.shape_cast %111 : vector<1x8x32xf32> to vector<8x32xf32>
    %113 = vector.shape_cast %110 : vector<8x32xf32> to vector<1x8x32xf32>
    tpu.vector_store %arg9[%c0_60, %c0_61, %c0_62], %113 {strides = array<i32>} : memref<1x8x32xf32, #tpu.memory_space<vmem>>, vector<1x8x32xf32>,
    return
  }
  func.func @transform_0(%arg0: i32, %arg1: i32) -> (i32, i32, i32) {
    %c0_i32 = arith.constant 0 : i32
    %c0_i32_0 = arith.constant 0 : i32
    return %arg0, %arg1, %c0_i32 : i32, i32, i32
  }
  func.func @transform_1(%arg0: i32, %arg1: i32) -> (i32, i32, i32) {
    %c0_i32 = arith.constant 0 : i32
    %c0_i32_0 = arith.constant 0 : i32
    %c0_i32_1 = arith.constant 0 : i32
    return %arg0, %c0_i32, %c0_i32_0 : i32, i32, i32
  }
  func.func @transform_2(%arg0: i32, %arg1: i32) -> (i32, i32, i32) {
    %c0_i32 = arith.constant 0 : i32
    %c0_i32_0 = arith.constant 0 : i32
    %c0_i32_1 = arith.constant 0 : i32
    return %arg0, %c0_i32, %c0_i32_0 : i32, i32, i32
  }
  func.func @transform_3(%arg0: i32, %arg1: i32) -> (i32, i32) {
    %c0_i32 = arith.constant 0 : i32
    %c0_i32_0 = arith.constant 0 : i32
    %c0_i32_1 = arith.constant 0 : i32
    return %c0_i32, %c0_i32_0 : i32, i32
  }
  func.func @transform_4(%arg0: i32, %arg1: i32) -> (i32, i32) {
    %c0_i32 = arith.constant 0 : i32
    %c0_i32_0 = arith.constant 0 : i32
    %c0_i32_1 = arith.constant 0 : i32
    return %c0_i32, %c0_i32_0 : i32, i32
  }
  func.func @transform_5(%arg0: i32, %arg1: i32) -> (i32, i32) {
    %c0_i32 = arith.constant 0 : i32
    %c0_i32_0 = arith.constant 0 : i32
    %c0_i32_1 = arith.constant 0 : i32
    return %c0_i32, %c0_i32_0 : i32, i32
  }
  func.func @transform_6(%arg0: i32, %arg1: i32) -> (i32, i32) {
    %c0_i32 = arith.constant 0 : i32
    %c0_i32_0 = arith.constant 0 : i32
    %c0_i32_1 = arith.constant 0 : i32
    return %c0_i32, %c0_i32_0 : i32, i32
  }
  func.func @transform_7(%arg0: i32, %arg1: i32) -> (i32, i32, i32) {
    %c0_i32 = arith.constant 0 : i32
    %c0_i32_0 = arith.constant 0 : i32
    return %arg0, %arg1, %c0_i32 : i32, i32, i32
  }
  func.func @transform_8(%arg0: i32, %arg1: i32) -> (i32, i32, i32, i32) {
    %c0_i32 = arith.constant 0 : i32
    %c0_i32_0 = arith.constant 0 : i32
    %c0_i32_1 = arith.constant 0 : i32
    return %c0_i32, %arg0, %arg1, %c0_i32_0 : i32, i32, i32, i32
  }
}

module attributes {stable_mosaic.version = 11 : i64} {
  func.func @_mha_kernel(%arg0: i32, %arg1: i32, %arg2: memref<1x8x32xf32, #tpu.memory_space<vmem>>, %arg3: memref<1x8x32xf32, #tpu.memory_space<vmem>>, %arg4: memref<1x8x32xf32, #tpu.memory_space<vmem>>, %arg5: memref<32x96xf32, #tpu.memory_space<vmem>>, %arg6: memref<32x32xf32, #tpu.memory_space<vmem>>, %arg7: memref<1x32xf32, #tpu.memory_space<vmem>>, %arg8: memref<1x32xf32, #tpu.memory_space<vmem>>, %arg9: memref<1x8x32xf32, #tpu.memory_space<vmem>>, %arg10: memref<4x1x8x8xf32, #tpu.memory_space<vmem>>, %arg11: memref<8x32xf32, #tpu.memory_space<vmem>>) attributes {dimension_semantics = [#tpu.dimension_semantics<parallel>, #tpu.dimension_semantics<parallel>], iteration_bounds = array<i64: 2, 1>, scalar_prefetch = 0 : i64, scratch_operands = 1 : i64, tpu.core_type = #tpu.core_type<tc>, window_params = [{transform_indices = @transform_0, window_bounds = array<i64: 1, 8, 32>}, {transform_indices = @transform_1, window_bounds = array<i64: 1, 8, 32>}, {transform_indices = @transform_2, window_bounds = array<i64: 1, 8, 32>}, {pipeline_mode = #tpu.pipeline_mode<synchronous>, transform_indices = @transform_3, window_bounds = array<i64: 32, 96>}, {pipeline_mode = #tpu.pipeline_mode<synchronous>, transform_indices = @transform_4, window_bounds = array<i64: 32, 32>}, {pipeline_mode = #tpu.pipeline_mode<synchronous>, transform_indices = @transform_5, window_bounds = array<i64: 1, 32>}, {pipeline_mode = #tpu.pipeline_mode<synchronous>, transform_indices = @transform_6, window_bounds = array<i64: 1, 32>}, {transform_indices = @transform_7, window_bounds = array<i64: 1, 8, 32>}, {transform_indices = @transform_8, window_bounds = array<i64: 4, 1, 8, 8>}]} {
    %c0 = arith.constant 0 : index
    %c0_0 = arith.constant 0 : index
    %c0_1 = arith.constant 0 : index
    %0 = vector.load %arg2[%c0, %c0_0, %c0_1] : memref<1x8x32xf32, #tpu.memory_space<vmem>>, vector<1x8x32xf32>
    %1 = vector.shape_cast %0 : vector<1x8x32xf32> to vector<8x32xf32>
    %c0_2 = arith.constant 0 : index
    %c0_3 = arith.constant 0 : index
    %2 = vector.load %arg5[%c0_2, %c0_3] : memref<32x96xf32, #tpu.memory_space<vmem>>, vector<32x96xf32>
    %c0_4 = arith.constant 0 : index
    %c0_5 = arith.constant 0 : index
    %c0_6 = arith.constant 0 : index
    %3 = vector.load %arg3[%c0_4, %c0_5, %c0_6] : memref<1x8x32xf32, #tpu.memory_space<vmem>>, vector<1x8x32xf32>
    %4 = vector.shape_cast %3 : vector<1x8x32xf32> to vector<8x32xf32>
    %c0_7 = arith.constant 0 : index
    %c0_8 = arith.constant 0 : index
    %c0_9 = arith.constant 0 : index
    %5 = vector.load %arg4[%c0_7, %c0_8, %c0_9] : memref<1x8x32xf32, #tpu.memory_space<vmem>>, vector<1x8x32xf32>
    %6 = vector.shape_cast %5 : vector<1x8x32xf32> to vector<8x32xf32>
    %7 = vector.extract_strided_slice %2 {offsets = [0, 0], sizes = [32, 32], strides = [1, 1]} : vector<32x96xf32> to vector<32x32xf32>
    %cst = arith.constant dense<0.000000e+00> : vector<8x32xf32>
    %8 = tpu.matmul %1, %7, %cst {dimension_numbers = #tpu.dot_dimension_numbers<[1], [0], [0], [1], [0, 0, 1, 1], [], []>} : vector<8x32xf32>, vector<32x32xf32>, vector<8x32xf32> -> vector<8x32xf32>
    %9 = vector.extract_strided_slice %2 {offsets = [0, 32], sizes = [32, 32], strides = [1, 1]} : vector<32x96xf32> to vector<32x32xf32>
    %cst_10 = arith.constant dense<0.000000e+00> : vector<8x32xf32>
    %10 = tpu.matmul %4, %9, %cst_10 {dimension_numbers = #tpu.dot_dimension_numbers<[1], [0], [0], [1], [0, 0, 1, 1], [], []>} : vector<8x32xf32>, vector<32x32xf32>, vector<8x32xf32> -> vector<8x32xf32>
    %11 = vector.extract_strided_slice %2 {offsets = [0, 64], sizes = [32, 32], strides = [1, 1]} : vector<32x96xf32> to vector<32x32xf32>
    %cst_11 = arith.constant dense<0.000000e+00> : vector<8x32xf32>
    %12 = tpu.matmul %6, %11, %cst_11 {dimension_numbers = #tpu.dot_dimension_numbers<[1], [0], [0], [1], [0, 0, 1, 1], [], []>} : vector<8x32xf32>, vector<32x32xf32>, vector<8x32xf32> -> vector<8x32xf32>
    %13 = vector.extract_strided_slice %8 {offsets = [0, 0], sizes = [8, 8], strides = [1, 1]} : vector<8x32xf32> to vector<8x8xf32>
    %14 = vector.extract_strided_slice %10 {offsets = [0, 0], sizes = [8, 8], strides = [1, 1]} : vector<8x32xf32> to vector<8x8xf32>
    %15 = vector.extract_strided_slice %12 {offsets = [0, 0], sizes = [8, 8], strides = [1, 1]} : vector<8x32xf32> to vector<8x8xf32>
    %cst_12 = arith.constant dense<0.000000e+00> : vector<8x8xf32>
    %16 = tpu.matmul %13, %14, %cst_12 {dimension_numbers = #tpu.dot_dimension_numbers<[1], [1], [0], [0], [0, 0, 1, 0], [], []>} : vector<8x8xf32>, vector<8x8xf32>, vector<8x8xf32> -> vector<8x8xf32>
    %cst_13 = arith.constant dense<0xFF800000> : vector<8xf32>
    %17 = vector.multi_reduction <maximumf>, %16, %cst_13 [1] : vector<8x8xf32> to vector<8xf32>
    %18 = vector.shape_cast %17 : vector<8xf32> to vector<8x1xf32>
    %19 = vector.broadcast %18 : vector<8x1xf32> to vector<8x8xf32>
    %20 = arith.subf %16, %19 : vector<8x8xf32>
    %21 = math.exp %20 : vector<8x8xf32>
    %cst_14 = arith.constant dense<0.000000e+00> : vector<8xf32>
    %22 = vector.multi_reduction <add>, %21, %cst_14 [1] : vector<8x8xf32> to vector<8xf32>
    %23 = vector.shape_cast %22 : vector<8xf32> to vector<8x1xf32>
    %24 = vector.broadcast %23 : vector<8x1xf32> to vector<8x8xf32>
    %25 = arith.divf %21, %24 : vector<8x8xf32>
    %c0_15 = arith.constant 0 : index
    %c0_16 = arith.constant 0 : index
    %c0_17 = arith.constant 0 : index
    %c0_18 = arith.constant 0 : index
    %26 = vector.load %arg10[%c0_15, %c0_16, %c0_17, %c0_18] : memref<4x1x8x8xf32, #tpu.memory_space<vmem>>, vector<1x1x8x8xf32>
    %27 = vector.shape_cast %26 : vector<1x1x8x8xf32> to vector<8x8xf32>
    %28 = vector.shape_cast %25 : vector<8x8xf32> to vector<1x1x8x8xf32>
    tpu.vector_store %arg10[%c0_15, %c0_16, %c0_17, %c0_18], %28 {strides = array<i32>} : memref<4x1x8x8xf32, #tpu.memory_space<vmem>>, vector<1x1x8x8xf32>,
    %cst_19 = arith.constant dense<0.000000e+00> : vector<8x8xf32>
    %29 = tpu.matmul %25, %15, %cst_19 {dimension_numbers = #tpu.dot_dimension_numbers<[1], [0], [0], [1], [0, 0, 1, 1], [], []>} : vector<8x8xf32>, vector<8x8xf32>, vector<8x8xf32> -> vector<8x8xf32>
    %c0_20 = arith.constant 0 : index
    %c0_21 = arith.constant 0 : index
    %30 = vector.load %arg11[%c0_20, %c0_21] : memref<8x32xf32, #tpu.memory_space<vmem>>, vector<8x8xf32>
    tpu.vector_store %arg11[%c0_20, %c0_21], %29 {strides = array<i32>} : memref<8x32xf32, #tpu.memory_space<vmem>>, vector<8x8xf32>,
    %31 = vector.extract_strided_slice %8 {offsets = [0, 8], sizes = [8, 8], strides = [1, 1]} : vector<8x32xf32> to vector<8x8xf32>
    %32 = vector.extract_strided_slice %10 {offsets = [0, 8], sizes = [8, 8], strides = [1, 1]} : vector<8x32xf32> to vector<8x8xf32>
    %33 = vector.extract_strided_slice %12 {offsets = [0, 8], sizes = [8, 8], strides = [1, 1]} : vector<8x32xf32> to vector<8x8xf32>
    %cst_22 = arith.constant dense<0.000000e+00> : vector<8x8xf32>
    %34 = tpu.matmul %31, %32, %cst_22 {dimension_numbers = #tpu.dot_dimension_numbers<[1], [1], [0], [0], [0, 0, 1, 0], [], []>} : vector<8x8xf32>, vector<8x8xf32>, vector<8x8xf32> -> vector<8x8xf32>
    %cst_23 = arith.constant dense<0xFF800000> : vector<8xf32>
    %35 = vector.multi_reduction <maximumf>, %34, %cst_23 [1] : vector<8x8xf32> to vector<8xf32>
    %36 = vector.shape_cast %35 : vector<8xf32> to vector<8x1xf32>
    %37 = vector.broadcast %36 : vector<8x1xf32> to vector<8x8xf32>
    %38 = arith.subf %34, %37 : vector<8x8xf32>
    %39 = math.exp %38 : vector<8x8xf32>
    %cst_24 = arith.constant dense<0.000000e+00> : vector<8xf32>
    %40 = vector.multi_reduction <add>, %39, %cst_24 [1] : vector<8x8xf32> to vector<8xf32>
    %41 = vector.shape_cast %40 : vector<8xf32> to vector<8x1xf32>
    %42 = vector.broadcast %41 : vector<8x1xf32> to vector<8x8xf32>
    %43 = arith.divf %39, %42 : vector<8x8xf32>
    %c1 = arith.constant 1 : index
    %c0_25 = arith.constant 0 : index
    %c0_26 = arith.constant 0 : index
    %c0_27 = arith.constant 0 : index
    %44 = vector.load %arg10[%c1, %c0_25, %c0_26, %c0_27] : memref<4x1x8x8xf32, #tpu.memory_space<vmem>>, vector<1x1x8x8xf32>
    %45 = vector.shape_cast %44 : vector<1x1x8x8xf32> to vector<8x8xf32>
    %46 = vector.shape_cast %43 : vector<8x8xf32> to vector<1x1x8x8xf32>
    tpu.vector_store %arg10[%c1, %c0_25, %c0_26, %c0_27], %46 {strides = array<i32>} : memref<4x1x8x8xf32, #tpu.memory_space<vmem>>, vector<1x1x8x8xf32>,
    %cst_28 = arith.constant dense<0.000000e+00> : vector<8x8xf32>
    %47 = tpu.matmul %43, %33, %cst_28 {dimension_numbers = #tpu.dot_dimension_numbers<[1], [0], [0], [1], [0, 0, 1, 1], [], []>} : vector<8x8xf32>, vector<8x8xf32>, vector<8x8xf32> -> vector<8x8xf32>
    %c0_29 = arith.constant 0 : index
    %c8 = arith.constant 8 : index
    %48 = vector.load %arg11[%c0_29, %c8] : memref<8x32xf32, #tpu.memory_space<vmem>>, vector<8x8xf32>
    tpu.vector_store %arg11[%c0_29, %c8], %47 {strides = array<i32>} : memref<8x32xf32, #tpu.memory_space<vmem>>, vector<8x8xf32>,
    %49 = vector.extract_strided_slice %8 {offsets = [0, 16], sizes = [8, 8], strides = [1, 1]} : vector<8x32xf32> to vector<8x8xf32>
    %50 = vector.extract_strided_slice %10 {offsets = [0, 16], sizes = [8, 8], strides = [1, 1]} : vector<8x32xf32> to vector<8x8xf32>
    %51 = vector.extract_strided_slice %12 {offsets = [0, 16], sizes = [8, 8], strides = [1, 1]} : vector<8x32xf32> to vector<8x8xf32>
    %cst_30 = arith.constant dense<0.000000e+00> : vector<8x8xf32>
    %52 = tpu.matmul %49, %50, %cst_30 {dimension_numbers = #tpu.dot_dimension_numbers<[1], [1], [0], [0], [0, 0, 1, 0], [], []>} : vector<8x8xf32>, vector<8x8xf32>, vector<8x8xf32> -> vector<8x8xf32>
    %cst_31 = arith.constant dense<0xFF800000> : vector<8xf32>
    %53 = vector.multi_reduction <maximumf>, %52, %cst_31 [1] : vector<8x8xf32> to vector<8xf32>
    %54 = vector.shape_cast %53 : vector<8xf32> to vector<8x1xf32>
    %55 = vector.broadcast %54 : vector<8x1xf32> to vector<8x8xf32>
    %56 = arith.subf %52, %55 : vector<8x8xf32>
    %57 = math.exp %56 : vector<8x8xf32>
    %cst_32 = arith.constant dense<0.000000e+00> : vector<8xf32>
    %58 = vector.multi_reduction <add>, %57, %cst_32 [1] : vector<8x8xf32> to vector<8xf32>
    %59 = vector.shape_cast %58 : vector<8xf32> to vector<8x1xf32>
    %60 = vector.broadcast %59 : vector<8x1xf32> to vector<8x8xf32>
    %61 = arith.divf %57, %60 : vector<8x8xf32>
    %c2 = arith.constant 2 : index
    %c0_33 = arith.constant 0 : index
    %c0_34 = arith.constant 0 : index
    %c0_35 = arith.constant 0 : index
    %62 = vector.load %arg10[%c2, %c0_33, %c0_34, %c0_35] : memref<4x1x8x8xf32, #tpu.memory_space<vmem>>, vector<1x1x8x8xf32>
    %63 = vector.shape_cast %62 : vector<1x1x8x8xf32> to vector<8x8xf32>
    %64 = vector.shape_cast %61 : vector<8x8xf32> to vector<1x1x8x8xf32>
    tpu.vector_store %arg10[%c2, %c0_33, %c0_34, %c0_35], %64 {strides = array<i32>} : memref<4x1x8x8xf32, #tpu.memory_space<vmem>>, vector<1x1x8x8xf32>,
    %cst_36 = arith.constant dense<0.000000e+00> : vector<8x8xf32>
    %65 = tpu.matmul %61, %51, %cst_36 {dimension_numbers = #tpu.dot_dimension_numbers<[1], [0], [0], [1], [0, 0, 1, 1], [], []>} : vector<8x8xf32>, vector<8x8xf32>, vector<8x8xf32> -> vector<8x8xf32>
    %c0_37 = arith.constant 0 : index
    %c16 = arith.constant 16 : index
    %66 = vector.load %arg11[%c0_37, %c16] : memref<8x32xf32, #tpu.memory_space<vmem>>, vector<8x8xf32>
    tpu.vector_store %arg11[%c0_37, %c16], %65 {strides = array<i32>} : memref<8x32xf32, #tpu.memory_space<vmem>>, vector<8x8xf32>,
    %67 = vector.extract_strided_slice %8 {offsets = [0, 24], sizes = [8, 8], strides = [1, 1]} : vector<8x32xf32> to vector<8x8xf32>
    %68 = vector.extract_strided_slice %10 {offsets = [0, 24], sizes = [8, 8], strides = [1, 1]} : vector<8x32xf32> to vector<8x8xf32>
    %69 = vector.extract_strided_slice %12 {offsets = [0, 24], sizes = [8, 8], strides = [1, 1]} : vector<8x32xf32> to vector<8x8xf32>
    %cst_38 = arith.constant dense<0.000000e+00> : vector<8x8xf32>
    %70 = tpu.matmul %67, %68, %cst_38 {dimension_numbers = #tpu.dot_dimension_numbers<[1], [1], [0], [0], [0, 0, 1, 0], [], []>} : vector<8x8xf32>, vector<8x8xf32>, vector<8x8xf32> -> vector<8x8xf32>
    %cst_39 = arith.constant dense<0xFF800000> : vector<8xf32>
    %71 = vector.multi_reduction <maximumf>, %70, %cst_39 [1] : vector<8x8xf32> to vector<8xf32>
    %72 = vector.shape_cast %71 : vector<8xf32> to vector<8x1xf32>
    %73 = vector.broadcast %72 : vector<8x1xf32> to vector<8x8xf32>
    %74 = arith.subf %70, %73 : vector<8x8xf32>
    %75 = math.exp %74 : vector<8x8xf32>
    %cst_40 = arith.constant dense<0.000000e+00> : vector<8xf32>
    %76 = vector.multi_reduction <add>, %75, %cst_40 [1] : vector<8x8xf32> to vector<8xf32>
    %77 = vector.shape_cast %76 : vector<8xf32> to vector<8x1xf32>
    %78 = vector.broadcast %77 : vector<8x1xf32> to vector<8x8xf32>
    %79 = arith.divf %75, %78 : vector<8x8xf32>
    %c3 = arith.constant 3 : index
    %c0_41 = arith.constant 0 : index
    %c0_42 = arith.constant 0 : index
    %c0_43 = arith.constant 0 : index
    %80 = vector.load %arg10[%c3, %c0_41, %c0_42, %c0_43] : memref<4x1x8x8xf32, #tpu.memory_space<vmem>>, vector<1x1x8x8xf32>
    %81 = vector.shape_cast %80 : vector<1x1x8x8xf32> to vector<8x8xf32>
    %82 = vector.shape_cast %79 : vector<8x8xf32> to vector<1x1x8x8xf32>
    tpu.vector_store %arg10[%c3, %c0_41, %c0_42, %c0_43], %82 {strides = array<i32>} : memref<4x1x8x8xf32, #tpu.memory_space<vmem>>, vector<1x1x8x8xf32>,
    %cst_44 = arith.constant dense<0.000000e+00> : vector<8x8xf32>
    %83 = tpu.matmul %79, %69, %cst_44 {dimension_numbers = #tpu.dot_dimension_numbers<[1], [0], [0], [1], [0, 0, 1, 1], [], []>} : vector<8x8xf32>, vector<8x8xf32>, vector<8x8xf32> -> vector<8x8xf32>
    %c0_45 = arith.constant 0 : index
    %c24 = arith.constant 24 : index
    %84 = vector.load %arg11[%c0_45, %c24] : memref<8x32xf32, #tpu.memory_space<vmem>>, vector<8x8xf32>
    tpu.vector_store %arg11[%c0_45, %c24], %83 {strides = array<i32>} : memref<8x32xf32, #tpu.memory_space<vmem>>, vector<8x8xf32>,
    %c0_46 = arith.constant 0 : index
    %c0_47 = arith.constant 0 : index
    %85 = vector.load %arg11[%c0_46, %c0_47] : memref<8x32xf32, #tpu.memory_space<vmem>>, vector<8x32xf32>
    %c0_48 = arith.constant 0 : index
    %c0_49 = arith.constant 0 : index
    %86 = vector.load %arg6[%c0_48, %c0_49] : memref<32x32xf32, #tpu.memory_space<vmem>>, vector<32x32xf32>
    %cst_50 = arith.constant dense<0.000000e+00> : vector<8x32xf32>
    %87 = tpu.matmul %85, %86, %cst_50 {dimension_numbers = #tpu.dot_dimension_numbers<[1], [0], [0], [1], [0, 0, 1, 1], [], []>} : vector<8x32xf32>, vector<32x32xf32>, vector<8x32xf32> -> vector<8x32xf32>
    %88 = arith.addf %87, %1 : vector<8x32xf32>
    %cst_51 = arith.constant dense<0.000000e+00> : vector<8xf32>
    %89 = vector.multi_reduction <add>, %88, %cst_51 [1] : vector<8x32xf32> to vector<8xf32>
    %90 = vector.shape_cast %89 : vector<8xf32> to vector<8x1xf32>
    %cst_52 = arith.constant 3.200000e+01 : f32
    %91 = vector.broadcast %cst_52 : f32 to vector<8x1xf32>
    %92 = arith.divf %90, %91 : vector<8x1xf32>
    %93 = vector.broadcast %92 : vector<8x1xf32> to vector<8x32xf32>
    %94 = arith.subf %88, %93 : vector<8x32xf32>
    %95 = arith.mulf %94, %94 : vector<8x32xf32>
    %cst_53 = arith.constant dense<0.000000e+00> : vector<8xf32>
    %96 = vector.multi_reduction <add>, %95, %cst_53 [1] : vector<8x32xf32> to vector<8xf32>
    %97 = vector.shape_cast %96 : vector<8xf32> to vector<8x1xf32>
    %cst_54 = arith.constant 3.200000e+01 : f32
    %98 = vector.broadcast %cst_54 : f32 to vector<8x1xf32>
    %99 = arith.divf %97, %98 : vector<8x1xf32>
    %cst_55 = arith.constant 9.99999974E-6 : f32
    %100 = vector.broadcast %cst_55 : f32 to vector<8x1xf32>
    %101 = arith.addf %99, %100 : vector<8x1xf32>
    %102 = math.rsqrt %101 : vector<8x1xf32>
    %103 = vector.broadcast %102 : vector<8x1xf32> to vector<8x32xf32>
    %104 = arith.mulf %94, %103 : vector<8x32xf32>
    %c0_56 = arith.constant 0 : index
    %c0_57 = arith.constant 0 : index
    %105 = vector.load %arg7[%c0_56, %c0_57] : memref<1x32xf32, #tpu.memory_space<vmem>>, vector<1x32xf32>
    %106 = vector.broadcast %105 : vector<1x32xf32> to vector<8x32xf32>
    %107 = arith.mulf %104, %106 : vector<8x32xf32>
    %c0_58 = arith.constant 0 : index
    %c0_59 = arith.constant 0 : index
    %108 = vector.load %arg8[%c0_58, %c0_59] : memref<1x32xf32, #tpu.memory_space<vmem>>, vector<1x32xf32>
    %109 = vector.broadcast %108 : vector<1x32xf32> to vector<8x32xf32>
    %110 = arith.addf %107, %109 : vector<8x32xf32>
    %c0_60 = arith.constant 0 : index
    %c0_61 = arith.constant 0 : index
    %c0_62 = arith.constant 0 : index
    %111 = vector.load %arg9[%c0_60, %c0_61, %c0_62] : memref<1x8x32xf32, #tpu.memory_space<vmem>>, vector<1x8x32xf32>
    %112 = vector.shape_cast %111 : vector<1x8x32xf32> to vector<8x32xf32>
    %113 = vector.shape_cast %110 : vector<8x32xf32> to vector<1x8x32xf32>
    tpu.vector_store %arg9[%c0_60, %c0_61, %c0_62], %113 {strides = array<i32>} : memref<1x8x32xf32, #tpu.memory_space<vmem>>, vector<1x8x32xf32>,
    return
  }
  func.func @transform_0(%arg0: i32, %arg1: i32) -> (i32, i32, i32) {
    %c0_i32 = arith.constant 0 : i32
    %c0_i32_0 = arith.constant 0 : i32
    return %arg0, %arg1, %c0_i32 : i32, i32, i32
  }
  func.func @transform_1(%arg0: i32, %arg1: i32) -> (i32, i32, i32) {
    %c0_i32 = arith.constant 0 : i32
    %c0_i32_0 = arith.constant 0 : i32
    %c0_i32_1 = arith.constant 0 : i32
    return %arg0, %c0_i32, %c0_i32_0 : i32, i32, i32
  }
  func.func @transform_2(%arg0: i32, %arg1: i32) -> (i32, i32, i32) {
    %c0_i32 = arith.constant 0 : i32
    %c0_i32_0 = arith.constant 0 : i32
    %c0_i32_1 = arith.constant 0 : i32
    return %arg0, %c0_i32, %c0_i32_0 : i32, i32, i32
  }
  func.func @transform_3(%arg0: i32, %arg1: i32) -> (i32, i32) {
    %c0_i32 = arith.constant 0 : i32
    %c0_i32_0 = arith.constant 0 : i32
    %c0_i32_1 = arith.constant 0 : i32
    return %c0_i32, %c0_i32_0 : i32, i32
  }
  func.func @transform_4(%arg0: i32, %arg1: i32) -> (i32, i32) {
    %c0_i32 = arith.constant 0 : i32
    %c0_i32_0 = arith.constant 0 : i32
    %c0_i32_1 = arith.constant 0 : i32
    return %c0_i32, %c0_i32_0 : i32, i32
  }
  func.func @transform_5(%arg0: i32, %arg1: i32) -> (i32, i32) {
    %c0_i32 = arith.constant 0 : i32
    %c0_i32_0 = arith.constant 0 : i32
    %c0_i32_1 = arith.constant 0 : i32
    return %c0_i32, %c0_i32_0 : i32, i32
  }
  func.func @transform_6(%arg0: i32, %arg1: i32) -> (i32, i32) {
    %c0_i32 = arith.constant 0 : i32
    %c0_i32_0 = arith.constant 0 : i32
    %c0_i32_1 = arith.constant 0 : i32
    return %c0_i32, %c0_i32_0 : i32, i32
  }
  func.func @transform_7(%arg0: i32, %arg1: i32) -> (i32, i32, i32) {
    %c0_i32 = arith.constant 0 : i32
    %c0_i32_0 = arith.constant 0 : i32
    return %arg0, %arg1, %c0_i32 : i32, i32, i32
  }
  func.func @transform_8(%arg0: i32, %arg1: i32) -> (i32, i32, i32, i32) {
    %c0_i32 = arith.constant 0 : i32
    %c0_i32_0 = arith.constant 0 : i32
    %c0_i32_1 = arith.constant 0 : i32
    return %c0_i32, %arg0, %arg1, %c0_i32_0 : i32, i32, i32, i32
  }
}

</mosaic_0001>

<llo_original>
// kernel: tpu_custom_call.1
$region0: #{tpu_custom_call.1}
  #allocation0 [shape = 'u32[]', space=smem, size = 0x4, offset = 0x4, fixed_abs, tag = 'smem constant byte address 0x4 - core index']
  #allocation1 [shape = 'u32[144,128]{1,0:T(1,128)}', space=vmem, size = 0x12000, scoped, tag = 'internal scratch']
  #allocation2 [shape = 'f32[8,32]{1,0:T(8,128)}', space=vmem, size = 0x1000, scoped, tag = 'scratch operand']
  %s0 = inlined_call_operand.hbm [shape: f32[2,8,32], index: 0, kind: input, shape index: {}]
  %s1 = inlined_call_operand.hbm [shape: f32[2,8,32], index: 1, kind: input, shape index: {}]
  %s2 = inlined_call_operand.hbm [shape: f32[2,8,32], index: 2, kind: input, shape index: {}]
  %s3 = inlined_call_operand.hbm [shape: f32[32,96], index: 3, kind: input, shape index: {}]
  %s4 = inlined_call_operand.hbm [shape: f32[32,32], index: 4, kind: input, shape index: {}]
  %s5 = inlined_call_operand.hbm [shape: f32[1,32], index: 5, kind: input, shape index: {}]
  %s6 = inlined_call_operand.hbm [shape: f32[1,32], index: 6, kind: input, shape index: {}]
  %s7 = inlined_call_operand.hbm [shape: f32[2,8,32], index: 7, kind: output, shape index: {0}]
  %s8 = inlined_call_operand.hbm [shape: f32[4,2,8,8], index: 8, kind: output, shape index: {1}]
  %9 = xla_tuple %s7, %s8
  %s10 = sld [smem:[#allocation0]]
  $region97: #{tpu_custom_call.1} parent=0
    _
  %s12 = ssub.s32 1, %s10
  %s13 = scalar_select 0, %s12, %s10
  $region1: #{tpu_custom_call.1} parent=0
    #allocation3 [shape = 'u8[8192]{0}', space=vmem, size = 0x2000, scoped, tag = 'input window, operand 0']
    #allocation4 [shape = 's32[2]{0}', space=sflag, size = 0x8, scoped, tag = 'scoped memory for tpu_custom_call.1']
    #allocation5 [shape = 's32[2]{0}', space=sflag, size = 0x8, scoped, tag = 'scoped memory for tpu_custom_call.1']
    #allocation6 [shape = 'u8[8192]{0}', space=vmem, size = 0x2000, scoped, tag = 'input window, operand 1']
    #allocation7 [shape = 's32[2]{0}', space=sflag, size = 0x8, scoped, tag = 'scoped memory for tpu_custom_call.1']
    #allocation8 [shape = 'u8[8192]{0}', space=vmem, size = 0x2000, scoped, tag = 'input window, operand 2']
    #allocation9 [shape = 'u8[16384]{0}', space=vmem, size = 0x4000, scoped, tag = 'input window, operand 3, single buffered']
    #allocation10 [shape = 's32[1]{0}', space=sflag, size = 0x4, scoped, tag = 'scoped memory for tpu_custom_call.1']
    #allocation11 [shape = 'u8[16384]{0}', space=vmem, size = 0x4000, scoped, tag = 'input window, operand 4, single buffered']
    #allocation12 [shape = 'u8[512]{0}', space=vmem, size = 0x400, scoped, tag = 'input window, operand 5, single buffered']
    #allocation13 [shape = 's32[1]{0}', space=sflag, size = 0x4, scoped, tag = 'scoped memory for tpu_custom_call.1']
    #allocation14 [shape = 'u8[512]{0}', space=vmem, size = 0x400, scoped, tag = 'input window, operand 6, single buffered']
    #allocation15 [shape = 'u8[8192]{0}', space=vmem, size = 0x2000, scoped, tag = 'output window, operand 0']
    #allocation16 [shape = 'u8[32768]{0}', space=vmem, size = 0x8000, scoped, tag = 'output window, operand 1']
    #allocation17 [shape = 's32[2]{0}', space=sflag, size = 0x8, scoped, tag = 'scoped memory for tpu_custom_call.1']
    %14 = vsyncpa [#allocation4], 0
    %s15 = scalar_lea.sflag [#allocation4], 1
    %16 = vsyncpa %s15, 0
    %17 = vsyncpa [#allocation7], 0
    %s18 = scalar_lea.sflag [#allocation7], 1
    %19 = vsyncpa %s18, 0
    %20 = vsyncpa [#allocation10], 0
    %21 = vsyncpa [#allocation13], 0
    %22 = vsyncpa [#allocation5], 0
    %s23 = scalar_lea.sflag [#allocation5], 1
    %24 = vsyncpa %s23, 0
    %25 = vsyncpa [#allocation17], 0
    %s26 = scalar_lea.sflag [#allocation17], 1
    %27 = vsyncpa %s26, 0
    loop: start=0, step=1, limit=4
    $region2: #{tpu_custom_call.1} parent=1 // loop_pre_header
      _
    $region3: #{tpu_custom_call.1} parent=1 // loop_header
      %s29 = sphi 0, %s33
      %p30 = scmp.ge.s32.totalorder %s29, 4
      %s36 = sphi 0, %s48
      %s37 = sphi 0, %s44
      %s38 = sphi 0, %s36
      %s39 = sphi 0, %s37
      %s40 = sphi 0, %s38
      %s41 = sphi 0, %s39
      %s53 = sphi 0, %s55
      %s56 = sphi 0, %s53
      %s57 = sphi 0, %s56
      %s73 = sphi 0, %s57
      %s79 = sphi 0, %s81
      %s82 = sphi 0, %s79
      %s83 = sphi 0, %s82
      %s99 = sphi 0, %s83
      %s105 = sphi 0, %s107
      %s108 = sphi 0, %s105
      %s109 = sphi 0, %s108
      %s125 = sphi 0, %s109
      %s129 = sphi 0, %s129
      %s131 = sphi 0, %s129
      %s132 = sphi 0, %s131
      %s146 = sphi 0, %s132
      %s150 = sphi 0, %s150
      %s152 = sphi 0, %s150
      %s153 = sphi 0, %s152
      %s167 = sphi 0, %s153
      %s171 = sphi 0, %s171
      %s173 = sphi 0, %s171
      %s174 = sphi 0, %s173
      %s188 = sphi 0, %s174
      %s192 = sphi 0, %s192
      %s194 = sphi 0, %s192
      %s195 = sphi 0, %s194
      %s209 = sphi 0, %s195
      %s217 = sphi 0, %s219
      %s220 = sphi 0, %s217
      %s221 = sphi 0, %s220
      %s237 = sphi 0, %s221
      %s245 = sphi 0, %s247
      %s248 = sphi 0, %s245
      %s249 = sphi 0, %s248
      %s265 = sphi 0, %s249
    $region4: #{tpu_custom_call.1} parent=1 // loop_header_branch
      %32 = sbr.rel (%p30) target = $region8
    $region5: #{tpu_custom_call.1} parent=1 // loop_body
      %s34 = ssub.s32 %s29, 1
      %s35 = ssub.s32 %s29, 2
      %s42 = sadd.s32 1, %s37
      %p43 = scmp.ge.s32.totalorder %s42, 1
      %s44 = scalar_select %p43, 0, %s42
      %s45 = sadd.s32 1, %s36
      %s46 = scalar_select %p43, %s45, %s36
      %p47 = scmp.ge.s32.totalorder %s46, 2
      %s48 = scalar_select %p47, 0, %s46
      %s49 = ssub.s32 %s36, %s48
      %s50 = ssub.s32 %s37, %s44
      %s51 = sor.u32 %s49, %s50
      %p52 = scmp.eq.s32.totalorder %s51, 0
      %s54 = sadd.s32 %s53, 1
      %s55 = scalar_select %p52, %s53, %s54
      %p58 = pneg %p52
      %p59 = scmp.eq.s32.totalorder %s29, 1
      %p60 = por %p58, %p59
      %p61 = scmp.ne.s32.totalorder %s53, %s56
      %p62 = scmp.eq.s32.totalorder %s29, 0
      %p63 = por %p61, %p62
      %p64 = scmp.ne.s32.totalorder %s53, %s56
      %p65 = scmp.eq.s32.totalorder %s34, 1
      %p66 = por %p64, %p65
      %p67 = scmp.ne.s32.totalorder %s56, %s57
      %p68 = scmp.eq.s32.totalorder %s34, 0
      %p69 = por %p67, %p68
      %p70 = scmp.ne.s32.totalorder %s56, %s57
      %p71 = scmp.eq.s32.totalorder %s35, 1
      %p72 = por %p70, %p71
      %p74 = scmp.ne.s32.totalorder %s57, %s73
      %p75 = scmp.eq.s32.totalorder %s35, 0
      %p76 = por %p74, %p75
      %s77 = ssub.s32 %s36, %s48
      %p78 = scmp.eq.s32.totalorder %s77, 0
      %s80 = sadd.s32 %s79, 1
      %s81 = scalar_select %p78, %s79, %s80
      %p84 = pneg %p78
      %p85 = scmp.eq.s32.totalorder %s29, 1
      %p86 = por %p84, %p85
      %p87 = scmp.ne.s32.totalorder %s79, %s82
      %p88 = scmp.eq.s32.totalorder %s29, 0
      %p89 = por %p87, %p88
      %p90 = scmp.ne.s32.totalorder %s79, %s82
      %p91 = scmp.eq.s32.totalorder %s34, 1
      %p92 = por %p90, %p91
      %p93 = scmp.ne.s32.totalorder %s82, %s83
      %p94 = scmp.eq.s32.totalorder %s34, 0
      %p95 = por %p93, %p94
      %p96 = scmp.ne.s32.totalorder %s82, %s83
      %p97 = scmp.eq.s32.totalorder %s35, 1
      %p98 = por %p96, %p97
      %p100 = scmp.ne.s32.totalorder %s83, %s99
      %p101 = scmp.eq.s32.totalorder %s35, 0
      %p102 = por %p100, %p101
      %s103 = ssub.s32 %s36, %s48
      %p104 = scmp.eq.s32.totalorder %s103, 0
      %s106 = sadd.s32 %s105, 1
      %s107 = scalar_select %p104, %s105, %s106
      %p110 = pneg %p104
      %p111 = scmp.eq.s32.totalorder %s29, 1
      %p112 = por %p110, %p111
      %p113 = scmp.ne.s32.totalorder %s105, %s108
      %p114 = scmp.eq.s32.totalorder %s29, 0
      %p115 = por %p113, %p114
      %p116 = scmp.ne.s32.totalorder %s105, %s108
      %p117 = scmp.eq.s32.totalorder %s34, 1
      %p118 = por %p116, %p117
      %p119 = scmp.ne.s32.totalorder %s108, %s109
      %p120 = scmp.eq.s32.totalorder %s34, 0
      %p121 = por %p119, %p120
      %p122 = scmp.ne.s32.totalorder %s108, %s109
      %p123 = scmp.eq.s32.totalorder %s35, 1
      %p124 = por %p122, %p123
      %p126 = scmp.ne.s32.totalorder %s109, %s125
      %p127 = scmp.eq.s32.totalorder %s35, 0
      %p128 = por %p126, %p127
      %s130 = sadd.s32 %s129, 1
      %p133 = scmp.eq.s32.totalorder %s29, 1
      %p134 = scmp.ne.s32.totalorder %s129, %s131
      %p135 = scmp.eq.s32.totalorder %s29, 0
      %p136 = por %p134, %p135
      %p137 = scmp.ne.s32.totalorder %s129, %s131
      %p138 = scmp.eq.s32.totalorder %s34, 1
      %p139 = por %p137, %p138
      %p140 = scmp.ne.s32.totalorder %s131, %s132
      %p141 = scmp.eq.s32.totalorder %s34, 0
      %p142 = por %p140, %p141
      %p143 = scmp.ne.s32.totalorder %s131, %s132
      %p144 = scmp.eq.s32.totalorder %s35, 1
      %p145 = por %p143, %p144
      %p147 = scmp.ne.s32.totalorder %s132, %s146
      %p148 = scmp.eq.s32.totalorder %s35, 0
      %p149 = por %p147, %p148
      %s151 = sadd.s32 %s150, 1
      %p154 = scmp.eq.s32.totalorder %s29, 1
      %p155 = scmp.ne.s32.totalorder %s150, %s152
      %p156 = scmp.eq.s32.totalorder %s29, 0
      %p157 = por %p155, %p156
      %p158 = scmp.ne.s32.totalorder %s150, %s152
      %p159 = scmp.eq.s32.totalorder %s34, 1
      %p160 = por %p158, %p159
      %p161 = scmp.ne.s32.totalorder %s152, %s153
      %p162 = scmp.eq.s32.totalorder %s34, 0
      %p163 = por %p161, %p162
      %p164 = scmp.ne.s32.totalorder %s152, %s153
      %p165 = scmp.eq.s32.totalorder %s35, 1
      %p166 = por %p164, %p165
      %p168 = scmp.ne.s32.totalorder %s153, %s167
      %p169 = scmp.eq.s32.totalorder %s35, 0
      %p170 = por %p168, %p169
      %s172 = sadd.s32 %s171, 1
      %p175 = scmp.eq.s32.totalorder %s29, 1
      %p176 = scmp.ne.s32.totalorder %s171, %s173
      %p177 = scmp.eq.s32.totalorder %s29, 0
      %p178 = por %p176, %p177
      %p179 = scmp.ne.s32.totalorder %s171, %s173
      %p180 = scmp.eq.s32.totalorder %s34, 1
      %p181 = por %p179, %p180
      %p182 = scmp.ne.s32.totalorder %s173, %s174
      %p183 = scmp.eq.s32.totalorder %s34, 0
      %p184 = por %p182, %p183
      %p185 = scmp.ne.s32.totalorder %s173, %s174
      %p186 = scmp.eq.s32.totalorder %s35, 1
      %p187 = por %p185, %p186
      %p189 = scmp.ne.s32.totalorder %s174, %s188
      %p190 = scmp.eq.s32.totalorder %s35, 0
      %p191 = por %p189, %p190
      %s193 = sadd.s32 %s192, 1
      %p196 = scmp.eq.s32.totalorder %s29, 1
      %p197 = scmp.ne.s32.totalorder %s192, %s194
      %p198 = scmp.eq.s32.totalorder %s29, 0
      %p199 = por %p197, %p198
      %p200 = scmp.ne.s32.totalorder %s192, %s194
      %p201 = scmp.eq.s32.totalorder %s34, 1
      %p202 = por %p200, %p201
      %p203 = scmp.ne.s32.totalorder %s194, %s195
      %p204 = scmp.eq.s32.totalorder %s34, 0
      %p205 = por %p203, %p204
      %p206 = scmp.ne.s32.totalorder %s194, %s195
      %p207 = scmp.eq.s32.totalorder %s35, 1
      %p208 = por %p206, %p207
      %p210 = scmp.ne.s32.totalorder %s195, %s209
      %p211 = scmp.eq.s32.totalorder %s35, 0
      %p212 = por %p210, %p211
      %s213 = ssub.s32 %s36, %s48
      %s214 = ssub.s32 %s37, %s44
      %s215 = sor.u32 %s213, %s214
      %p216 = scmp.eq.s32.totalorder %s215, 0
      %s218 = sadd.s32 %s217, 1
      %s219 = scalar_select %p216, %s217, %s218
      %p222 = pneg %p216
      %p223 = scmp.eq.s32.totalorder %s29, 1
      %p224 = por %p222, %p223
      %p225 = scmp.ne.s32.totalorder %s217, %s220
      %p226 = scmp.eq.s32.totalorder %s29, 0
      %p227 = por %p225, %p226
      %p228 = scmp.ne.s32.totalorder %s217, %s220
      %p229 = scmp.eq.s32.totalorder %s34, 1
      %p230 = por %p228, %p229
      %p231 = scmp.ne.s32.totalorder %s220, %s221
      %p232 = scmp.eq.s32.totalorder %s34, 0
      %p233 = por %p231, %p232
      %p234 = scmp.ne.s32.totalorder %s220, %s221
      %p235 = scmp.eq.s32.totalorder %s35, 1
      %p236 = por %p234, %p235
      %p238 = scmp.ne.s32.totalorder %s221, %s237
      %p239 = scmp.eq.s32.totalorder %s35, 0
      %p240 = por %p238, %p239
      %s241 = ssub.s32 %s36, %s48
      %s242 = ssub.s32 %s37, %s44
      %s243 = sor.u32 %s241, %s242
      %p244 = scmp.eq.s32.totalorder %s243, 0
      %s246 = sadd.s32 %s245, 1
      %s247 = scalar_select %p244, %s245, %s246
      %p250 = pneg %p244
      %p251 = scmp.eq.s32.totalorder %s29, 1
      %p252 = por %p250, %p251
      %p253 = scmp.ne.s32.totalorder %s245, %s248
      %p254 = scmp.eq.s32.totalorder %s29, 0
      %p255 = por %p253, %p254
      %p256 = scmp.ne.s32.totalorder %s245, %s248
      %p257 = scmp.eq.s32.totalorder %s34, 1
      %p258 = por %p256, %p257
      %p259 = scmp.ne.s32.totalorder %s248, %s249
      %p260 = scmp.eq.s32.totalorder %s34, 0
      %p261 = por %p259, %p260
      %p262 = scmp.ne.s32.totalorder %s248, %s249
      %p263 = scmp.eq.s32.totalorder %s35, 1
      %p264 = por %p262, %p263
      %p266 = scmp.ne.s32.totalorder %s249, %s265
      %p267 = scmp.eq.s32.totalorder %s35, 0
      %p268 = por %p266, %p267
      %p269 = scmp.le.s32.totalorder 1, %s29
      %p270 = scmp.lt.s32.totalorder %s29, 3
      %p271 = pnand %p269, %p270
      %p272 = pneg %p271
      // Predicated region
      $region9: #{tpu_custom_call.1} parent=5 // pred_check
        _
      $region10: #{tpu_custom_call.1} parent=5 // pred_check_branch
        %274 = sbr.rel (%p271) target = $region12
      $region11: #{tpu_custom_call.1} parent=5 // pred_region
        %s275 = ssub.s32 %s29, 1
        // Predicated region
        $region13: #{tpu_custom_call.1} parent=11 // pred_check
          %p276 = pneg %p142
        $region14: #{tpu_custom_call.1} parent=11 // pred_check_branch
          %278 = sbr.rel (%p276) target = $region16
        $region15: #{tpu_custom_call.1} parent=11 // pred_region
          %s280 = ssub.s32 512, 512
          %281 = vsyncadd [#allocation10], %s280
          %s282 = sshll.u32 [#allocation9], 4
          %s283 = int_to_ptr.vmem [resolvable:$true] %s282
          %288 = dma.hbm_to_vmem [thread:$0]  %s3, 512, %s283, [#allocation10], 128, 128, 8
        $region16: #{tpu_custom_call.1} parent=11 // pred_fallthru
          _
        // Predicated region
        $region17: #{tpu_custom_call.1} parent=11 // pred_check
          %p289 = pneg %p163
        $region18: #{tpu_custom_call.1} parent=11 // pred_check_branch
          %291 = sbr.rel (%p289) target = $region20
        $region19: #{tpu_custom_call.1} parent=11 // pred_region
          %s293 = ssub.s32 512, 512
          %294 = vsyncadd [#allocation10], %s293
          %s295 = sshll.u32 [#allocation11], 4
          %s296 = int_to_ptr.vmem [resolvable:$true] %s295
          %301 = dma.hbm_to_vmem [thread:$0]  %s4, 512, %s296, [#allocation10], 128, 128, 8
        $region20: #{tpu_custom_call.1} parent=11 // pred_fallthru
          _
        // Predicated region
        $region21: #{tpu_custom_call.1} parent=11 // pred_check
          %p302 = pneg %p184
        $region22: #{tpu_custom_call.1} parent=11 // pred_check_branch
          %304 = sbr.rel (%p302) target = $region24
        $region23: #{tpu_custom_call.1} parent=11 // pred_region
          %s306 = ssub.s32 16, 16
          %307 = vsyncadd [#allocation13], %s306
          %s309 = sshll.u32 [#allocation12], 4
          %s310 = int_to_ptr.vmem [resolvable:$true] %s309
          %312 = dma.hbm_to_vmem [thread:$0]  %s5, 16, %s310, [#allocation13]
        $region24: #{tpu_custom_call.1} parent=11 // pred_fallthru
          _
        // Predicated region
        $region25: #{tpu_custom_call.1} parent=11 // pred_check
          %p313 = pneg %p205
        $region26: #{tpu_custom_call.1} parent=11 // pred_check_branch
          %315 = sbr.rel (%p313) target = $region28
        $region27: #{tpu_custom_call.1} parent=11 // pred_region
          %s317 = ssub.s32 16, 16
          %318 = vsyncadd [#allocation13], %s317
          %s320 = sshll.u32 [#allocation14], 4
          %s321 = int_to_ptr.vmem [resolvable:$true] %s320
          %323 = dma.hbm_to_vmem [thread:$0]  %s6, 16, %s321, [#allocation13]
        $region28: #{tpu_custom_call.1} parent=11 // pred_fallthru
          _
      $region12: #{tpu_custom_call.1} parent=5 // pred_fallthru
        _
      %p324 = scmp.lt.s32.totalorder %s29, 2
      // Predicated region
      $region29: #{tpu_custom_call.1} parent=5 // pred_check
        %p325 = pneg %p324
      $region30: #{tpu_custom_call.1} parent=5 // pred_check_branch
        %327 = sbr.rel (%p325) target = $region32
      $region31: #{tpu_custom_call.1} parent=5 // pred_region
        // Predicated region
        $region33: #{tpu_custom_call.1} parent=31 // pred_check
          %p328 = pneg %p63
        $region34: #{tpu_custom_call.1} parent=31 // pred_check_branch
          %330 = sbr.rel (%p328) target = $region36
        $region35: #{tpu_custom_call.1} parent=31 // pred_region
          %s331 = sand.u32 %s53, 1
          %s332 = scalar_lea.sflag [#allocation4], %s331
          %s333 = sand.u32 %s53, 1
          %s334 = smul.addr %s333, 8
          %s335 = scalar_lea.vmem [#allocation3], %s334
          %s337 = ssub.s32 128, 128
          %338 = vsyncadd %s332, %s337
          %s339 = sadd.s32 %s37, %s36
          %s340 = smul.addr %s339, 128
          %s341 = scalar_lea.hbm %s0, %s340
          %s343 = sshll.u32 %s335, 4
          %s344 = int_to_ptr.vmem [resolvable:$true] %s343
          %346 = dma.hbm_to_vmem [thread:$0]  %s341, 128, %s344, %s332
        $region36: #{tpu_custom_call.1} parent=31 // pred_fallthru
          _
        // Predicated region
        $region37: #{tpu_custom_call.1} parent=31 // pred_check
          %p347 = pneg %p89
        $region38: #{tpu_custom_call.1} parent=31 // pred_check_branch
          %349 = sbr.rel (%p347) target = $region40
        $region39: #{tpu_custom_call.1} parent=31 // pred_region
          %s350 = sand.u32 %s29, 1
          %s351 = scalar_lea.sflag [#allocation7], %s350
          %s352 = sand.u32 %s79, 1
          %s353 = smul.addr %s352, 8
          %s354 = scalar_lea.vmem [#allocation6], %s353
          %s356 = ssub.s32 128, 128
          %357 = vsyncadd %s351, %s356
          %s358 = smul.addr %s36, 128
          %s359 = scalar_lea.hbm %s1, %s358
          %s361 = sshll.u32 %s354, 4
          %s362 = int_to_ptr.vmem [resolvable:$true] %s361
          %364 = dma.hbm_to_vmem [thread:$0]  %s359, 128, %s362, %s351
        $region40: #{tpu_custom_call.1} parent=31 // pred_fallthru
          _
        // Predicated region
        $region41: #{tpu_custom_call.1} parent=31 // pred_check
          %p365 = pneg %p115
        $region42: #{tpu_custom_call.1} parent=31 // pred_check_branch
          %367 = sbr.rel (%p365) target = $region44
        $region43: #{tpu_custom_call.1} parent=31 // pred_region
          %s368 = sand.u32 %s29, 1
          %s369 = scalar_lea.sflag [#allocation7], %s368
          %s370 = sand.u32 %s105, 1
          %s371 = smul.addr %s370, 8
          %s372 = scalar_lea.vmem [#allocation8], %s371
          %s374 = ssub.s32 128, 128
          %375 = vsyncadd %s369, %s374
          %s376 = smul.addr %s36, 128
          %s377 = scalar_lea.hbm %s2, %s376
          %s379 = sshll.u32 %s372, 4
          %s380 = int_to_ptr.vmem [resolvable:$true] %s379
          %382 = dma.hbm_to_vmem [thread:$0]  %s377, 128, %s380, %s369
        $region44: #{tpu_custom_call.1} parent=31 // pred_fallthru
          _
      $region32: #{tpu_custom_call.1} parent=5 // pred_fallthru
        _
      %p383 = scmp.le.s32.totalorder 1, %s29
      %p384 = scmp.lt.s32.totalorder %s29, 3
      %p385 = pnand %p383, %p384
      %p386 = pneg %p385
      // Predicated region
      $region45: #{tpu_custom_call.1} parent=5 // pred_check
        _
      $region46: #{tpu_custom_call.1} parent=5 // pred_check_branch
        %388 = sbr.rel (%p385) target = $region48
      $region47: #{tpu_custom_call.1} parent=5 // pred_region
        %s389 = ssub.s32 %s29, 1
        %s390 = sand.u32 %s56, 1
        %s391 = scalar_lea.sflag [#allocation4], %s390
        %s392 = sand.u32 %s56, 1
        %s393 = smul.addr %s392, 8
        %s394 = scalar_lea.vmem [#allocation3], %s393
        // Predicated region
        $region49: #{tpu_custom_call.1} parent=47 // pred_check
          %p395 = pneg %p69
        $region50: #{tpu_custom_call.1} parent=47 // pred_check_branch
          %397 = sbr.rel (%p395) target = $region52
        $region51: #{tpu_custom_call.1} parent=47 // pred_region
          %398 = dma.done %s391, 128
        $region52: #{tpu_custom_call.1} parent=47 // pred_fallthru
          _
        %s399 = sand.u32 %s34, 1
        %s400 = scalar_lea.sflag [#allocation7], %s399
        %s401 = sand.u32 %s82, 1
        %s402 = smul.addr %s401, 8
        %s403 = scalar_lea.vmem [#allocation6], %s402
        // Predicated region
        $region53: #{tpu_custom_call.1} parent=47 // pred_check
          %p404 = pneg %p95
        $region54: #{tpu_custom_call.1} parent=47 // pred_check_branch
          %406 = sbr.rel (%p404) target = $region56
        $region55: #{tpu_custom_call.1} parent=47 // pred_region
          %407 = dma.done %s400, 128
        $region56: #{tpu_custom_call.1} parent=47 // pred_fallthru
          _
        %s408 = sand.u32 %s34, 1
        %s409 = scalar_lea.sflag [#allocation7], %s408
        %s410 = sand.u32 %s108, 1
        %s411 = smul.addr %s410, 8
        %s412 = scalar_lea.vmem [#allocation8], %s411
        // Predicated region
        $region57: #{tpu_custom_call.1} parent=47 // pred_check
          %p413 = pneg %p121
        $region58: #{tpu_custom_call.1} parent=47 // pred_check_branch
          %415 = sbr.rel (%p413) target = $region60
        $region59: #{tpu_custom_call.1} parent=47 // pred_region
          %416 = dma.done %s409, 128
        $region60: #{tpu_custom_call.1} parent=47 // pred_fallthru
          _
        // Predicated region
        $region61: #{tpu_custom_call.1} parent=47 // pred_check
          %p417 = pneg %p142
        $region62: #{tpu_custom_call.1} parent=47 // pred_check_branch
          %419 = sbr.rel (%p417) target = $region64
        $region63: #{tpu_custom_call.1} parent=47 // pred_region
          %420 = dma.done [#allocation10], 512
        $region64: #{tpu_custom_call.1} parent=47 // pred_fallthru
          _
        // Predicated region
        $region65: #{tpu_custom_call.1} parent=47 // pred_check
          %p421 = pneg %p163
        $region66: #{tpu_custom_call.1} parent=47 // pred_check_branch
          %423 = sbr.rel (%p421) target = $region68
        $region67: #{tpu_custom_call.1} parent=47 // pred_region
          %424 = dma.done [#allocation10], 512
        $region68: #{tpu_custom_call.1} parent=47 // pred_fallthru
          _
        // Predicated region
        $region69: #{tpu_custom_call.1} parent=47 // pred_check
          %p425 = pneg %p184
        $region70: #{tpu_custom_call.1} parent=47 // pred_check_branch
          %427 = sbr.rel (%p425) target = $region72
        $region71: #{tpu_custom_call.1} parent=47 // pred_region
          %428 = dma.done [#allocation13], 16
        $region72: #{tpu_custom_call.1} parent=47 // pred_fallthru
          _
        // Predicated region
        $region73: #{tpu_custom_call.1} parent=47 // pred_check
          %p429 = pneg %p205
        $region74: #{tpu_custom_call.1} parent=47 // pred_check_branch
          %431 = sbr.rel (%p429) target = $region76
        $region75: #{tpu_custom_call.1} parent=47 // pred_region
          %432 = dma.done [#allocation13], 16
        $region76: #{tpu_custom_call.1} parent=47 // pred_fallthru
          _
        %s433 = sand.u32 %s56, 1
        %s434 = scalar_lea.sflag [#allocation4], %s433
        %s435 = sand.u32 %s56, 1
        %s436 = smul.addr %s435, 8
        %s437 = scalar_lea.vmem [#allocation3], %s436
        %p438 = pneg %p69
        %p439 = pneg %p66
        %s440 = sand.u32 %s34, 1
        %s441 = scalar_lea.sflag [#allocation7], %s440
        %s442 = sand.u32 %s82, 1
        %s443 = smul.addr %s442, 8
        %s444 = scalar_lea.vmem [#allocation6], %s443
        %p445 = pneg %p95
        %p446 = pneg %p92
        %s447 = sand.u32 %s34, 1
        %s448 = scalar_lea.sflag [#allocation7], %s447
        %s449 = sand.u32 %s108, 1
        %s450 = smul.addr %s449, 8
        %s451 = scalar_lea.vmem [#allocation8], %s450
        %p452 = pneg %p121
        %p453 = pneg %p118
        %p454 = pneg %p142
        %p455 = pneg %p139
        %p456 = pneg %p163
        %p457 = pneg %p160
        %p458 = pneg %p184
        %p459 = pneg %p181
        %p460 = pneg %p205
        %p461 = pneg %p202
        %p462 = pneg %p233
        %p463 = pneg %p230
        %s464 = sand.u32 %s220, 1
        %s465 = scalar_lea.sflag [#allocation5], %s464
        %s466 = sand.u32 %s220, 1
        %s467 = smul.addr %s466, 8
        %s468 = scalar_lea.vmem [#allocation15], %s467
        %p469 = pneg %p261
        %p470 = pneg %p258
        %s471 = sand.u32 %s248, 1
        %s472 = scalar_lea.sflag [#allocation17], %s471
        %s473 = sand.u32 %s248, 1
        %s474 = smul.addr %s473, 32
        %s475 = scalar_lea.vmem [#allocation16], %s474
        %v476 = vld [vmem:[%s394] sm:$0xff]
        %v477 = vld [vmem:[#allocation9] sm:$0xff]
        %v478 = vld [vmem:[#allocation9 + $0x8] sm:$0xff]
        %v479 = vld [vmem:[#allocation9 + $0x10] sm:$0xff]
        %v480 = vld [vmem:[#allocation9 + $0x18] sm:$0xff]
        %v481 = vld [vmem:[%s403] sm:$0xff]
        %v482 = vld [vmem:[%s412] sm:$0xff]
        %vm483 = vcmask 261120
        %v485 = vsel %vm483, %v476, 0
        %487 = vmatprep.subr.mxu0 0.0
        %488 = vmatpush1.msra.mxu0 %v477
        %489 = vmatprep.subr.mxu0 0.0
        %490 = vmatpush1.msra.mxu0 %v478
        %491 = vmatprep.subr.mxu0 0.0
        %492 = vmatpush1.msra.mxu0 %v479
        %493 = vmatprep.subr.mxu0 0.0
        %494 = vmatpush1.msra.mxu0 %v480
        %495 = vmatprep.subr.mxu0 0.0
        %496 = vmatpush1.msra.mxu0 0.0
        %497 = vmatprep.subr.mxu0 0.0
        %498 = vmatpush1.msra.mxu0 0.0
        %499 = vmatprep.subr.mxu0 0.0
        %500 = vmatpush1.msra.mxu0 0.0
        %501 = vmatprep.subr.mxu0 0.0
        %502 = vmatpush1.msra.mxu0 0.0
        %503 = vmatprep.subr.mxu0 0.0
        %504 = vmatpush1.msra.mxu0 0.0
        %505 = vmatprep.subr.mxu0 0.0
        %506 = vmatpush1.msra.mxu0 0.0
        %507 = vmatprep.subr.mxu0 0.0
        %508 = vmatpush1.msra.mxu0 0.0
        %509 = vmatprep.subr.mxu0 0.0
        %510 = vmatpush1.msra.mxu0 0.0
        %511 = vmatprep.subr.mxu0 0.0
        %512 = vmatpush1.msra.mxu0 0.0
        %513 = vmatprep.subr.mxu0 0.0
        %514 = vmatpush1.msra.mxu0 0.0
        %515 = vmatprep.subr.mxu0 0.0
        %516 = vmatpush1.msra.mxu0 0.0
        %517 = vmatprep.subr.mxu0 0.0
        %518 = vmatpush1.msra.mxu0 0.0
        %519 = vmatprep.subr.mxu0 0.0
        %520 = vmatpush1.msra.mxu0 0.0
        %521 = vmatprep.subr.mxu0 0.0
        %522 = vmatpush1.msra.mxu0 0.0
        %523 = vmatprep.subr.mxu0 0.0
        %524 = vmatpush1.msra.mxu0 0.0
        %525 = vmatprep.subr.mxu0 0.0
        %526 = vmatpush1.msra.mxu0 0.0
        %527 = vmatprep.subr.mxu0 0.0
        %528 = vmatpush1.msra.mxu0 0.0
        %529 = vmatprep.subr.mxu0 0.0
        %530 = vmatpush1.msra.mxu0 0.0
        %531 = vmatprep.subr.mxu0 0.0
        %532 = vmatpush1.msra.mxu0 0.0
        %533 = vmatprep.subr.mxu0 0.0
        %534 = vmatpush1.msra.mxu0 0.0
        %535 = vmatprep.subr.mxu0 0.0
        %536 = vmatpush1.msra.mxu0 0.0
        %537 = vmatprep.subr.mxu0 0.0
        %538 = vmatpush1.msra.mxu0 0.0
        %539 = vmatprep.subr.mxu0 0.0
        %540 = vmatpush1.msra.mxu0 0.0
        %541 = vmatprep.subr.mxu0 0.0
        %542 = vmatpush1.msra.mxu0 0.0
        %543 = vmatprep.subr.mxu0 0.0
        %544 = vmatpush1.msra.mxu0 0.0
        %545 = vmatprep.subr.mxu0 0.0
        %546 = vmatpush1.msra.mxu0 0.0
        %547 = vmatprep.subr.mxu0 0.0
        %548 = vmatpush1.msra.mxu0 0.0
        %549 = vmatprep.subr.mxu0 0.0
        %550 = vmatpush1.msra.mxu0 0.0
        %551 = vmatprep.mubr.f32.mxu0 0.0
        %552 = vmatmul.mubr.f32.gmra.mrb[0].mxu0 %v485
        %v553 = vpop.f32.mrb[0].mxu0
        %v554 = vadd.f32 0.0, %v553
        %v555 = vpop.f32.mrb[0].mxu0
        %556 = vdwg.mxu0
        %561 = vrot.lane.b32.xlu0 %v477, 96
        %v562 = vpop.permute.xlu0 %561
        %563 = vrot.lane.b32.xlu0 %v478, 96
        %v564 = vpop.permute.xlu0 %563
        %565 = vrot.lane.b32.xlu0 %v479, 96
        %v566 = vpop.permute.xlu0 %565
        %567 = vrot.lane.b32.xlu0 %v480, 96
        %v568 = vpop.permute.xlu0 %567
        %v574 = vsel %vm483, %v481, 0
        %576 = vmatprep.subr.mxu0 0.0
        %577 = vmatpush1.msra.mxu0 %v562
        %578 = vmatprep.subr.mxu0 0.0
        %579 = vmatpush1.msra.mxu0 %v564
        %580 = vmatprep.subr.mxu0 0.0
        %581 = vmatpush1.msra.mxu0 %v566
        %582 = vmatprep.subr.mxu0 0.0
        %583 = vmatpush1.msra.mxu0 %v568
        %584 = vmatprep.subr.mxu0 0.0
        %585 = vmatpush1.msra.mxu0 0.0
        %586 = vmatprep.subr.mxu0 0.0
        %587 = vmatpush1.msra.mxu0 0.0
        %588 = vmatprep.subr.mxu0 0.0
        %589 = vmatpush1.msra.mxu0 0.0
        %590 = vmatprep.subr.mxu0 0.0
        %591 = vmatpush1.msra.mxu0 0.0
        %592 = vmatprep.subr.mxu0 0.0
        %593 = vmatpush1.msra.mxu0 0.0
        %594 = vmatprep.subr.mxu0 0.0
        %595 = vmatpush1.msra.mxu0 0.0
        %596 = vmatprep.subr.mxu0 0.0
        %597 = vmatpush1.msra.mxu0 0.0
        %598 = vmatprep.subr.mxu0 0.0
        %599 = vmatpush1.msra.mxu0 0.0
        %600 = vmatprep.subr.mxu0 0.0
        %601 = vmatpush1.msra.mxu0 0.0
        %602 = vmatprep.subr.mxu0 0.0
        %603 = vmatpush1.msra.mxu0 0.0
        %604 = vmatprep.subr.mxu0 0.0
        %605 = vmatpush1.msra.mxu0 0.0
        %606 = vmatprep.subr.mxu0 0.0
        %607 = vmatpush1.msra.mxu0 0.0
        %608 = vmatprep.subr.mxu0 0.0
        %609 = vmatpush1.msra.mxu0 0.0
        %610 = vmatprep.subr.mxu0 0.0
        %611 = vmatpush1.msra.mxu0 0.0
        %612 = vmatprep.subr.mxu0 0.0
        %613 = vmatpush1.msra.mxu0 0.0
        %614 = vmatprep.subr.mxu0 0.0
        %615 = vmatpush1.msra.mxu0 0.0
        %616 = vmatprep.subr.mxu0 0.0
        %617 = vmatpush1.msra.mxu0 0.0
        %618 = vmatprep.subr.mxu0 0.0
        %619 = vmatpush1.msra.mxu0 0.0
        %620 = vmatprep.subr.mxu0 0.0
        %621 = vmatpush1.msra.mxu0 0.0
        %622 = vmatprep.subr.mxu0 0.0
        %623 = vmatpush1.msra.mxu0 0.0
        %624 = vmatprep.subr.mxu0 0.0
        %625 = vmatpush1.msra.mxu0 0.0
        %626 = vmatprep.subr.mxu0 0.0
        %627 = vmatpush1.msra.mxu0 0.0
        %628 = vmatprep.subr.mxu0 0.0
        %629 = vmatpush1.msra.mxu0 0.0
        %630 = vmatprep.subr.mxu0 0.0
        %631 = vmatpush1.msra.mxu0 0.0
        %632 = vmatprep.subr.mxu0 0.0
        %633 = vmatpush1.msra.mxu0 0.0
        %634 = vmatprep.subr.mxu0 0.0
        %635 = vmatpush1.msra.mxu0 0.0
        %636 = vmatprep.subr.mxu0 0.0
        %637 = vmatpush1.msra.mxu0 0.0
        %638 = vmatprep.subr.mxu0 0.0
        %639 = vmatpush1.msra.mxu0 0.0
        %640 = vmatprep.mubr.f32.mxu0 0.0
        %641 = vmatmul.mubr.f32.gmra.mrb[0].mxu0 %v574
        %v642 = vpop.f32.mrb[0].mxu0
        %v643 = vadd.f32 0.0, %v642
        %v644 = vpop.f32.mrb[0].mxu0
        %645 = vdwg.mxu0
        %646 = vrot.lane.b32.xlu0 %v477, 64
        %v647 = vpop.permute.xlu0 %646
        %648 = vrot.lane.b32.xlu0 %v478, 64
        %v649 = vpop.permute.xlu0 %648
        %650 = vrot.lane.b32.xlu0 %v479, 64
        %v651 = vpop.permute.xlu0 %650
        %652 = vrot.lane.b32.xlu0 %v480, 64
        %v653 = vpop.permute.xlu0 %652
        %v659 = vsel %vm483, %v482, 0
        %661 = vmatprep.subr.mxu0 0.0
        %662 = vmatpush1.msra.mxu0 %v647
        %663 = vmatprep.subr.mxu0 0.0
        %664 = vmatpush1.msra.mxu0 %v649
        %665 = vmatprep.subr.mxu0 0.0
        %666 = vmatpush1.msra.mxu0 %v651
        %667 = vmatprep.subr.mxu0 0.0
        %668 = vmatpush1.msra.mxu0 %v653
        %669 = vmatprep.subr.mxu0 0.0
        %670 = vmatpush1.msra.mxu0 0.0
        %671 = vmatprep.subr.mxu0 0.0
        %672 = vmatpush1.msra.mxu0 0.0
        %673 = vmatprep.subr.mxu0 0.0
        %674 = vmatpush1.msra.mxu0 0.0
        %675 = vmatprep.subr.mxu0 0.0
        %676 = vmatpush1.msra.mxu0 0.0
        %677 = vmatprep.subr.mxu0 0.0
        %678 = vmatpush1.msra.mxu0 0.0
        %679 = vmatprep.subr.mxu0 0.0
        %680 = vmatpush1.msra.mxu0 0.0
        %681 = vmatprep.subr.mxu0 0.0
        %682 = vmatpush1.msra.mxu0 0.0
        %683 = vmatprep.subr.mxu0 0.0
        %684 = vmatpush1.msra.mxu0 0.0
        %685 = vmatprep.subr.mxu0 0.0
        %686 = vmatpush1.msra.mxu0 0.0
        %687 = vmatprep.subr.mxu0 0.0
        %688 = vmatpush1.msra.mxu0 0.0
        %689 = vmatprep.subr.mxu0 0.0
        %690 = vmatpush1.msra.mxu0 0.0
        %691 = vmatprep.subr.mxu0 0.0
        %692 = vmatpush1.msra.mxu0 0.0
        %693 = vmatprep.subr.mxu0 0.0
        %694 = vmatpush1.msra.mxu0 0.0
        %695 = vmatprep.subr.mxu0 0.0
        %696 = vmatpush1.msra.mxu0 0.0
        %697 = vmatprep.subr.mxu0 0.0
        %698 = vmatpush1.msra.mxu0 0.0
        %699 = vmatprep.subr.mxu0 0.0
        %700 = vmatpush1.msra.mxu0 0.0
        %701 = vmatprep.subr.mxu0 0.0
        %702 = vmatpush1.msra.mxu0 0.0
        %703 = vmatprep.subr.mxu0 0.0
        %704 = vmatpush1.msra.mxu0 0.0
        %705 = vmatprep.subr.mxu0 0.0
        %706 = vmatpush1.msra.mxu0 0.0
        %707 = vmatprep.subr.mxu0 0.0
        %708 = vmatpush1.msra.mxu0 0.0
        %709 = vmatprep.subr.mxu0 0.0
        %710 = vmatpush1.msra.mxu0 0.0
        %711 = vmatprep.subr.mxu0 0.0
        %712 = vmatpush1.msra.mxu0 0.0
        %713 = vmatprep.subr.mxu0 0.0
        %714 = vmatpush1.msra.mxu0 0.0
        %715 = vmatprep.subr.mxu0 0.0
        %716 = vmatpush1.msra.mxu0 0.0
        %717 = vmatprep.subr.mxu0 0.0
        %718 = vmatpush1.msra.mxu0 0.0
        %719 = vmatprep.subr.mxu0 0.0
        %720 = vmatpush1.msra.mxu0 0.0
        %721 = vmatprep.subr.mxu0 0.0
        %722 = vmatpush1.msra.mxu0 0.0
        %723 = vmatprep.subr.mxu0 0.0
        %724 = vmatpush1.msra.mxu0 0.0
        %725 = vmatprep.mubr.f32.mxu0 0.0
        %726 = vmatmul.mubr.f32.gmra.mrb[0].mxu0 %v659
        %v727 = vpop.f32.mrb[0].mxu0
        %v728 = vadd.f32 0.0, %v727
        %v729 = vpop.f32.mrb[0].mxu0
        %730 = vdwg.mxu0
        %vm731 = vcmask 64512
        %v733 = vsel %vm731, %v554, 0
        %v736 = vsel %vm731, %v643, 0
        %738 = vmatprep.subr.mxu0 0.0
        %739 = vmatpush1.xpose.msra.mxu0 %v736
        %740 = vmatprep.subr.mxu0 0.0
        %741 = vmatpush1.xpose.msra.mxu0 0.0
        %742 = vmatprep.subr.mxu0 0.0
        %743 = vmatpush1.xpose.msra.mxu0 0.0
        %744 = vmatprep.subr.mxu0 0.0
        %745 = vmatpush1.xpose.msra.mxu0 0.0
        %746 = vmatprep.subr.mxu0 0.0
        %747 = vmatpush1.xpose.msra.mxu0 0.0
        %748 = vmatprep.subr.mxu0 0.0
        %749 = vmatpush1.xpose.msra.mxu0 0.0
        %750 = vmatprep.subr.mxu0 0.0
        %751 = vmatpush1.xpose.msra.mxu0 0.0
        %752 = vmatprep.subr.mxu0 0.0
        %753 = vmatpush1.xpose.msra.mxu0 0.0
        %754 = vmatprep.subr.mxu0 0.0
        %755 = vmatpush1.xpose.msra.mxu0 0.0
        %756 = vmatprep.subr.mxu0 0.0
        %757 = vmatpush1.xpose.msra.mxu0 0.0
        %758 = vmatprep.subr.mxu0 0.0
        %759 = vmatpush1.xpose.msra.mxu0 0.0
        %760 = vmatprep.subr.mxu0 0.0
        %761 = vmatpush1.xpose.msra.mxu0 0.0
        %762 = vmatprep.subr.mxu0 0.0
        %763 = vmatpush1.xpose.msra.mxu0 0.0
        %764 = vmatprep.subr.mxu0 0.0
        %765 = vmatpush1.xpose.msra.mxu0 0.0
        %766 = vmatprep.subr.mxu0 0.0
        %767 = vmatpush1.xpose.msra.mxu0 0.0
        %768 = vmatprep.subr.mxu0 0.0
        %769 = vmatpush1.xpose.msra.mxu0 0.0
        %770 = vmatprep.subr.mxu0 0.0
        %771 = vmatpush1.xpose.msra.mxu0 0.0
        %772 = vmatprep.subr.mxu0 0.0
        %773 = vmatpush1.xpose.msra.mxu0 0.0
        %774 = vmatprep.subr.mxu0 0.0
        %775 = vmatpush1.xpose.msra.mxu0 0.0
        %776 = vmatprep.subr.mxu0 0.0
        %777 = vmatpush1.xpose.msra.mxu0 0.0
        %778 = vmatprep.subr.mxu0 0.0
        %779 = vmatpush1.xpose.msra.mxu0 0.0
        %780 = vmatprep.subr.mxu0 0.0
        %781 = vmatpush1.xpose.msra.mxu0 0.0
        %782 = vmatprep.subr.mxu0 0.0
        %783 = vmatpush1.xpose.msra.mxu0 0.0
        %784 = vmatprep.subr.mxu0 0.0
        %785 = vmatpush1.xpose.msra.mxu0 0.0
        %786 = vmatprep.subr.mxu0 0.0
        %787 = vmatpush1.xpose.msra.mxu0 0.0
        %788 = vmatprep.subr.mxu0 0.0
        %789 = vmatpush1.xpose.msra.mxu0 0.0
        %790 = vmatprep.subr.mxu0 0.0
        %791 = vmatpush1.xpose.msra.mxu0 0.0
        %792 = vmatprep.subr.mxu0 0.0
        %793 = vmatpush1.xpose.msra.mxu0 0.0
        %794 = vmatprep.subr.mxu0 0.0
        %795 = vmatpush1.xpose.msra.mxu0 0.0
        %796 = vmatprep.subr.mxu0 0.0
        %797 = vmatpush1.xpose.msra.mxu0 0.0
        %798 = vmatprep.subr.mxu0 0.0
        %799 = vmatpush1.xpose.msra.mxu0 0.0
        %800 = vmatprep.subr.mxu0 0.0
        %801 = vmatpush1.xpose.msra.mxu0 0.0
        %802 = vmatprep.mubr.f32.mxu0 0.0
        %803 = vmatmul.mubr.f32.gmra.mrb[0].mxu0 %v733
        %v804 = vpop.f32.mrb[0].mxu0
        %v805 = vadd.f32 0.0, %v804
        %v806 = vpop.f32.mrb[0].mxu0
        %807 = vdwg.mxu0
        %v808 = vsel %vm731, %v805, -inf
        %809 = vmax.xlane.f32.xlu0 %v808
        %v810 = vpop.xlane.xlu0 %809
        %v811 = vsub.f32 %v805, %v810
        %v812 = vmul.f32 %v811, 1.442695
        %v813 = vpow.pop %v812
        %v814 = vsel %vm731, %v813, 0.0
        %815 = vadd.xlane.f32.xlu0 %v814
        %v816 = vpop.xlane.xlu0 %815
        %v817 = vrcp.pop %v816
        %v818 = vmul.f32 %v813, %v817
        %819 = vst.msk [vmem:[%s475] sm:$0xff] %vm731, %v818
        %v821 = vsel %vm731, %v818, 0
        %823 = vmatprep.subr.mxu0 0.0
        %824 = vmatpush1.msra.mxu0 %v728
        %825 = vmatprep.subr.mxu0 0.0
        %826 = vmatpush1.msra.mxu0 0.0
        %827 = vmatprep.subr.mxu0 0.0
        %828 = vmatpush1.msra.mxu0 0.0
        %829 = vmatprep.subr.mxu0 0.0
        %830 = vmatpush1.msra.mxu0 0.0
        %831 = vmatprep.subr.mxu0 0.0
        %832 = vmatpush1.msra.mxu0 0.0
        %833 = vmatprep.subr.mxu0 0.0
        %834 = vmatpush1.msra.mxu0 0.0
        %835 = vmatprep.subr.mxu0 0.0
        %836 = vmatpush1.msra.mxu0 0.0
        %837 = vmatprep.subr.mxu0 0.0
        %838 = vmatpush1.msra.mxu0 0.0
        %839 = vmatprep.subr.mxu0 0.0
        %840 = vmatpush1.msra.mxu0 0.0
        %841 = vmatprep.subr.mxu0 0.0
        %842 = vmatpush1.msra.mxu0 0.0
        %843 = vmatprep.subr.mxu0 0.0
        %844 = vmatpush1.msra.mxu0 0.0
        %845 = vmatprep.subr.mxu0 0.0
        %846 = vmatpush1.msra.mxu0 0.0
        %847 = vmatprep.subr.mxu0 0.0
        %848 = vmatpush1.msra.mxu0 0.0
        %849 = vmatprep.subr.mxu0 0.0
        %850 = vmatpush1.msra.mxu0 0.0
        %851 = vmatprep.subr.mxu0 0.0
        %852 = vmatpush1.msra.mxu0 0.0
        %853 = vmatprep.subr.mxu0 0.0
        %854 = vmatpush1.msra.mxu0 0.0
        %855 = vmatprep.subr.mxu0 0.0
        %856 = vmatpush1.msra.mxu0 0.0
        %857 = vmatprep.subr.mxu0 0.0
        %858 = vmatpush1.msra.mxu0 0.0
        %859 = vmatprep.subr.mxu0 0.0
        %860 = vmatpush1.msra.mxu0 0.0
        %861 = vmatprep.subr.mxu0 0.0
        %862 = vmatpush1.msra.mxu0 0.0
        %863 = vmatprep.subr.mxu0 0.0
        %864 = vmatpush1.msra.mxu0 0.0
        %865 = vmatprep.subr.mxu0 0.0
        %866 = vmatpush1.msra.mxu0 0.0
        %867 = vmatprep.subr.mxu0 0.0
        %868 = vmatpush1.msra.mxu0 0.0
        %869 = vmatprep.subr.mxu0 0.0
        %870 = vmatpush1.msra.mxu0 0.0
        %871 = vmatprep.subr.mxu0 0.0
        %872 = vmatpush1.msra.mxu0 0.0
        %873 = vmatprep.subr.mxu0 0.0
        %874 = vmatpush1.msra.mxu0 0.0
        %875 = vmatprep.subr.mxu0 0.0
        %876 = vmatpush1.msra.mxu0 0.0
        %877 = vmatprep.subr.mxu0 0.0
        %878 = vmatpush1.msra.mxu0 0.0
        %879 = vmatprep.subr.mxu0 0.0
        %880 = vmatpush1.msra.mxu0 0.0
        %881 = vmatprep.subr.mxu0 0.0
        %882 = vmatpush1.msra.mxu0 0.0
        %883 = vmatprep.subr.mxu0 0.0
        %884 = vmatpush1.msra.mxu0 0.0
        %885 = vmatprep.subr.mxu0 0.0
        %886 = vmatpush1.msra.mxu0 0.0
        %887 = vmatprep.mubr.f32.mxu0 0.0
        %888 = vmatmul.mubr.f32.gmra.mrb[0].mxu0 %v821
        %v889 = vpop.f32.mrb[0].mxu0
        %v890 = vadd.f32 0.0, %v889
        %v891 = vpop.f32.mrb[0].mxu0
        %892 = vdwg.mxu0
        %893 = vst.msk [vmem:[#allocation2] sm:$0xff] %vm731, %v890
        %894 = vrot.lane.b32.xlu0 %v554, 120
        %v895 = vpop.permute.xlu0 %894
        %896 = vrot.lane.b32.xlu0 %v643, 120
        %v897 = vpop.permute.xlu0 %896
        %v898 = vsel %vm731, %v895, 0
        %v900 = vsel %vm731, %v897, 0
        %902 = vmatprep.subr.mxu0 0.0
        %903 = vmatpush1.xpose.msra.mxu0 %v900
        %904 = vmatprep.subr.mxu0 0.0
        %905 = vmatpush1.xpose.msra.mxu0 0.0
        %906 = vmatprep.subr.mxu0 0.0
        %907 = vmatpush1.xpose.msra.mxu0 0.0
        %908 = vmatprep.subr.mxu0 0.0
        %909 = vmatpush1.xpose.msra.mxu0 0.0
        %910 = vmatprep.subr.mxu0 0.0
        %911 = vmatpush1.xpose.msra.mxu0 0.0
        %912 = vmatprep.subr.mxu0 0.0
        %913 = vmatpush1.xpose.msra.mxu0 0.0
        %914 = vmatprep.subr.mxu0 0.0
        %915 = vmatpush1.xpose.msra.mxu0 0.0
        %916 = vmatprep.subr.mxu0 0.0
        %917 = vmatpush1.xpose.msra.mxu0 0.0
        %918 = vmatprep.subr.mxu0 0.0
        %919 = vmatpush1.xpose.msra.mxu0 0.0
        %920 = vmatprep.subr.mxu0 0.0
        %921 = vmatpush1.xpose.msra.mxu0 0.0
        %922 = vmatprep.subr.mxu0 0.0
        %923 = vmatpush1.xpose.msra.mxu0 0.0
        %924 = vmatprep.subr.mxu0 0.0
        %925 = vmatpush1.xpose.msra.mxu0 0.0
        %926 = vmatprep.subr.mxu0 0.0
        %927 = vmatpush1.xpose.msra.mxu0 0.0
        %928 = vmatprep.subr.mxu0 0.0
        %929 = vmatpush1.xpose.msra.mxu0 0.0
        %930 = vmatprep.subr.mxu0 0.0
        %931 = vmatpush1.xpose.msra.mxu0 0.0
        %932 = vmatprep.subr.mxu0 0.0
        %933 = vmatpush1.xpose.msra.mxu0 0.0
        %934 = vmatprep.subr.mxu0 0.0
        %935 = vmatpush1.xpose.msra.mxu0 0.0
        %936 = vmatprep.subr.mxu0 0.0
        %937 = vmatpush1.xpose.msra.mxu0 0.0
        %938 = vmatprep.subr.mxu0 0.0
        %939 = vmatpush1.xpose.msra.mxu0 0.0
        %940 = vmatprep.subr.mxu0 0.0
        %941 = vmatpush1.xpose.msra.mxu0 0.0
        %942 = vmatprep.subr.mxu0 0.0
        %943 = vmatpush1.xpose.msra.mxu0 0.0
        %944 = vmatprep.subr.mxu0 0.0
        %945 = vmatpush1.xpose.msra.mxu0 0.0
        %946 = vmatprep.subr.mxu0 0.0
        %947 = vmatpush1.xpose.msra.mxu0 0.0
        %948 = vmatprep.subr.mxu0 0.0
        %949 = vmatpush1.xpose.msra.mxu0 0.0
        %950 = vmatprep.subr.mxu0 0.0
        %951 = vmatpush1.xpose.msra.mxu0 0.0
        %952 = vmatprep.subr.mxu0 0.0
        %953 = vmatpush1.xpose.msra.mxu0 0.0
        %954 = vmatprep.subr.mxu0 0.0
        %955 = vmatpush1.xpose.msra.mxu0 0.0
        %956 = vmatprep.subr.mxu0 0.0
        %957 = vmatpush1.xpose.msra.mxu0 0.0
        %958 = vmatprep.subr.mxu0 0.0
        %959 = vmatpush1.xpose.msra.mxu0 0.0
        %960 = vmatprep.subr.mxu0 0.0
        %961 = vmatpush1.xpose.msra.mxu0 0.0
        %962 = vmatprep.subr.mxu0 0.0
        %963 = vmatpush1.xpose.msra.mxu0 0.0
        %964 = vmatprep.subr.mxu0 0.0
        %965 = vmatpush1.xpose.msra.mxu0 0.0
        %966 = vmatprep.mubr.f32.mxu0 0.0
        %967 = vmatmul.mubr.f32.gmra.mrb[0].mxu0 %v898
        %v968 = vpop.f32.mrb[0].mxu0
        %v969 = vadd.f32 0.0, %v968
        %v970 = vpop.f32.mrb[0].mxu0
        %971 = vdwg.mxu0
        %v972 = vsel %vm731, %v969, -inf
        %973 = vmax.xlane.f32.xlu0 %v972
        %v974 = vpop.xlane.xlu0 %973
        %v975 = vsub.f32 %v969, %v974
        %v976 = vmul.f32 %v975, 1.442695
        %v977 = vpow.pop %v976
        %v978 = vsel %vm731, %v977, 0.0
        %979 = vadd.xlane.f32.xlu0 %v978
        %v980 = vpop.xlane.xlu0 %979
        %v981 = vrcp.pop %v980
        %v982 = vmul.f32 %v977, %v981
        %s983 = scalar_lea.vmem %s475, 8 [#allocation16]
        %984 = vst.msk [vmem:[%s983] sm:$0xff] %vm731, %v982
        %986 = vrot.lane.b32.xlu0 %v728, 120
        %v987 = vpop.permute.xlu0 %986
        %v990 = vsel %vm731, %v982, 0
        %992 = vmatprep.subr.mxu0 0.0
        %993 = vmatpush1.msra.mxu0 %v987
        %994 = vmatprep.subr.mxu0 0.0
        %995 = vmatpush1.msra.mxu0 0.0
        %996 = vmatprep.subr.mxu0 0.0
        %997 = vmatpush1.msra.mxu0 0.0
        %998 = vmatprep.subr.mxu0 0.0
        %999 = vmatpush1.msra.mxu0 0.0
        %1000 = vmatprep.subr.mxu0 0.0
        %1001 = vmatpush1.msra.mxu0 0.0
        %1002 = vmatprep.subr.mxu0 0.0
        %1003 = vmatpush1.msra.mxu0 0.0
        %1004 = vmatprep.subr.mxu0 0.0
        %1005 = vmatpush1.msra.mxu0 0.0
        %1006 = vmatprep.subr.mxu0 0.0
        %1007 = vmatpush1.msra.mxu0 0.0
        %1008 = vmatprep.subr.mxu0 0.0
        %1009 = vmatpush1.msra.mxu0 0.0
        %1010 = vmatprep.subr.mxu0 0.0
        %1011 = vmatpush1.msra.mxu0 0.0
        %1012 = vmatprep.subr.mxu0 0.0
        %1013 = vmatpush1.msra.mxu0 0.0
        %1014 = vmatprep.subr.mxu0 0.0
        %1015 = vmatpush1.msra.mxu0 0.0
        %1016 = vmatprep.subr.mxu0 0.0
        %1017 = vmatpush1.msra.mxu0 0.0
        %1018 = vmatprep.subr.mxu0 0.0
        %1019 = vmatpush1.msra.mxu0 0.0
        %1020 = vmatprep.subr.mxu0 0.0
        %1021 = vmatpush1.msra.mxu0 0.0
        %1022 = vmatprep.subr.mxu0 0.0
        %1023 = vmatpush1.msra.mxu0 0.0
        %1024 = vmatprep.subr.mxu0 0.0
        %1025 = vmatpush1.msra.mxu0 0.0
        %1026 = vmatprep.subr.mxu0 0.0
        %1027 = vmatpush1.msra.mxu0 0.0
        %1028 = vmatprep.subr.mxu0 0.0
        %1029 = vmatpush1.msra.mxu0 0.0
        %1030 = vmatprep.subr.mxu0 0.0
        %1031 = vmatpush1.msra.mxu0 0.0
        %1032 = vmatprep.subr.mxu0 0.0
        %1033 = vmatpush1.msra.mxu0 0.0
        %1034 = vmatprep.subr.mxu0 0.0
        %1035 = vmatpush1.msra.mxu0 0.0
        %1036 = vmatprep.subr.mxu0 0.0
        %1037 = vmatpush1.msra.mxu0 0.0
        %1038 = vmatprep.subr.mxu0 0.0
        %1039 = vmatpush1.msra.mxu0 0.0
        %1040 = vmatprep.subr.mxu0 0.0
        %1041 = vmatpush1.msra.mxu0 0.0
        %1042 = vmatprep.subr.mxu0 0.0
        %1043 = vmatpush1.msra.mxu0 0.0
        %1044 = vmatprep.subr.mxu0 0.0
        %1045 = vmatpush1.msra.mxu0 0.0
        %1046 = vmatprep.subr.mxu0 0.0
        %1047 = vmatpush1.msra.mxu0 0.0
        %1048 = vmatprep.subr.mxu0 0.0
        %1049 = vmatpush1.msra.mxu0 0.0
        %1050 = vmatprep.subr.mxu0 0.0
        %1051 = vmatpush1.msra.mxu0 0.0
        %1052 = vmatprep.subr.mxu0 0.0
        %1053 = vmatpush1.msra.mxu0 0.0
        %1054 = vmatprep.subr.mxu0 0.0
        %1055 = vmatpush1.msra.mxu0 0.0
        %1056 = vmatprep.mubr.f32.mxu0 0.0
        %1057 = vmatmul.mubr.f32.gmra.mrb[0].mxu0 %v990
        %v1058 = vpop.f32.mrb[0].mxu0
        %v1059 = vadd.f32 0.0, %v1058
        %v1060 = vpop.f32.mrb[0].mxu0
        %1061 = vdwg.mxu0
        %1063 = vrot.lane.b32.xlu0 %v1059, 8
        %v1064 = vpop.permute.xlu0 %1063
        %vm1066 = vcmask 130112
        %1067 = vst.msk [vmem:[#allocation2] sm:$0xff] %vm1066, %v1064
        %1068 = vrot.lane.b32.xlu0 %v554, 112
        %v1069 = vpop.permute.xlu0 %1068
        %1070 = vrot.lane.b32.xlu0 %v643, 112
        %v1071 = vpop.permute.xlu0 %1070
        %v1072 = vsel %vm731, %v1069, 0
        %v1074 = vsel %vm731, %v1071, 0
        %1076 = vmatprep.subr.mxu0 0.0
        %1077 = vmatpush1.xpose.msra.mxu0 %v1074
        %1078 = vmatprep.subr.mxu0 0.0
        %1079 = vmatpush1.xpose.msra.mxu0 0.0
        %1080 = vmatprep.subr.mxu0 0.0
        %1081 = vmatpush1.xpose.msra.mxu0 0.0
        %1082 = vmatprep.subr.mxu0 0.0
        %1083 = vmatpush1.xpose.msra.mxu0 0.0
        %1084 = vmatprep.subr.mxu0 0.0
        %1085 = vmatpush1.xpose.msra.mxu0 0.0
        %1086 = vmatprep.subr.mxu0 0.0
        %1087 = vmatpush1.xpose.msra.mxu0 0.0
        %1088 = vmatprep.subr.mxu0 0.0
        %1089 = vmatpush1.xpose.msra.mxu0 0.0
        %1090 = vmatprep.subr.mxu0 0.0
        %1091 = vmatpush1.xpose.msra.mxu0 0.0
        %1092 = vmatprep.subr.mxu0 0.0
        %1093 = vmatpush1.xpose.msra.mxu0 0.0
        %1094 = vmatprep.subr.mxu0 0.0
        %1095 = vmatpush1.xpose.msra.mxu0 0.0
        %1096 = vmatprep.subr.mxu0 0.0
        %1097 = vmatpush1.xpose.msra.mxu0 0.0
        %1098 = vmatprep.subr.mxu0 0.0
        %1099 = vmatpush1.xpose.msra.mxu0 0.0
        %1100 = vmatprep.subr.mxu0 0.0
        %1101 = vmatpush1.xpose.msra.mxu0 0.0
        %1102 = vmatprep.subr.mxu0 0.0
        %1103 = vmatpush1.xpose.msra.mxu0 0.0
        %1104 = vmatprep.subr.mxu0 0.0
        %1105 = vmatpush1.xpose.msra.mxu0 0.0
        %1106 = vmatprep.subr.mxu0 0.0
        %1107 = vmatpush1.xpose.msra.mxu0 0.0
        %1108 = vmatprep.subr.mxu0 0.0
        %1109 = vmatpush1.xpose.msra.mxu0 0.0
        %1110 = vmatprep.subr.mxu0 0.0
        %1111 = vmatpush1.xpose.msra.mxu0 0.0
        %1112 = vmatprep.subr.mxu0 0.0
        %1113 = vmatpush1.xpose.msra.mxu0 0.0
        %1114 = vmatprep.subr.mxu0 0.0
        %1115 = vmatpush1.xpose.msra.mxu0 0.0
        %1116 = vmatprep.subr.mxu0 0.0
        %1117 = vmatpush1.xpose.msra.mxu0 0.0
        %1118 = vmatprep.subr.mxu0 0.0
        %1119 = vmatpush1.xpose.msra.mxu0 0.0
        %1120 = vmatprep.subr.mxu0 0.0
        %1121 = vmatpush1.xpose.msra.mxu0 0.0
        %1122 = vmatprep.subr.mxu0 0.0
        %1123 = vmatpush1.xpose.msra.mxu0 0.0
        %1124 = vmatprep.subr.mxu0 0.0
        %1125 = vmatpush1.xpose.msra.mxu0 0.0
        %1126 = vmatprep.subr.mxu0 0.0
        %1127 = vmatpush1.xpose.msra.mxu0 0.0
        %1128 = vmatprep.subr.mxu0 0.0
        %1129 = vmatpush1.xpose.msra.mxu0 0.0
        %1130 = vmatprep.subr.mxu0 0.0
        %1131 = vmatpush1.xpose.msra.mxu0 0.0
        %1132 = vmatprep.subr.mxu0 0.0
        %1133 = vmatpush1.xpose.msra.mxu0 0.0
        %1134 = vmatprep.subr.mxu0 0.0
        %1135 = vmatpush1.xpose.msra.mxu0 0.0
        %1136 = vmatprep.subr.mxu0 0.0
        %1137 = vmatpush1.xpose.msra.mxu0 0.0
        %1138 = vmatprep.subr.mxu0 0.0
        %1139 = vmatpush1.xpose.msra.mxu0 0.0
        %1140 = vmatprep.mubr.f32.mxu0 0.0
        %1141 = vmatmul.mubr.f32.gmra.mrb[0].mxu0 %v1072
        %v1142 = vpop.f32.mrb[0].mxu0
        %v1143 = vadd.f32 0.0, %v1142
        %v1144 = vpop.f32.mrb[0].mxu0
        %1145 = vdwg.mxu0
        %v1146 = vsel %vm731, %v1143, -inf
        %1147 = vmax.xlane.f32.xlu0 %v1146
        %v1148 = vpop.xlane.xlu0 %1147
        %v1149 = vsub.f32 %v1143, %v1148
        %v1150 = vmul.f32 %v1149, 1.442695
        %v1151 = vpow.pop %v1150
        %v1152 = vsel %vm731, %v1151, 0.0
        %1153 = vadd.xlane.f32.xlu0 %v1152
        %v1154 = vpop.xlane.xlu0 %1153
        %v1155 = vrcp.pop %v1154
        %v1156 = vmul.f32 %v1151, %v1155
        %s1157 = scalar_lea.vmem %s475, 16 [#allocation16]
        %1158 = vst.msk [vmem:[%s1157] sm:$0xff] %vm731, %v1156
        %1159 = vrot.lane.b32.xlu0 %v728, 112
        %v1160 = vpop.permute.xlu0 %1159
        %v1163 = vsel %vm731, %v1156, 0
        %1165 = vmatprep.subr.mxu0 0.0
        %1166 = vmatpush1.msra.mxu0 %v1160
        %1167 = vmatprep.subr.mxu0 0.0
        %1168 = vmatpush1.msra.mxu0 0.0
        %1169 = vmatprep.subr.mxu0 0.0
        %1170 = vmatpush1.msra.mxu0 0.0
        %1171 = vmatprep.subr.mxu0 0.0
        %1172 = vmatpush1.msra.mxu0 0.0
        %1173 = vmatprep.subr.mxu0 0.0
        %1174 = vmatpush1.msra.mxu0 0.0
        %1175 = vmatprep.subr.mxu0 0.0
        %1176 = vmatpush1.msra.mxu0 0.0
        %1177 = vmatprep.subr.mxu0 0.0
        %1178 = vmatpush1.msra.mxu0 0.0
        %1179 = vmatprep.subr.mxu0 0.0
        %1180 = vmatpush1.msra.mxu0 0.0
        %1181 = vmatprep.subr.mxu0 0.0
        %1182 = vmatpush1.msra.mxu0 0.0
        %1183 = vmatprep.subr.mxu0 0.0
        %1184 = vmatpush1.msra.mxu0 0.0
        %1185 = vmatprep.subr.mxu0 0.0
        %1186 = vmatpush1.msra.mxu0 0.0
        %1187 = vmatprep.subr.mxu0 0.0
        %1188 = vmatpush1.msra.mxu0 0.0
        %1189 = vmatprep.subr.mxu0 0.0
        %1190 = vmatpush1.msra.mxu0 0.0
        %1191 = vmatprep.subr.mxu0 0.0
        %1192 = vmatpush1.msra.mxu0 0.0
        %1193 = vmatprep.subr.mxu0 0.0
        %1194 = vmatpush1.msra.mxu0 0.0
        %1195 = vmatprep.subr.mxu0 0.0
        %1196 = vmatpush1.msra.mxu0 0.0
        %1197 = vmatprep.subr.mxu0 0.0
        %1198 = vmatpush1.msra.mxu0 0.0
        %1199 = vmatprep.subr.mxu0 0.0
        %1200 = vmatpush1.msra.mxu0 0.0
        %1201 = vmatprep.subr.mxu0 0.0
        %1202 = vmatpush1.msra.mxu0 0.0
        %1203 = vmatprep.subr.mxu0 0.0
        %1204 = vmatpush1.msra.mxu0 0.0
        %1205 = vmatprep.subr.mxu0 0.0
        %1206 = vmatpush1.msra.mxu0 0.0
        %1207 = vmatprep.subr.mxu0 0.0
        %1208 = vmatpush1.msra.mxu0 0.0
        %1209 = vmatprep.subr.mxu0 0.0
        %1210 = vmatpush1.msra.mxu0 0.0
        %1211 = vmatprep.subr.mxu0 0.0
        %1212 = vmatpush1.msra.mxu0 0.0
        %1213 = vmatprep.subr.mxu0 0.0
        %1214 = vmatpush1.msra.mxu0 0.0
        %1215 = vmatprep.subr.mxu0 0.0
        %1216 = vmatpush1.msra.mxu0 0.0
        %1217 = vmatprep.subr.mxu0 0.0
        %1218 = vmatpush1.msra.mxu0 0.0
        %1219 = vmatprep.subr.mxu0 0.0
        %1220 = vmatpush1.msra.mxu0 0.0
        %1221 = vmatprep.subr.mxu0 0.0
        %1222 = vmatpush1.msra.mxu0 0.0
        %1223 = vmatprep.subr.mxu0 0.0
        %1224 = vmatpush1.msra.mxu0 0.0
        %1225 = vmatprep.subr.mxu0 0.0
        %1226 = vmatpush1.msra.mxu0 0.0
        %1227 = vmatprep.subr.mxu0 0.0
        %1228 = vmatpush1.msra.mxu0 0.0
        %1229 = vmatprep.mubr.f32.mxu0 0.0
        %1230 = vmatmul.mubr.f32.gmra.mrb[0].mxu0 %v1163
        %v1231 = vpop.f32.mrb[0].mxu0
        %v1232 = vadd.f32 0.0, %v1231
        %v1233 = vpop.f32.mrb[0].mxu0
        %1234 = vdwg.mxu0
        %1236 = vrot.lane.b32.xlu0 %v1232, 16
        %v1237 = vpop.permute.xlu0 %1236
        %vm1239 = vcmask 195712
        %1240 = vst.msk [vmem:[#allocation2] sm:$0xff] %vm1239, %v1237
        %1241 = vrot.lane.b32.xlu0 %v554, 104
        %v1242 = vpop.permute.xlu0 %1241
        %1243 = vrot.lane.b32.xlu0 %v643, 104
        %v1244 = vpop.permute.xlu0 %1243
        %v1245 = vsel %vm731, %v1242, 0
        %v1247 = vsel %vm731, %v1244, 0
        %1249 = vmatprep.subr.mxu0 0.0
        %1250 = vmatpush1.xpose.msra.mxu0 %v1247
        %1251 = vmatprep.subr.mxu0 0.0
        %1252 = vmatpush1.xpose.msra.mxu0 0.0
        %1253 = vmatprep.subr.mxu0 0.0
        %1254 = vmatpush1.xpose.msra.mxu0 0.0
        %1255 = vmatprep.subr.mxu0 0.0
        %1256 = vmatpush1.xpose.msra.mxu0 0.0
        %1257 = vmatprep.subr.mxu0 0.0
        %1258 = vmatpush1.xpose.msra.mxu0 0.0
        %1259 = vmatprep.subr.mxu0 0.0
        %1260 = vmatpush1.xpose.msra.mxu0 0.0
        %1261 = vmatprep.subr.mxu0 0.0
        %1262 = vmatpush1.xpose.msra.mxu0 0.0
        %1263 = vmatprep.subr.mxu0 0.0
        %1264 = vmatpush1.xpose.msra.mxu0 0.0
        %1265 = vmatprep.subr.mxu0 0.0
        %1266 = vmatpush1.xpose.msra.mxu0 0.0
        %1267 = vmatprep.subr.mxu0 0.0
        %1268 = vmatpush1.xpose.msra.mxu0 0.0
        %1269 = vmatprep.subr.mxu0 0.0
        %1270 = vmatpush1.xpose.msra.mxu0 0.0
        %1271 = vmatprep.subr.mxu0 0.0
        %1272 = vmatpush1.xpose.msra.mxu0 0.0
        %1273 = vmatprep.subr.mxu0 0.0
        %1274 = vmatpush1.xpose.msra.mxu0 0.0
        %1275 = vmatprep.subr.mxu0 0.0
        %1276 = vmatpush1.xpose.msra.mxu0 0.0
        %1277 = vmatprep.subr.mxu0 0.0
        %1278 = vmatpush1.xpose.msra.mxu0 0.0
        %1279 = vmatprep.subr.mxu0 0.0
        %1280 = vmatpush1.xpose.msra.mxu0 0.0
        %1281 = vmatprep.subr.mxu0 0.0
        %1282 = vmatpush1.xpose.msra.mxu0 0.0
        %1283 = vmatprep.subr.mxu0 0.0
        %1284 = vmatpush1.xpose.msra.mxu0 0.0
        %1285 = vmatprep.subr.mxu0 0.0
        %1286 = vmatpush1.xpose.msra.mxu0 0.0
        %1287 = vmatprep.subr.mxu0 0.0
        %1288 = vmatpush1.xpose.msra.mxu0 0.0
        %1289 = vmatprep.subr.mxu0 0.0
        %1290 = vmatpush1.xpose.msra.mxu0 0.0
        %1291 = vmatprep.subr.mxu0 0.0
        %1292 = vmatpush1.xpose.msra.mxu0 0.0
        %1293 = vmatprep.subr.mxu0 0.0
        %1294 = vmatpush1.xpose.msra.mxu0 0.0
        %1295 = vmatprep.subr.mxu0 0.0
        %1296 = vmatpush1.xpose.msra.mxu0 0.0
        %1297 = vmatprep.subr.mxu0 0.0
        %1298 = vmatpush1.xpose.msra.mxu0 0.0
        %1299 = vmatprep.subr.mxu0 0.0
        %1300 = vmatpush1.xpose.msra.mxu0 0.0
        %1301 = vmatprep.subr.mxu0 0.0
        %1302 = vmatpush1.xpose.msra.mxu0 0.0
        %1303 = vmatprep.subr.mxu0 0.0
        %1304 = vmatpush1.xpose.msra.mxu0 0.0
        %1305 = vmatprep.subr.mxu0 0.0
        %1306 = vmatpush1.xpose.msra.mxu0 0.0
        %1307 = vmatprep.subr.mxu0 0.0
        %1308 = vmatpush1.xpose.msra.mxu0 0.0
        %1309 = vmatprep.subr.mxu0 0.0
        %1310 = vmatpush1.xpose.msra.mxu0 0.0
        %1311 = vmatprep.subr.mxu0 0.0
        %1312 = vmatpush1.xpose.msra.mxu0 0.0
        %1313 = vmatprep.mubr.f32.mxu0 0.0
        %1314 = vmatmul.mubr.f32.gmra.mrb[0].mxu0 %v1245
        %v1315 = vpop.f32.mrb[0].mxu0
        %v1316 = vadd.f32 0.0, %v1315
        %v1317 = vpop.f32.mrb[0].mxu0
        %1318 = vdwg.mxu0
        %v1319 = vsel %vm731, %v1316, -inf
        %1320 = vmax.xlane.f32.xlu0 %v1319
        %v1321 = vpop.xlane.xlu0 %1320
        %v1322 = vsub.f32 %v1316, %v1321
        %v1323 = vmul.f32 %v1322, 1.442695
        %v1324 = vpow.pop %v1323
        %v1325 = vsel %vm731, %v1324, 0.0
        %1326 = vadd.xlane.f32.xlu0 %v1325
        %v1327 = vpop.xlane.xlu0 %1326
        %v1328 = vrcp.pop %v1327
        %v1329 = vmul.f32 %v1324, %v1328
        %s1330 = scalar_lea.vmem %s475, 24 [#allocation16]
        %1331 = vst.msk [vmem:[%s1330] sm:$0xff] %vm731, %v1329
        %1332 = vrot.lane.b32.xlu0 %v728, 104
        %v1333 = vpop.permute.xlu0 %1332
        %v1336 = vsel %vm731, %v1329, 0
        %1338 = vmatprep.subr.mxu0 0.0
        %1339 = vmatpush1.msra.mxu0 %v1333
        %1340 = vmatprep.subr.mxu0 0.0
        %1341 = vmatpush1.msra.mxu0 0.0
        %1342 = vmatprep.subr.mxu0 0.0
        %1343 = vmatpush1.msra.mxu0 0.0
        %1344 = vmatprep.subr.mxu0 0.0
        %1345 = vmatpush1.msra.mxu0 0.0
        %1346 = vmatprep.subr.mxu0 0.0
        %1347 = vmatpush1.msra.mxu0 0.0
        %1348 = vmatprep.subr.mxu0 0.0
        %1349 = vmatpush1.msra.mxu0 0.0
        %1350 = vmatprep.subr.mxu0 0.0
        %1351 = vmatpush1.msra.mxu0 0.0
        %1352 = vmatprep.subr.mxu0 0.0
        %1353 = vmatpush1.msra.mxu0 0.0
        %1354 = vmatprep.subr.mxu0 0.0
        %1355 = vmatpush1.msra.mxu0 0.0
        %1356 = vmatprep.subr.mxu0 0.0
        %1357 = vmatpush1.msra.mxu0 0.0
        %1358 = vmatprep.subr.mxu0 0.0
        %1359 = vmatpush1.msra.mxu0 0.0
        %1360 = vmatprep.subr.mxu0 0.0
        %1361 = vmatpush1.msra.mxu0 0.0
        %1362 = vmatprep.subr.mxu0 0.0
        %1363 = vmatpush1.msra.mxu0 0.0
        %1364 = vmatprep.subr.mxu0 0.0
        %1365 = vmatpush1.msra.mxu0 0.0
        %1366 = vmatprep.subr.mxu0 0.0
        %1367 = vmatpush1.msra.mxu0 0.0
        %1368 = vmatprep.subr.mxu0 0.0
        %1369 = vmatpush1.msra.mxu0 0.0
        %1370 = vmatprep.subr.mxu0 0.0
        %1371 = vmatpush1.msra.mxu0 0.0
        %1372 = vmatprep.subr.mxu0 0.0
        %1373 = vmatpush1.msra.mxu0 0.0
        %1374 = vmatprep.subr.mxu0 0.0
        %1375 = vmatpush1.msra.mxu0 0.0
        %1376 = vmatprep.subr.mxu0 0.0
        %1377 = vmatpush1.msra.mxu0 0.0
        %1378 = vmatprep.subr.mxu0 0.0
        %1379 = vmatpush1.msra.mxu0 0.0
        %1380 = vmatprep.subr.mxu0 0.0
        %1381 = vmatpush1.msra.mxu0 0.0
        %1382 = vmatprep.subr.mxu0 0.0
        %1383 = vmatpush1.msra.mxu0 0.0
        %1384 = vmatprep.subr.mxu0 0.0
        %1385 = vmatpush1.msra.mxu0 0.0
        %1386 = vmatprep.subr.mxu0 0.0
        %1387 = vmatpush1.msra.mxu0 0.0
        %1388 = vmatprep.subr.mxu0 0.0
        %1389 = vmatpush1.msra.mxu0 0.0
        %1390 = vmatprep.subr.mxu0 0.0
        %1391 = vmatpush1.msra.mxu0 0.0
        %1392 = vmatprep.subr.mxu0 0.0
        %1393 = vmatpush1.msra.mxu0 0.0
        %1394 = vmatprep.subr.mxu0 0.0
        %1395 = vmatpush1.msra.mxu0 0.0
        %1396 = vmatprep.subr.mxu0 0.0
        %1397 = vmatpush1.msra.mxu0 0.0
        %1398 = vmatprep.subr.mxu0 0.0
        %1399 = vmatpush1.msra.mxu0 0.0
        %1400 = vmatprep.subr.mxu0 0.0
        %1401 = vmatpush1.msra.mxu0 0.0
        %1402 = vmatprep.mubr.f32.mxu0 0.0
        %1403 = vmatmul.mubr.f32.gmra.mrb[0].mxu0 %v1336
        %v1404 = vpop.f32.mrb[0].mxu0
        %v1405 = vadd.f32 0.0, %v1404
        %v1406 = vpop.f32.mrb[0].mxu0
        %1407 = vdwg.mxu0
        %1409 = vrot.lane.b32.xlu0 %v1405, 24
        %v1410 = vpop.permute.xlu0 %1409
        %vm1412 = vcmask 261312
        %1413 = vst.msk [vmem:[#allocation2] sm:$0xff] %vm1412, %v1410
        %v1414 = vld [vmem:[#allocation2] sm:$0xff]
        %v1415 = vld [vmem:[#allocation11] sm:$0xff]
        %v1416 = vld [vmem:[#allocation11 + $0x8] sm:$0xff]
        %v1417 = vld [vmem:[#allocation11 + $0x10] sm:$0xff]
        %v1418 = vld [vmem:[#allocation11 + $0x18] sm:$0xff]
        %v1420 = vsel %vm483, %v1414, 0
        %1422 = vmatprep.subr.mxu0 0.0
        %1423 = vmatpush1.msra.mxu0 %v1415
        %1424 = vmatprep.subr.mxu0 0.0
        %1425 = vmatpush1.msra.mxu0 %v1416
        %1426 = vmatprep.subr.mxu0 0.0
        %1427 = vmatpush1.msra.mxu0 %v1417
        %1428 = vmatprep.subr.mxu0 0.0
        %1429 = vmatpush1.msra.mxu0 %v1418
        %1430 = vmatprep.subr.mxu0 0.0
        %1431 = vmatpush1.msra.mxu0 0.0
        %1432 = vmatprep.subr.mxu0 0.0
        %1433 = vmatpush1.msra.mxu0 0.0
        %1434 = vmatprep.subr.mxu0 0.0
        %1435 = vmatpush1.msra.mxu0 0.0
        %1436 = vmatprep.subr.mxu0 0.0
        %1437 = vmatpush1.msra.mxu0 0.0
        %1438 = vmatprep.subr.mxu0 0.0
        %1439 = vmatpush1.msra.mxu0 0.0
        %1440 = vmatprep.subr.mxu0 0.0
        %1441 = vmatpush1.msra.mxu0 0.0
        %1442 = vmatprep.subr.mxu0 0.0
        %1443 = vmatpush1.msra.mxu0 0.0
        %1444 = vmatprep.subr.mxu0 0.0
        %1445 = vmatpush1.msra.mxu0 0.0
        %1446 = vmatprep.subr.mxu0 0.0
        %1447 = vmatpush1.msra.mxu0 0.0
        %1448 = vmatprep.subr.mxu0 0.0
        %1449 = vmatpush1.msra.mxu0 0.0
        %1450 = vmatprep.subr.mxu0 0.0
        %1451 = vmatpush1.msra.mxu0 0.0
        %1452 = vmatprep.subr.mxu0 0.0
        %1453 = vmatpush1.msra.mxu0 0.0
        %1454 = vmatprep.subr.mxu0 0.0
        %1455 = vmatpush1.msra.mxu0 0.0
        %1456 = vmatprep.subr.mxu0 0.0
        %1457 = vmatpush1.msra.mxu0 0.0
        %1458 = vmatprep.subr.mxu0 0.0
        %1459 = vmatpush1.msra.mxu0 0.0
        %1460 = vmatprep.subr.mxu0 0.0
        %1461 = vmatpush1.msra.mxu0 0.0
        %1462 = vmatprep.subr.mxu0 0.0
        %1463 = vmatpush1.msra.mxu0 0.0
        %1464 = vmatprep.subr.mxu0 0.0
        %1465 = vmatpush1.msra.mxu0 0.0
        %1466 = vmatprep.subr.mxu0 0.0
        %1467 = vmatpush1.msra.mxu0 0.0
        %1468 = vmatprep.subr.mxu0 0.0
        %1469 = vmatpush1.msra.mxu0 0.0
        %1470 = vmatprep.subr.mxu0 0.0
        %1471 = vmatpush1.msra.mxu0 0.0
        %1472 = vmatprep.subr.mxu0 0.0
        %1473 = vmatpush1.msra.mxu0 0.0
        %1474 = vmatprep.subr.mxu0 0.0
        %1475 = vmatpush1.msra.mxu0 0.0
        %1476 = vmatprep.subr.mxu0 0.0
        %1477 = vmatpush1.msra.mxu0 0.0
        %1478 = vmatprep.subr.mxu0 0.0
        %1479 = vmatpush1.msra.mxu0 0.0
        %1480 = vmatprep.subr.mxu0 0.0
        %1481 = vmatpush1.msra.mxu0 0.0
        %1482 = vmatprep.subr.mxu0 0.0
        %1483 = vmatpush1.msra.mxu0 0.0
        %1484 = vmatprep.subr.mxu0 0.0
        %1485 = vmatpush1.msra.mxu0 0.0
        %1486 = vmatprep.mubr.f32.mxu0 0.0
        %1487 = vmatmul.mubr.f32.gmra.mrb[0].mxu0 %v1420
        %v1488 = vpop.f32.mrb[0].mxu0
        %v1489 = vadd.f32 %v476, %v1488
        %v1490 = vpop.f32.mrb[0].mxu0
        %1491 = vdwg.mxu0
        %v1492 = vsel %vm483, %v1489, 0.0
        %1493 = vadd.xlane.f32.xlu0 %v1492
        %v1494 = vpop.xlane.xlu0 %1493
        %v1495 = vrcp.pop 32.0
        %v1496 = vmul.f32 %v1494, %v1495
        %v1497 = vsub.f32 %v1489, %v1496
        %v1498 = vmul.f32 %v1497, %v1497
        %v1499 = vsel %vm483, %v1498, 0.0
        %1500 = vadd.xlane.f32.xlu0 %v1499
        %v1501 = vpop.xlane.xlu0 %1500
        %v1502 = vmul.f32 %v1501, %v1495
        %v1503 = vadd.f32 %v1502, 1e-05
        %v1504 = vrsqrt.pop %v1503
        %v1505 = vmul.f32 %v1497, %v1504
        %v1506 = vld [vmem:[#allocation12] sm:$0x1]
        %v1508 = vlaneseq
        %v1509 = vshrl.u32 %v1508, 7
        %v1510 = vsub.s32 0, %v1509
        %v1511 = vrot.slane %v1506, %v1510
        %v1513 = vmul.f32 %v1505, %v1511
        %v1514 = vld [vmem:[#allocation14] sm:$0x1]
        %v1516 = vlaneseq
        %v1517 = vshrl.u32 %v1516, 7
        %v1518 = vsub.s32 0, %v1517
        %v1519 = vrot.slane %v1514, %v1518
        %v1521 = vadd.f32 %v1513, %v1519
        %1522 = vst.msk [vmem:[%s468] sm:$0xff] %vm483, %v1521
        %s1523 = sand.u32 %s220, 1
        %s1524 = scalar_lea.sflag [#allocation5], %s1523
        %s1525 = sand.u32 %s220, 1
        %s1526 = smul.addr %s1525, 8
        %s1527 = scalar_lea.vmem [#allocation15], %s1526
        %s1528 = sand.u32 %s248, 1
        %s1529 = scalar_lea.sflag [#allocation17], %s1528
        %s1530 = sand.u32 %s248, 1
        %s1531 = smul.addr %s1530, 32
        %s1532 = scalar_lea.vmem [#allocation16], %s1531
        // Predicated region
        $region77: #{tpu_custom_call.1} parent=47 // pred_check
          %p1533 = pneg %p230
        $region78: #{tpu_custom_call.1} parent=47 // pred_check_branch
          %1535 = sbr.rel (%p1533) target = $region80
        $region79: #{tpu_custom_call.1} parent=47 // pred_region
          %s1537 = ssub.s32 128, 128
          %1538 = vsyncadd %s1524, %s1537
          %s1539 = sadd.s32 %s39, %s38
          %s1540 = smul.addr %s1539, 128
          %s1541 = scalar_lea.hbm %s7, %s1540
          %s1543 = sshll.u32 %s1527, 4
          %s1544 = int_to_ptr.vmem [resolvable:$true] %s1543
          %1546 = dma.vmem_to_hbm [thread:$0]  %s1544, 128, %s1541, %s1524
        $region80: #{tpu_custom_call.1} parent=47 // pred_fallthru
          _
        // Predicated region
        $region81: #{tpu_custom_call.1} parent=47 // pred_check
          %p1547 = pneg %p258
        $region82: #{tpu_custom_call.1} parent=47 // pred_check_branch
          %1549 = sbr.rel (%p1547) target = $region84
        $region83: #{tpu_custom_call.1} parent=47 // pred_region
          %s1551 = ssub.s32 512, 512
          %1552 = vsyncadd %s1529, %s1551
          %s1553 = sadd.s32 %s39, %s38
          %s1554 = smul.addr %s1553, 128
          %s1555 = scalar_lea.hbm %s8, %s1554
          %s1556 = sshll.u32 %s1532, 4
          %s1557 = int_to_ptr.vmem [resolvable:$true] %s1556
          %1562 = dma.vmem_to_hbm [thread:$0]  %s1557, 512, %s1555, %s1529, 128, 256, 8
        $region84: #{tpu_custom_call.1} parent=47 // pred_fallthru
          _
      $region48: #{tpu_custom_call.1} parent=5 // pred_fallthru
        _
      %p1563 = scmp.le.s32.totalorder 2, %s29
      // Predicated region
      $region85: #{tpu_custom_call.1} parent=5 // pred_check
        %p1564 = pneg %p1563
      $region86: #{tpu_custom_call.1} parent=5 // pred_check_branch
        %1566 = sbr.rel (%p1564) target = $region88
      $region87: #{tpu_custom_call.1} parent=5 // pred_region
        %s1567 = ssub.s32 %s29, 2
        // Predicated region
        $region89: #{tpu_custom_call.1} parent=87 // pred_check
          %p1568 = pneg %p236
        $region90: #{tpu_custom_call.1} parent=87 // pred_check_branch
          %1570 = sbr.rel (%p1568) target = $region92
        $region91: #{tpu_custom_call.1} parent=87 // pred_region
          %s1571 = sand.u32 %s221, 1
          %s1572 = scalar_lea.sflag [#allocation5], %s1571
          %s1573 = sand.u32 %s221, 1
          %s1574 = smul.addr %s1573, 8
          %s1575 = scalar_lea.vmem [#allocation15], %s1574
          %1576 = dma.done %s1572, 128
        $region92: #{tpu_custom_call.1} parent=87 // pred_fallthru
          _
        // Predicated region
        $region93: #{tpu_custom_call.1} parent=87 // pred_check
          %p1577 = pneg %p264
        $region94: #{tpu_custom_call.1} parent=87 // pred_check_branch
          %1579 = sbr.rel (%p1577) target = $region96
        $region95: #{tpu_custom_call.1} parent=87 // pred_region
          %s1580 = sand.u32 %s249, 1
          %s1581 = scalar_lea.sflag [#allocation17], %s1580
          %s1582 = sand.u32 %s249, 1
          %s1583 = smul.addr %s1582, 32
          %s1584 = scalar_lea.vmem [#allocation16], %s1583
          %1585 = dma.done %s1581, 512
        $region96: #{tpu_custom_call.1} parent=87 // pred_fallthru
          _
      $region88: #{tpu_custom_call.1} parent=5 // pred_fallthru
        _
    $region6: #{tpu_custom_call.1} parent=1 // loop_footer
      %s33 = sadd.s32 1, %s29
    $region7: #{tpu_custom_call.1} parent=1 // loop_footer_branch
      %28 = sbr.rel target = $region3
    $region8: #{tpu_custom_call.1} parent=1 // loop_exit
      _
    %1586 = vsyncpa [#allocation4], 1
    %s1587 = scalar_lea.sflag [#allocation4], 1
    %1588 = vsyncpa %s1587, 1
    %1589 = vsyncpa [#allocation7], 1
    %s1590 = scalar_lea.sflag [#allocation7], 1
    %1591 = vsyncpa %s1590, 1
    %1592 = vsyncpa [#allocation10], 1
    %1593 = vsyncpa [#allocation13], 1
    %1594 = vsyncpa [#allocation5], 1
    %s1595 = scalar_lea.sflag [#allocation5], 1
    %1596 = vsyncpa %s1595, 1
    %1597 = vsyncpa [#allocation17], 1
    %s1598 = scalar_lea.sflag [#allocation17], 1
    %1599 = vsyncpa %s1598, 1

// kernel: tpu_custom_call.1
$region0: #{tpu_custom_call.1}
  #allocation0 [shape = 'u32[]', space=smem, size = 0x4, offset = 0x4, fixed_abs, tag = 'smem constant byte address 0x4 - core index']
  #allocation1 [shape = 'u32[144,128]{1,0:T(1,128)}', space=vmem, size = 0x12000, scoped, tag = 'internal scratch']
  #allocation2 [shape = 'f32[8,32]{1,0:T(8,128)}', space=vmem, size = 0x1000, scoped, tag = 'scratch operand']
  %s0 = inlined_call_operand.hbm [shape: f32[2,8,32], index: 0, kind: input, shape index: {}]
  %s1 = inlined_call_operand.hbm [shape: f32[2,8,32], index: 1, kind: input, shape index: {}]
  %s2 = inlined_call_operand.hbm [shape: f32[2,8,32], index: 2, kind: input, shape index: {}]
  %s3 = inlined_call_operand.hbm [shape: f32[32,96], index: 3, kind: input, shape index: {}]
  %s4 = inlined_call_operand.hbm [shape: f32[32,32], index: 4, kind: input, shape index: {}]
  %s5 = inlined_call_operand.hbm [shape: f32[1,32], index: 5, kind: input, shape index: {}]
  %s6 = inlined_call_operand.hbm [shape: f32[1,32], index: 6, kind: input, shape index: {}]
  %s7 = inlined_call_operand.hbm [shape: f32[2,8,32], index: 7, kind: output, shape index: {0}]
  %s8 = inlined_call_operand.hbm [shape: f32[4,2,8,8], index: 8, kind: output, shape index: {1}]
  %9 = xla_tuple %s7, %s8
  %s10 = sld [smem:[#allocation0]]
  $region97: #{tpu_custom_call.1} parent=0
    _
  %s12 = ssub.s32 1, %s10
  %s13 = scalar_select 0, %s12, %s10
  $region1: #{tpu_custom_call.1} parent=0
    #allocation3 [shape = 'u8[8192]{0}', space=vmem, size = 0x2000, scoped, tag = 'input window, operand 0']
    #allocation4 [shape = 's32[2]{0}', space=sflag, size = 0x8, scoped, tag = 'scoped memory for tpu_custom_call.1']
    #allocation5 [shape = 's32[2]{0}', space=sflag, size = 0x8, scoped, tag = 'scoped memory for tpu_custom_call.1']
    #allocation6 [shape = 'u8[8192]{0}', space=vmem, size = 0x2000, scoped, tag = 'input window, operand 1']
    #allocation7 [shape = 's32[2]{0}', space=sflag, size = 0x8, scoped, tag = 'scoped memory for tpu_custom_call.1']
    #allocation8 [shape = 'u8[8192]{0}', space=vmem, size = 0x2000, scoped, tag = 'input window, operand 2']
    #allocation9 [shape = 'u8[16384]{0}', space=vmem, size = 0x4000, scoped, tag = 'input window, operand 3, single buffered']
    #allocation10 [shape = 's32[1]{0}', space=sflag, size = 0x4, scoped, tag = 'scoped memory for tpu_custom_call.1']
    #allocation11 [shape = 'u8[16384]{0}', space=vmem, size = 0x4000, scoped, tag = 'input window, operand 4, single buffered']
    #allocation12 [shape = 'u8[512]{0}', space=vmem, size = 0x400, scoped, tag = 'input window, operand 5, single buffered']
    #allocation13 [shape = 's32[1]{0}', space=sflag, size = 0x4, scoped, tag = 'scoped memory for tpu_custom_call.1']
    #allocation14 [shape = 'u8[512]{0}', space=vmem, size = 0x400, scoped, tag = 'input window, operand 6, single buffered']
    #allocation15 [shape = 'u8[8192]{0}', space=vmem, size = 0x2000, scoped, tag = 'output window, operand 0']
    #allocation16 [shape = 'u8[32768]{0}', space=vmem, size = 0x8000, scoped, tag = 'output window, operand 1']
    #allocation17 [shape = 's32[2]{0}', space=sflag, size = 0x8, scoped, tag = 'scoped memory for tpu_custom_call.1']
    %14 = vsyncpa [#allocation4], 0
    %s15 = scalar_lea.sflag [#allocation4], 1
    %16 = vsyncpa %s15, 0
    %17 = vsyncpa [#allocation7], 0
    %s18 = scalar_lea.sflag [#allocation7], 1
    %19 = vsyncpa %s18, 0
    %20 = vsyncpa [#allocation10], 0
    %21 = vsyncpa [#allocation13], 0
    %22 = vsyncpa [#allocation5], 0
    %s23 = scalar_lea.sflag [#allocation5], 1
    %24 = vsyncpa %s23, 0
    %25 = vsyncpa [#allocation17], 0
    %s26 = scalar_lea.sflag [#allocation17], 1
    %27 = vsyncpa %s26, 0
    loop: start=0, step=1, limit=4
    $region2: #{tpu_custom_call.1} parent=1 // loop_pre_header
      _
    $region3: #{tpu_custom_call.1} parent=1 // loop_header
      %s29 = sphi 0, %s33
      %p30 = scmp.ge.s32.totalorder %s29, 4
      %s36 = sphi 0, %s48
      %s37 = sphi 0, %s44
      %s38 = sphi 0, %s36
      %s39 = sphi 0, %s37
      %s40 = sphi 0, %s38
      %s41 = sphi 0, %s39
      %s53 = sphi 0, %s55
      %s56 = sphi 0, %s53
      %s57 = sphi 0, %s56
      %s73 = sphi 0, %s57
      %s79 = sphi 0, %s81
      %s82 = sphi 0, %s79
      %s83 = sphi 0, %s82
      %s99 = sphi 0, %s83
      %s105 = sphi 0, %s107
      %s108 = sphi 0, %s105
      %s109 = sphi 0, %s108
      %s125 = sphi 0, %s109
      %s129 = sphi 0, %s129
      %s131 = sphi 0, %s129
      %s132 = sphi 0, %s131
      %s146 = sphi 0, %s132
      %s150 = sphi 0, %s150
      %s152 = sphi 0, %s150
      %s153 = sphi 0, %s152
      %s167 = sphi 0, %s153
      %s171 = sphi 0, %s171
      %s173 = sphi 0, %s171
      %s174 = sphi 0, %s173
      %s188 = sphi 0, %s174
      %s192 = sphi 0, %s192
      %s194 = sphi 0, %s192
      %s195 = sphi 0, %s194
      %s209 = sphi 0, %s195
      %s217 = sphi 0, %s219
      %s220 = sphi 0, %s217
      %s221 = sphi 0, %s220
      %s237 = sphi 0, %s221
      %s245 = sphi 0, %s247
      %s248 = sphi 0, %s245
      %s249 = sphi 0, %s248
      %s265 = sphi 0, %s249
    $region4: #{tpu_custom_call.1} parent=1 // loop_header_branch
      %32 = sbr.rel (%p30) target = $region8
    $region5: #{tpu_custom_call.1} parent=1 // loop_body
      %s34 = ssub.s32 %s29, 1
      %s35 = ssub.s32 %s29, 2
      %s42 = sadd.s32 1, %s37
      %p43 = scmp.ge.s32.totalorder %s42, 1
      %s44 = scalar_select %p43, 0, %s42
      %s45 = sadd.s32 1, %s36
      %s46 = scalar_select %p43, %s45, %s36
      %p47 = scmp.ge.s32.totalorder %s46, 2
      %s48 = scalar_select %p47, 0, %s46
      %s49 = ssub.s32 %s36, %s48
      %s50 = ssub.s32 %s37, %s44
      %s51 = sor.u32 %s49, %s50
      %p52 = scmp.eq.s32.totalorder %s51, 0
      %s54 = sadd.s32 %s53, 1
      %s55 = scalar_select %p52, %s53, %s54
      %p58 = pneg %p52
      %p59 = scmp.eq.s32.totalorder %s29, 1
      %p60 = por %p58, %p59
      %p61 = scmp.ne.s32.totalorder %s53, %s56
      %p62 = scmp.eq.s32.totalorder %s29, 0
      %p63 = por %p61, %p62
      %p64 = scmp.ne.s32.totalorder %s53, %s56
      %p65 = scmp.eq.s32.totalorder %s34, 1
      %p66 = por %p64, %p65
      %p67 = scmp.ne.s32.totalorder %s56, %s57
      %p68 = scmp.eq.s32.totalorder %s34, 0
      %p69 = por %p67, %p68
      %p70 = scmp.ne.s32.totalorder %s56, %s57
      %p71 = scmp.eq.s32.totalorder %s35, 1
      %p72 = por %p70, %p71
      %p74 = scmp.ne.s32.totalorder %s57, %s73
      %p75 = scmp.eq.s32.totalorder %s35, 0
      %p76 = por %p74, %p75
      %s77 = ssub.s32 %s36, %s48
      %p78 = scmp.eq.s32.totalorder %s77, 0
      %s80 = sadd.s32 %s79, 1
      %s81 = scalar_select %p78, %s79, %s80
      %p84 = pneg %p78
      %p85 = scmp.eq.s32.totalorder %s29, 1
      %p86 = por %p84, %p85
      %p87 = scmp.ne.s32.totalorder %s79, %s82
      %p88 = scmp.eq.s32.totalorder %s29, 0
      %p89 = por %p87, %p88
      %p90 = scmp.ne.s32.totalorder %s79, %s82
      %p91 = scmp.eq.s32.totalorder %s34, 1
      %p92 = por %p90, %p91
      %p93 = scmp.ne.s32.totalorder %s82, %s83
      %p94 = scmp.eq.s32.totalorder %s34, 0
      %p95 = por %p93, %p94
      %p96 = scmp.ne.s32.totalorder %s82, %s83
      %p97 = scmp.eq.s32.totalorder %s35, 1
      %p98 = por %p96, %p97
      %p100 = scmp.ne.s32.totalorder %s83, %s99
      %p101 = scmp.eq.s32.totalorder %s35, 0
      %p102 = por %p100, %p101
      %s103 = ssub.s32 %s36, %s48
      %p104 = scmp.eq.s32.totalorder %s103, 0
      %s106 = sadd.s32 %s105, 1
      %s107 = scalar_select %p104, %s105, %s106
      %p110 = pneg %p104
      %p111 = scmp.eq.s32.totalorder %s29, 1
      %p112 = por %p110, %p111
      %p113 = scmp.ne.s32.totalorder %s105, %s108
      %p114 = scmp.eq.s32.totalorder %s29, 0
      %p115 = por %p113, %p114
      %p116 = scmp.ne.s32.totalorder %s105, %s108
      %p117 = scmp.eq.s32.totalorder %s34, 1
      %p118 = por %p116, %p117
      %p119 = scmp.ne.s32.totalorder %s108, %s109
      %p120 = scmp.eq.s32.totalorder %s34, 0
      %p121 = por %p119, %p120
      %p122 = scmp.ne.s32.totalorder %s108, %s109
      %p123 = scmp.eq.s32.totalorder %s35, 1
      %p124 = por %p122, %p123
      %p126 = scmp.ne.s32.totalorder %s109, %s125
      %p127 = scmp.eq.s32.totalorder %s35, 0
      %p128 = por %p126, %p127
      %s130 = sadd.s32 %s129, 1
      %p133 = scmp.eq.s32.totalorder %s29, 1
      %p134 = scmp.ne.s32.totalorder %s129, %s131
      %p135 = scmp.eq.s32.totalorder %s29, 0
      %p136 = por %p134, %p135
      %p137 = scmp.ne.s32.totalorder %s129, %s131
      %p138 = scmp.eq.s32.totalorder %s34, 1
      %p139 = por %p137, %p138
      %p140 = scmp.ne.s32.totalorder %s131, %s132
      %p141 = scmp.eq.s32.totalorder %s34, 0
      %p142 = por %p140, %p141
      %p143 = scmp.ne.s32.totalorder %s131, %s132
      %p144 = scmp.eq.s32.totalorder %s35, 1
      %p145 = por %p143, %p144
      %p147 = scmp.ne.s32.totalorder %s132, %s146
      %p148 = scmp.eq.s32.totalorder %s35, 0
      %p149 = por %p147, %p148
      %s151 = sadd.s32 %s150, 1
      %p154 = scmp.eq.s32.totalorder %s29, 1
      %p155 = scmp.ne.s32.totalorder %s150, %s152
      %p156 = scmp.eq.s32.totalorder %s29, 0
      %p157 = por %p155, %p156
      %p158 = scmp.ne.s32.totalorder %s150, %s152
      %p159 = scmp.eq.s32.totalorder %s34, 1
      %p160 = por %p158, %p159
      %p161 = scmp.ne.s32.totalorder %s152, %s153
      %p162 = scmp.eq.s32.totalorder %s34, 0
      %p163 = por %p161, %p162
      %p164 = scmp.ne.s32.totalorder %s152, %s153
      %p165 = scmp.eq.s32.totalorder %s35, 1
      %p166 = por %p164, %p165
      %p168 = scmp.ne.s32.totalorder %s153, %s167
      %p169 = scmp.eq.s32.totalorder %s35, 0
      %p170 = por %p168, %p169
      %s172 = sadd.s32 %s171, 1
      %p175 = scmp.eq.s32.totalorder %s29, 1
      %p176 = scmp.ne.s32.totalorder %s171, %s173
      %p177 = scmp.eq.s32.totalorder %s29, 0
      %p178 = por %p176, %p177
      %p179 = scmp.ne.s32.totalorder %s171, %s173
      %p180 = scmp.eq.s32.totalorder %s34, 1
      %p181 = por %p179, %p180
      %p182 = scmp.ne.s32.totalorder %s173, %s174
      %p183 = scmp.eq.s32.totalorder %s34, 0
      %p184 = por %p182, %p183
      %p185 = scmp.ne.s32.totalorder %s173, %s174
      %p186 = scmp.eq.s32.totalorder %s35, 1
      %p187 = por %p185, %p186
      %p189 = scmp.ne.s32.totalorder %s174, %s188
      %p190 = scmp.eq.s32.totalorder %s35, 0
      %p191 = por %p189, %p190
      %s193 = sadd.s32 %s192, 1
      %p196 = scmp.eq.s32.totalorder %s29, 1
      %p197 = scmp.ne.s32.totalorder %s192, %s194
      %p198 = scmp.eq.s32.totalorder %s29, 0
      %p199 = por %p197, %p198
      %p200 = scmp.ne.s32.totalorder %s192, %s194
      %p201 = scmp.eq.s32.totalorder %s34, 1
      %p202 = por %p200, %p201
      %p203 = scmp.ne.s32.totalorder %s194, %s195
      %p204 = scmp.eq.s32.totalorder %s34, 0
      %p205 = por %p203, %p204
      %p206 = scmp.ne.s32.totalorder %s194, %s195
      %p207 = scmp.eq.s32.totalorder %s35, 1
      %p208 = por %p206, %p207
      %p210 = scmp.ne.s32.totalorder %s195, %s209
      %p211 = scmp.eq.s32.totalorder %s35, 0
      %p212 = por %p210, %p211
      %s213 = ssub.s32 %s36, %s48
      %s214 = ssub.s32 %s37, %s44
      %s215 = sor.u32 %s213, %s214
      %p216 = scmp.eq.s32.totalorder %s215, 0
      %s218 = sadd.s32 %s217, 1
      %s219 = scalar_select %p216, %s217, %s218
      %p222 = pneg %p216
      %p223 = scmp.eq.s32.totalorder %s29, 1
      %p224 = por %p222, %p223
      %p225 = scmp.ne.s32.totalorder %s217, %s220
      %p226 = scmp.eq.s32.totalorder %s29, 0
      %p227 = por %p225, %p226
      %p228 = scmp.ne.s32.totalorder %s217, %s220
      %p229 = scmp.eq.s32.totalorder %s34, 1
      %p230 = por %p228, %p229
      %p231 = scmp.ne.s32.totalorder %s220, %s221
      %p232 = scmp.eq.s32.totalorder %s34, 0
      %p233 = por %p231, %p232
      %p234 = scmp.ne.s32.totalorder %s220, %s221
      %p235 = scmp.eq.s32.totalorder %s35, 1
      %p236 = por %p234, %p235
      %p238 = scmp.ne.s32.totalorder %s221, %s237
      %p239 = scmp.eq.s32.totalorder %s35, 0
      %p240 = por %p238, %p239
      %s241 = ssub.s32 %s36, %s48
      %s242 = ssub.s32 %s37, %s44
      %s243 = sor.u32 %s241, %s242
      %p244 = scmp.eq.s32.totalorder %s243, 0
      %s246 = sadd.s32 %s245, 1
      %s247 = scalar_select %p244, %s245, %s246
      %p250 = pneg %p244
      %p251 = scmp.eq.s32.totalorder %s29, 1
      %p252 = por %p250, %p251
      %p253 = scmp.ne.s32.totalorder %s245, %s248
      %p254 = scmp.eq.s32.totalorder %s29, 0
      %p255 = por %p253, %p254
      %p256 = scmp.ne.s32.totalorder %s245, %s248
      %p257 = scmp.eq.s32.totalorder %s34, 1
      %p258 = por %p256, %p257
      %p259 = scmp.ne.s32.totalorder %s248, %s249
      %p260 = scmp.eq.s32.totalorder %s34, 0
      %p261 = por %p259, %p260
      %p262 = scmp.ne.s32.totalorder %s248, %s249
      %p263 = scmp.eq.s32.totalorder %s35, 1
      %p264 = por %p262, %p263
      %p266 = scmp.ne.s32.totalorder %s249, %s265
      %p267 = scmp.eq.s32.totalorder %s35, 0
      %p268 = por %p266, %p267
      %p269 = scmp.le.s32.totalorder 1, %s29
      %p270 = scmp.lt.s32.totalorder %s29, 3
      %p271 = pnand %p269, %p270
      %p272 = pneg %p271
      // Predicated region
      $region9: #{tpu_custom_call.1} parent=5 // pred_check
        _
      $region10: #{tpu_custom_call.1} parent=5 // pred_check_branch
        %274 = sbr.rel (%p271) target = $region12
      $region11: #{tpu_custom_call.1} parent=5 // pred_region
        %s275 = ssub.s32 %s29, 1
        // Predicated region
        $region13: #{tpu_custom_call.1} parent=11 // pred_check
          %p276 = pneg %p142
        $region14: #{tpu_custom_call.1} parent=11 // pred_check_branch
          %278 = sbr.rel (%p276) target = $region16
        $region15: #{tpu_custom_call.1} parent=11 // pred_region
          %s280 = ssub.s32 512, 512
          %281 = vsyncadd [#allocation10], %s280
          %s282 = sshll.u32 [#allocation9], 4
          %s283 = int_to_ptr.vmem [resolvable:$true] %s282
          %288 = dma.hbm_to_vmem [thread:$0]  %s3, 512, %s283, [#allocation10], 128, 128, 8
        $region16: #{tpu_custom_call.1} parent=11 // pred_fallthru
          _
        // Predicated region
        $region17: #{tpu_custom_call.1} parent=11 // pred_check
          %p289 = pneg %p163
        $region18: #{tpu_custom_call.1} parent=11 // pred_check_branch
          %291 = sbr.rel (%p289) target = $region20
        $region19: #{tpu_custom_call.1} parent=11 // pred_region
          %s293 = ssub.s32 512, 512
          %294 = vsyncadd [#allocation10], %s293
          %s295 = sshll.u32 [#allocation11], 4
          %s296 = int_to_ptr.vmem [resolvable:$true] %s295
          %301 = dma.hbm_to_vmem [thread:$0]  %s4, 512, %s296, [#allocation10], 128, 128, 8
        $region20: #{tpu_custom_call.1} parent=11 // pred_fallthru
          _
        // Predicated region
        $region21: #{tpu_custom_call.1} parent=11 // pred_check
          %p302 = pneg %p184
        $region22: #{tpu_custom_call.1} parent=11 // pred_check_branch
          %304 = sbr.rel (%p302) target = $region24
        $region23: #{tpu_custom_call.1} parent=11 // pred_region
          %s306 = ssub.s32 16, 16
          %307 = vsyncadd [#allocation13], %s306
          %s309 = sshll.u32 [#allocation12], 4
          %s310 = int_to_ptr.vmem [resolvable:$true] %s309
          %312 = dma.hbm_to_vmem [thread:$0]  %s5, 16, %s310, [#allocation13]
        $region24: #{tpu_custom_call.1} parent=11 // pred_fallthru
          _
        // Predicated region
        $region25: #{tpu_custom_call.1} parent=11 // pred_check
          %p313 = pneg %p205
        $region26: #{tpu_custom_call.1} parent=11 // pred_check_branch
          %315 = sbr.rel (%p313) target = $region28
        $region27: #{tpu_custom_call.1} parent=11 // pred_region
          %s317 = ssub.s32 16, 16
          %318 = vsyncadd [#allocation13], %s317
          %s320 = sshll.u32 [#allocation14], 4
          %s321 = int_to_ptr.vmem [resolvable:$true] %s320
          %323 = dma.hbm_to_vmem [thread:$0]  %s6, 16, %s321, [#allocation13]
        $region28: #{tpu_custom_call.1} parent=11 // pred_fallthru
          _
      $region12: #{tpu_custom_call.1} parent=5 // pred_fallthru
        _
      %p324 = scmp.lt.s32.totalorder %s29, 2
      // Predicated region
      $region29: #{tpu_custom_call.1} parent=5 // pred_check
        %p325 = pneg %p324
      $region30: #{tpu_custom_call.1} parent=5 // pred_check_branch
        %327 = sbr.rel (%p325) target = $region32
      $region31: #{tpu_custom_call.1} parent=5 // pred_region
        // Predicated region
        $region33: #{tpu_custom_call.1} parent=31 // pred_check
          %p328 = pneg %p63
        $region34: #{tpu_custom_call.1} parent=31 // pred_check_branch
          %330 = sbr.rel (%p328) target = $region36
        $region35: #{tpu_custom_call.1} parent=31 // pred_region
          %s331 = sand.u32 %s53, 1
          %s332 = scalar_lea.sflag [#allocation4], %s331
          %s333 = sand.u32 %s53, 1
          %s334 = smul.addr %s333, 8
          %s335 = scalar_lea.vmem [#allocation3], %s334
          %s337 = ssub.s32 128, 128
          %338 = vsyncadd %s332, %s337
          %s339 = sadd.s32 %s37, %s36
          %s340 = smul.addr %s339, 128
          %s341 = scalar_lea.hbm %s0, %s340
          %s343 = sshll.u32 %s335, 4
          %s344 = int_to_ptr.vmem [resolvable:$true] %s343
          %346 = dma.hbm_to_vmem [thread:$0]  %s341, 128, %s344, %s332
        $region36: #{tpu_custom_call.1} parent=31 // pred_fallthru
          _
        // Predicated region
        $region37: #{tpu_custom_call.1} parent=31 // pred_check
          %p347 = pneg %p89
        $region38: #{tpu_custom_call.1} parent=31 // pred_check_branch
          %349 = sbr.rel (%p347) target = $region40
        $region39: #{tpu_custom_call.1} parent=31 // pred_region
          %s350 = sand.u32 %s29, 1
          %s351 = scalar_lea.sflag [#allocation7], %s350
          %s352 = sand.u32 %s79, 1
          %s353 = smul.addr %s352, 8
          %s354 = scalar_lea.vmem [#allocation6], %s353
          %s356 = ssub.s32 128, 128
          %357 = vsyncadd %s351, %s356
          %s358 = smul.addr %s36, 128
          %s359 = scalar_lea.hbm %s1, %s358
          %s361 = sshll.u32 %s354, 4
          %s362 = int_to_ptr.vmem [resolvable:$true] %s361
          %364 = dma.hbm_to_vmem [thread:$0]  %s359, 128, %s362, %s351
        $region40: #{tpu_custom_call.1} parent=31 // pred_fallthru
          _
        // Predicated region
        $region41: #{tpu_custom_call.1} parent=31 // pred_check
          %p365 = pneg %p115
        $region42: #{tpu_custom_call.1} parent=31 // pred_check_branch
          %367 = sbr.rel (%p365) target = $region44
        $region43: #{tpu_custom_call.1} parent=31 // pred_region
          %s368 = sand.u32 %s29, 1
          %s369 = scalar_lea.sflag [#allocation7], %s368
          %s370 = sand.u32 %s105, 1
          %s371 = smul.addr %s370, 8
          %s372 = scalar_lea.vmem [#allocation8], %s371
          %s374 = ssub.s32 128, 128
          %375 = vsyncadd %s369, %s374
          %s376 = smul.addr %s36, 128
          %s377 = scalar_lea.hbm %s2, %s376
          %s379 = sshll.u32 %s372, 4
          %s380 = int_to_ptr.vmem [resolvable:$true] %s379
          %382 = dma.hbm_to_vmem [thread:$0]  %s377, 128, %s380, %s369
        $region44: #{tpu_custom_call.1} parent=31 // pred_fallthru
          _
      $region32: #{tpu_custom_call.1} parent=5 // pred_fallthru
        _
      %p383 = scmp.le.s32.totalorder 1, %s29
      %p384 = scmp.lt.s32.totalorder %s29, 3
      %p385 = pnand %p383, %p384
      %p386 = pneg %p385
      // Predicated region
      $region45: #{tpu_custom_call.1} parent=5 // pred_check
        _
      $region46: #{tpu_custom_call.1} parent=5 // pred_check_branch
        %388 = sbr.rel (%p385) target = $region48
      $region47: #{tpu_custom_call.1} parent=5 // pred_region
        %s389 = ssub.s32 %s29, 1
        %s390 = sand.u32 %s56, 1
        %s391 = scalar_lea.sflag [#allocation4], %s390
        %s392 = sand.u32 %s56, 1
        %s393 = smul.addr %s392, 8
        %s394 = scalar_lea.vmem [#allocation3], %s393
        // Predicated region
        $region49: #{tpu_custom_call.1} parent=47 // pred_check
          %p395 = pneg %p69
        $region50: #{tpu_custom_call.1} parent=47 // pred_check_branch
          %397 = sbr.rel (%p395) target = $region52
        $region51: #{tpu_custom_call.1} parent=47 // pred_region
          %398 = dma.done %s391, 128
        $region52: #{tpu_custom_call.1} parent=47 // pred_fallthru
          _
        %s399 = sand.u32 %s34, 1
        %s400 = scalar_lea.sflag [#allocation7], %s399
        %s401 = sand.u32 %s82, 1
        %s402 = smul.addr %s401, 8
        %s403 = scalar_lea.vmem [#allocation6], %s402
        // Predicated region
        $region53: #{tpu_custom_call.1} parent=47 // pred_check
          %p404 = pneg %p95
        $region54: #{tpu_custom_call.1} parent=47 // pred_check_branch
          %406 = sbr.rel (%p404) target = $region56
        $region55: #{tpu_custom_call.1} parent=47 // pred_region
          %407 = dma.done %s400, 128
        $region56: #{tpu_custom_call.1} parent=47 // pred_fallthru
          _
        %s408 = sand.u32 %s34, 1
        %s409 = scalar_lea.sflag [#allocation7], %s408
        %s410 = sand.u32 %s108, 1
        %s411 = smul.addr %s410, 8
        %s412 = scalar_lea.vmem [#allocation8], %s411
        // Predicated region
        $region57: #{tpu_custom_call.1} parent=47 // pred_check
          %p413 = pneg %p121
        $region58: #{tpu_custom_call.1} parent=47 // pred_check_branch
          %415 = sbr.rel (%p413) target = $region60
        $region59: #{tpu_custom_call.1} parent=47 // pred_region
          %416 = dma.done %s409, 128
        $region60: #{tpu_custom_call.1} parent=47 // pred_fallthru
          _
        // Predicated region
        $region61: #{tpu_custom_call.1} parent=47 // pred_check
          %p417 = pneg %p142
        $region62: #{tpu_custom_call.1} parent=47 // pred_check_branch
          %419 = sbr.rel (%p417) target = $region64
        $region63: #{tpu_custom_call.1} parent=47 // pred_region
          %420 = dma.done [#allocation10], 512
        $region64: #{tpu_custom_call.1} parent=47 // pred_fallthru
          _
        // Predicated region
        $region65: #{tpu_custom_call.1} parent=47 // pred_check
          %p421 = pneg %p163
        $region66: #{tpu_custom_call.1} parent=47 // pred_check_branch
          %423 = sbr.rel (%p421) target = $region68
        $region67: #{tpu_custom_call.1} parent=47 // pred_region
          %424 = dma.done [#allocation10], 512
        $region68: #{tpu_custom_call.1} parent=47 // pred_fallthru
          _
        // Predicated region
        $region69: #{tpu_custom_call.1} parent=47 // pred_check
          %p425 = pneg %p184
        $region70: #{tpu_custom_call.1} parent=47 // pred_check_branch
          %427 = sbr.rel (%p425) target = $region72
        $region71: #{tpu_custom_call.1} parent=47 // pred_region
          %428 = dma.done [#allocation13], 16
        $region72: #{tpu_custom_call.1} parent=47 // pred_fallthru
          _
        // Predicated region
        $region73: #{tpu_custom_call.1} parent=47 // pred_check
          %p429 = pneg %p205
        $region74: #{tpu_custom_call.1} parent=47 // pred_check_branch
          %431 = sbr.rel (%p429) target = $region76
        $region75: #{tpu_custom_call.1} parent=47 // pred_region
          %432 = dma.done [#allocation13], 16
        $region76: #{tpu_custom_call.1} parent=47 // pred_fallthru
          _
        %s433 = sand.u32 %s56, 1
        %s434 = scalar_lea.sflag [#allocation4], %s433
        %s435 = sand.u32 %s56, 1
        %s436 = smul.addr %s435, 8
        %s437 = scalar_lea.vmem [#allocation3], %s436
        %p438 = pneg %p69
        %p439 = pneg %p66
        %s440 = sand.u32 %s34, 1
        %s441 = scalar_lea.sflag [#allocation7], %s440
        %s442 = sand.u32 %s82, 1
        %s443 = smul.addr %s442, 8
        %s444 = scalar_lea.vmem [#allocation6], %s443
        %p445 = pneg %p95
        %p446 = pneg %p92
        %s447 = sand.u32 %s34, 1
        %s448 = scalar_lea.sflag [#allocation7], %s447
        %s449 = sand.u32 %s108, 1
        %s450 = smul.addr %s449, 8
        %s451 = scalar_lea.vmem [#allocation8], %s450
        %p452 = pneg %p121
        %p453 = pneg %p118
        %p454 = pneg %p142
        %p455 = pneg %p139
        %p456 = pneg %p163
        %p457 = pneg %p160
        %p458 = pneg %p184
        %p459 = pneg %p181
        %p460 = pneg %p205
        %p461 = pneg %p202
        %p462 = pneg %p233
        %p463 = pneg %p230
        %s464 = sand.u32 %s220, 1
        %s465 = scalar_lea.sflag [#allocation5], %s464
        %s466 = sand.u32 %s220, 1
        %s467 = smul.addr %s466, 8
        %s468 = scalar_lea.vmem [#allocation15], %s467
        %p469 = pneg %p261
        %p470 = pneg %p258
        %s471 = sand.u32 %s248, 1
        %s472 = scalar_lea.sflag [#allocation17], %s471
        %s473 = sand.u32 %s248, 1
        %s474 = smul.addr %s473, 32
        %s475 = scalar_lea.vmem [#allocation16], %s474
        %v476 = vld [vmem:[%s394] sm:$0xff]
        %v477 = vld [vmem:[#allocation9] sm:$0xff]
        %v478 = vld [vmem:[#allocation9 + $0x8] sm:$0xff]
        %v479 = vld [vmem:[#allocation9 + $0x10] sm:$0xff]
        %v480 = vld [vmem:[#allocation9 + $0x18] sm:$0xff]
        %v481 = vld [vmem:[%s403] sm:$0xff]
        %v482 = vld [vmem:[%s412] sm:$0xff]
        %vm483 = vcmask 261120
        %v485 = vsel %vm483, %v476, 0
        %487 = vmatprep.subr.mxu0 0.0
        %488 = vmatpush1.msra.mxu0 %v477
        %489 = vmatprep.subr.mxu0 0.0
        %490 = vmatpush1.msra.mxu0 %v478
        %491 = vmatprep.subr.mxu0 0.0
        %492 = vmatpush1.msra.mxu0 %v479
        %493 = vmatprep.subr.mxu0 0.0
        %494 = vmatpush1.msra.mxu0 %v480
        %495 = vmatprep.subr.mxu0 0.0
        %496 = vmatpush1.msra.mxu0 0.0
        %497 = vmatprep.subr.mxu0 0.0
        %498 = vmatpush1.msra.mxu0 0.0
        %499 = vmatprep.subr.mxu0 0.0
        %500 = vmatpush1.msra.mxu0 0.0
        %501 = vmatprep.subr.mxu0 0.0
        %502 = vmatpush1.msra.mxu0 0.0
        %503 = vmatprep.subr.mxu0 0.0
        %504 = vmatpush1.msra.mxu0 0.0
        %505 = vmatprep.subr.mxu0 0.0
        %506 = vmatpush1.msra.mxu0 0.0
        %507 = vmatprep.subr.mxu0 0.0
        %508 = vmatpush1.msra.mxu0 0.0
        %509 = vmatprep.subr.mxu0 0.0
        %510 = vmatpush1.msra.mxu0 0.0
        %511 = vmatprep.subr.mxu0 0.0
        %512 = vmatpush1.msra.mxu0 0.0
        %513 = vmatprep.subr.mxu0 0.0
        %514 = vmatpush1.msra.mxu0 0.0
        %515 = vmatprep.subr.mxu0 0.0
        %516 = vmatpush1.msra.mxu0 0.0
        %517 = vmatprep.subr.mxu0 0.0
        %518 = vmatpush1.msra.mxu0 0.0
        %519 = vmatprep.subr.mxu0 0.0
        %520 = vmatpush1.msra.mxu0 0.0
        %521 = vmatprep.subr.mxu0 0.0
        %522 = vmatpush1.msra.mxu0 0.0
        %523 = vmatprep.subr.mxu0 0.0
        %524 = vmatpush1.msra.mxu0 0.0
        %525 = vmatprep.subr.mxu0 0.0
        %526 = vmatpush1.msra.mxu0 0.0
        %527 = vmatprep.subr.mxu0 0.0
        %528 = vmatpush1.msra.mxu0 0.0
        %529 = vmatprep.subr.mxu0 0.0
        %530 = vmatpush1.msra.mxu0 0.0
        %531 = vmatprep.subr.mxu0 0.0
        %532 = vmatpush1.msra.mxu0 0.0
        %533 = vmatprep.subr.mxu0 0.0
        %534 = vmatpush1.msra.mxu0 0.0
        %535 = vmatprep.subr.mxu0 0.0
        %536 = vmatpush1.msra.mxu0 0.0
        %537 = vmatprep.subr.mxu0 0.0
        %538 = vmatpush1.msra.mxu0 0.0
        %539 = vmatprep.subr.mxu0 0.0
        %540 = vmatpush1.msra.mxu0 0.0
        %541 = vmatprep.subr.mxu0 0.0
        %542 = vmatpush1.msra.mxu0 0.0
        %543 = vmatprep.subr.mxu0 0.0
        %544 = vmatpush1.msra.mxu0 0.0
        %545 = vmatprep.subr.mxu0 0.0
        %546 = vmatpush1.msra.mxu0 0.0
        %547 = vmatprep.subr.mxu0 0.0
        %548 = vmatpush1.msra.mxu0 0.0
        %549 = vmatprep.subr.mxu0 0.0
        %550 = vmatpush1.msra.mxu0 0.0
        %551 = vmatprep.mubr.f32.mxu0 0.0
        %552 = vmatmul.mubr.f32.gmra.mrb[0].mxu0 %v485
        %v553 = vpop.f32.mrb[0].mxu0
        %v554 = vadd.f32 0.0, %v553
        %v555 = vpop.f32.mrb[0].mxu0
        %556 = vdwg.mxu0
        %561 = vrot.lane.b32.xlu0 %v477, 96
        %v562 = vpop.permute.xlu0 %561
        %563 = vrot.lane.b32.xlu0 %v478, 96
        %v564 = vpop.permute.xlu0 %563
        %565 = vrot.lane.b32.xlu0 %v479, 96
        %v566 = vpop.permute.xlu0 %565
        %567 = vrot.lane.b32.xlu0 %v480, 96
        %v568 = vpop.permute.xlu0 %567
        %v574 = vsel %vm483, %v481, 0
        %576 = vmatprep.subr.mxu0 0.0
        %577 = vmatpush1.msra.mxu0 %v562
        %578 = vmatprep.subr.mxu0 0.0
        %579 = vmatpush1.msra.mxu0 %v564
        %580 = vmatprep.subr.mxu0 0.0
        %581 = vmatpush1.msra.mxu0 %v566
        %582 = vmatprep.subr.mxu0 0.0
        %583 = vmatpush1.msra.mxu0 %v568
        %584 = vmatprep.subr.mxu0 0.0
        %585 = vmatpush1.msra.mxu0 0.0
        %586 = vmatprep.subr.mxu0 0.0
        %587 = vmatpush1.msra.mxu0 0.0
        %588 = vmatprep.subr.mxu0 0.0
        %589 = vmatpush1.msra.mxu0 0.0
        %590 = vmatprep.subr.mxu0 0.0
        %591 = vmatpush1.msra.mxu0 0.0
        %592 = vmatprep.subr.mxu0 0.0
        %593 = vmatpush1.msra.mxu0 0.0
        %594 = vmatprep.subr.mxu0 0.0
        %595 = vmatpush1.msra.mxu0 0.0
        %596 = vmatprep.subr.mxu0 0.0
        %597 = vmatpush1.msra.mxu0 0.0
        %598 = vmatprep.subr.mxu0 0.0
        %599 = vmatpush1.msra.mxu0 0.0
        %600 = vmatprep.subr.mxu0 0.0
        %601 = vmatpush1.msra.mxu0 0.0
        %602 = vmatprep.subr.mxu0 0.0
        %603 = vmatpush1.msra.mxu0 0.0
        %604 = vmatprep.subr.mxu0 0.0
        %605 = vmatpush1.msra.mxu0 0.0
        %606 = vmatprep.subr.mxu0 0.0
        %607 = vmatpush1.msra.mxu0 0.0
        %608 = vmatprep.subr.mxu0 0.0
        %609 = vmatpush1.msra.mxu0 0.0
        %610 = vmatprep.subr.mxu0 0.0
        %611 = vmatpush1.msra.mxu0 0.0
        %612 = vmatprep.subr.mxu0 0.0
        %613 = vmatpush1.msra.mxu0 0.0
        %614 = vmatprep.subr.mxu0 0.0
        %615 = vmatpush1.msra.mxu0 0.0
        %616 = vmatprep.subr.mxu0 0.0
        %617 = vmatpush1.msra.mxu0 0.0
        %618 = vmatprep.subr.mxu0 0.0
        %619 = vmatpush1.msra.mxu0 0.0
        %620 = vmatprep.subr.mxu0 0.0
        %621 = vmatpush1.msra.mxu0 0.0
        %622 = vmatprep.subr.mxu0 0.0
        %623 = vmatpush1.msra.mxu0 0.0
        %624 = vmatprep.subr.mxu0 0.0
        %625 = vmatpush1.msra.mxu0 0.0
        %626 = vmatprep.subr.mxu0 0.0
        %627 = vmatpush1.msra.mxu0 0.0
        %628 = vmatprep.subr.mxu0 0.0
        %629 = vmatpush1.msra.mxu0 0.0
        %630 = vmatprep.subr.mxu0 0.0
        %631 = vmatpush1.msra.mxu0 0.0
        %632 = vmatprep.subr.mxu0 0.0
        %633 = vmatpush1.msra.mxu0 0.0
        %634 = vmatprep.subr.mxu0 0.0
        %635 = vmatpush1.msra.mxu0 0.0
        %636 = vmatprep.subr.mxu0 0.0
        %637 = vmatpush1.msra.mxu0 0.0
        %638 = vmatprep.subr.mxu0 0.0
        %639 = vmatpush1.msra.mxu0 0.0
        %640 = vmatprep.mubr.f32.mxu0 0.0
        %641 = vmatmul.mubr.f32.gmra.mrb[0].mxu0 %v574
        %v642 = vpop.f32.mrb[0].mxu0
        %v643 = vadd.f32 0.0, %v642
        %v644 = vpop.f32.mrb[0].mxu0
        %645 = vdwg.mxu0
        %646 = vrot.lane.b32.xlu0 %v477, 64
        %v647 = vpop.permute.xlu0 %646
        %648 = vrot.lane.b32.xlu0 %v478, 64
        %v649 = vpop.permute.xlu0 %648
        %650 = vrot.lane.b32.xlu0 %v479, 64
        %v651 = vpop.permute.xlu0 %650
        %652 = vrot.lane.b32.xlu0 %v480, 64
        %v653 = vpop.permute.xlu0 %652
        %v659 = vsel %vm483, %v482, 0
        %661 = vmatprep.subr.mxu0 0.0
        %662 = vmatpush1.msra.mxu0 %v647
        %663 = vmatprep.subr.mxu0 0.0
        %664 = vmatpush1.msra.mxu0 %v649
        %665 = vmatprep.subr.mxu0 0.0
        %666 = vmatpush1.msra.mxu0 %v651
        %667 = vmatprep.subr.mxu0 0.0
        %668 = vmatpush1.msra.mxu0 %v653
        %669 = vmatprep.subr.mxu0 0.0
        %670 = vmatpush1.msra.mxu0 0.0
        %671 = vmatprep.subr.mxu0 0.0
        %672 = vmatpush1.msra.mxu0 0.0
        %673 = vmatprep.subr.mxu0 0.0
        %674 = vmatpush1.msra.mxu0 0.0
        %675 = vmatprep.subr.mxu0 0.0
        %676 = vmatpush1.msra.mxu0 0.0
        %677 = vmatprep.subr.mxu0 0.0
        %678 = vmatpush1.msra.mxu0 0.0
        %679 = vmatprep.subr.mxu0 0.0
        %680 = vmatpush1.msra.mxu0 0.0
        %681 = vmatprep.subr.mxu0 0.0
        %682 = vmatpush1.msra.mxu0 0.0
        %683 = vmatprep.subr.mxu0 0.0
        %684 = vmatpush1.msra.mxu0 0.0
        %685 = vmatprep.subr.mxu0 0.0
        %686 = vmatpush1.msra.mxu0 0.0
        %687 = vmatprep.subr.mxu0 0.0
        %688 = vmatpush1.msra.mxu0 0.0
        %689 = vmatprep.subr.mxu0 0.0
        %690 = vmatpush1.msra.mxu0 0.0
        %691 = vmatprep.subr.mxu0 0.0
        %692 = vmatpush1.msra.mxu0 0.0
        %693 = vmatprep.subr.mxu0 0.0
        %694 = vmatpush1.msra.mxu0 0.0
        %695 = vmatprep.subr.mxu0 0.0
        %696 = vmatpush1.msra.mxu0 0.0
        %697 = vmatprep.subr.mxu0 0.0
        %698 = vmatpush1.msra.mxu0 0.0
        %699 = vmatprep.subr.mxu0 0.0
        %700 = vmatpush1.msra.mxu0 0.0
        %701 = vmatprep.subr.mxu0 0.0
        %702 = vmatpush1.msra.mxu0 0.0
        %703 = vmatprep.subr.mxu0 0.0
        %704 = vmatpush1.msra.mxu0 0.0
        %705 = vmatprep.subr.mxu0 0.0
        %706 = vmatpush1.msra.mxu0 0.0
        %707 = vmatprep.subr.mxu0 0.0
        %708 = vmatpush1.msra.mxu0 0.0
        %709 = vmatprep.subr.mxu0 0.0
        %710 = vmatpush1.msra.mxu0 0.0
        %711 = vmatprep.subr.mxu0 0.0
        %712 = vmatpush1.msra.mxu0 0.0
        %713 = vmatprep.subr.mxu0 0.0
        %714 = vmatpush1.msra.mxu0 0.0
        %715 = vmatprep.subr.mxu0 0.0
        %716 = vmatpush1.msra.mxu0 0.0
        %717 = vmatprep.subr.mxu0 0.0
        %718 = vmatpush1.msra.mxu0 0.0
        %719 = vmatprep.subr.mxu0 0.0
        %720 = vmatpush1.msra.mxu0 0.0
        %721 = vmatprep.subr.mxu0 0.0
        %722 = vmatpush1.msra.mxu0 0.0
        %723 = vmatprep.subr.mxu0 0.0
        %724 = vmatpush1.msra.mxu0 0.0
        %725 = vmatprep.mubr.f32.mxu0 0.0
        %726 = vmatmul.mubr.f32.gmra.mrb[0].mxu0 %v659
        %v727 = vpop.f32.mrb[0].mxu0
        %v728 = vadd.f32 0.0, %v727
        %v729 = vpop.f32.mrb[0].mxu0
        %730 = vdwg.mxu0
        %vm731 = vcmask 64512
        %v733 = vsel %vm731, %v554, 0
        %v736 = vsel %vm731, %v643, 0
        %738 = vmatprep.subr.mxu0 0.0
        %739 = vmatpush1.xpose.msra.mxu0 %v736
        %740 = vmatprep.subr.mxu0 0.0
        %741 = vmatpush1.xpose.msra.mxu0 0.0
        %742 = vmatprep.subr.mxu0 0.0
        %743 = vmatpush1.xpose.msra.mxu0 0.0
        %744 = vmatprep.subr.mxu0 0.0
        %745 = vmatpush1.xpose.msra.mxu0 0.0
        %746 = vmatprep.subr.mxu0 0.0
        %747 = vmatpush1.xpose.msra.mxu0 0.0
        %748 = vmatprep.subr.mxu0 0.0
        %749 = vmatpush1.xpose.msra.mxu0 0.0
        %750 = vmatprep.subr.mxu0 0.0
        %751 = vmatpush1.xpose.msra.mxu0 0.0
        %752 = vmatprep.subr.mxu0 0.0
        %753 = vmatpush1.xpose.msra.mxu0 0.0
        %754 = vmatprep.subr.mxu0 0.0
        %755 = vmatpush1.xpose.msra.mxu0 0.0
        %756 = vmatprep.subr.mxu0 0.0
        %757 = vmatpush1.xpose.msra.mxu0 0.0
        %758 = vmatprep.subr.mxu0 0.0
        %759 = vmatpush1.xpose.msra.mxu0 0.0
        %760 = vmatprep.subr.mxu0 0.0
        %761 = vmatpush1.xpose.msra.mxu0 0.0
        %762 = vmatprep.subr.mxu0 0.0
        %763 = vmatpush1.xpose.msra.mxu0 0.0
        %764 = vmatprep.subr.mxu0 0.0
        %765 = vmatpush1.xpose.msra.mxu0 0.0
        %766 = vmatprep.subr.mxu0 0.0
        %767 = vmatpush1.xpose.msra.mxu0 0.0
        %768 = vmatprep.subr.mxu0 0.0
        %769 = vmatpush1.xpose.msra.mxu0 0.0
        %770 = vmatprep.subr.mxu0 0.0
        %771 = vmatpush1.xpose.msra.mxu0 0.0
        %772 = vmatprep.subr.mxu0 0.0
        %773 = vmatpush1.xpose.msra.mxu0 0.0
        %774 = vmatprep.subr.mxu0 0.0
        %775 = vmatpush1.xpose.msra.mxu0 0.0
        %776 = vmatprep.subr.mxu0 0.0
        %777 = vmatpush1.xpose.msra.mxu0 0.0
        %778 = vmatprep.subr.mxu0 0.0
        %779 = vmatpush1.xpose.msra.mxu0 0.0
        %780 = vmatprep.subr.mxu0 0.0
        %781 = vmatpush1.xpose.msra.mxu0 0.0
        %782 = vmatprep.subr.mxu0 0.0
        %783 = vmatpush1.xpose.msra.mxu0 0.0
        %784 = vmatprep.subr.mxu0 0.0
        %785 = vmatpush1.xpose.msra.mxu0 0.0
        %786 = vmatprep.subr.mxu0 0.0
        %787 = vmatpush1.xpose.msra.mxu0 0.0
        %788 = vmatprep.subr.mxu0 0.0
        %789 = vmatpush1.xpose.msra.mxu0 0.0
        %790 = vmatprep.subr.mxu0 0.0
        %791 = vmatpush1.xpose.msra.mxu0 0.0
        %792 = vmatprep.subr.mxu0 0.0
        %793 = vmatpush1.xpose.msra.mxu0 0.0
        %794 = vmatprep.subr.mxu0 0.0
        %795 = vmatpush1.xpose.msra.mxu0 0.0
        %796 = vmatprep.subr.mxu0 0.0
        %797 = vmatpush1.xpose.msra.mxu0 0.0
        %798 = vmatprep.subr.mxu0 0.0
        %799 = vmatpush1.xpose.msra.mxu0 0.0
        %800 = vmatprep.subr.mxu0 0.0
        %801 = vmatpush1.xpose.msra.mxu0 0.0
        %802 = vmatprep.mubr.f32.mxu0 0.0
        %803 = vmatmul.mubr.f32.gmra.mrb[0].mxu0 %v733
        %v804 = vpop.f32.mrb[0].mxu0
        %v805 = vadd.f32 0.0, %v804
        %v806 = vpop.f32.mrb[0].mxu0
        %807 = vdwg.mxu0
        %v808 = vsel %vm731, %v805, -inf
        %809 = vmax.xlane.f32.xlu0 %v808
        %v810 = vpop.xlane.xlu0 %809
        %v811 = vsub.f32 %v805, %v810
        %v812 = vmul.f32 %v811, 1.442695
        %v813 = vpow.pop %v812
        %v814 = vsel %vm731, %v813, 0.0
        %815 = vadd.xlane.f32.xlu0 %v814
        %v816 = vpop.xlane.xlu0 %815
        %v817 = vrcp.pop %v816
        %v818 = vmul.f32 %v813, %v817
        %819 = vst.msk [vmem:[%s475] sm:$0xff] %vm731, %v818
        %v821 = vsel %vm731, %v818, 0
        %823 = vmatprep.subr.mxu0 0.0
        %824 = vmatpush1.msra.mxu0 %v728
        %825 = vmatprep.subr.mxu0 0.0
        %826 = vmatpush1.msra.mxu0 0.0
        %827 = vmatprep.subr.mxu0 0.0
        %828 = vmatpush1.msra.mxu0 0.0
        %829 = vmatprep.subr.mxu0 0.0
        %830 = vmatpush1.msra.mxu0 0.0
        %831 = vmatprep.subr.mxu0 0.0
        %832 = vmatpush1.msra.mxu0 0.0
        %833 = vmatprep.subr.mxu0 0.0
        %834 = vmatpush1.msra.mxu0 0.0
        %835 = vmatprep.subr.mxu0 0.0
        %836 = vmatpush1.msra.mxu0 0.0
        %837 = vmatprep.subr.mxu0 0.0
        %838 = vmatpush1.msra.mxu0 0.0
        %839 = vmatprep.subr.mxu0 0.0
        %840 = vmatpush1.msra.mxu0 0.0
        %841 = vmatprep.subr.mxu0 0.0
        %842 = vmatpush1.msra.mxu0 0.0
        %843 = vmatprep.subr.mxu0 0.0
        %844 = vmatpush1.msra.mxu0 0.0
        %845 = vmatprep.subr.mxu0 0.0
        %846 = vmatpush1.msra.mxu0 0.0
        %847 = vmatprep.subr.mxu0 0.0
        %848 = vmatpush1.msra.mxu0 0.0
        %849 = vmatprep.subr.mxu0 0.0
        %850 = vmatpush1.msra.mxu0 0.0
        %851 = vmatprep.subr.mxu0 0.0
        %852 = vmatpush1.msra.mxu0 0.0
        %853 = vmatprep.subr.mxu0 0.0
        %854 = vmatpush1.msra.mxu0 0.0
        %855 = vmatprep.subr.mxu0 0.0
        %856 = vmatpush1.msra.mxu0 0.0
        %857 = vmatprep.subr.mxu0 0.0
        %858 = vmatpush1.msra.mxu0 0.0
        %859 = vmatprep.subr.mxu0 0.0
        %860 = vmatpush1.msra.mxu0 0.0
        %861 = vmatprep.subr.mxu0 0.0
        %862 = vmatpush1.msra.mxu0 0.0
        %863 = vmatprep.subr.mxu0 0.0
        %864 = vmatpush1.msra.mxu0 0.0
        %865 = vmatprep.subr.mxu0 0.0
        %866 = vmatpush1.msra.mxu0 0.0
        %867 = vmatprep.subr.mxu0 0.0
        %868 = vmatpush1.msra.mxu0 0.0
        %869 = vmatprep.subr.mxu0 0.0
        %870 = vmatpush1.msra.mxu0 0.0
        %871 = vmatprep.subr.mxu0 0.0
        %872 = vmatpush1.msra.mxu0 0.0
        %873 = vmatprep.subr.mxu0 0.0
        %874 = vmatpush1.msra.mxu0 0.0
        %875 = vmatprep.subr.mxu0 0.0
        %876 = vmatpush1.msra.mxu0 0.0
        %877 = vmatprep.subr.mxu0 0.0
        %878 = vmatpush1.msra.mxu0 0.0
        %879 = vmatprep.subr.mxu0 0.0
        %880 = vmatpush1.msra.mxu0 0.0
        %881 = vmatprep.subr.mxu0 0.0
        %882 = vmatpush1.msra.mxu0 0.0
        %883 = vmatprep.subr.mxu0 0.0
        %884 = vmatpush1.msra.mxu0 0.0
        %885 = vmatprep.subr.mxu0 0.0
        %886 = vmatpush1.msra.mxu0 0.0
        %887 = vmatprep.mubr.f32.mxu0 0.0
        %888 = vmatmul.mubr.f32.gmra.mrb[0].mxu0 %v821
        %v889 = vpop.f32.mrb[0].mxu0
        %v890 = vadd.f32 0.0, %v889
        %v891 = vpop.f32.mrb[0].mxu0
        %892 = vdwg.mxu0
        %893 = vst.msk [vmem:[#allocation2] sm:$0xff] %vm731, %v890
        %894 = vrot.lane.b32.xlu0 %v554, 120
        %v895 = vpop.permute.xlu0 %894
        %896 = vrot.lane.b32.xlu0 %v643, 120
        %v897 = vpop.permute.xlu0 %896
        %v898 = vsel %vm731, %v895, 0
        %v900 = vsel %vm731, %v897, 0
        %902 = vmatprep.subr.mxu0 0.0
        %903 = vmatpush1.xpose.msra.mxu0 %v900
        %904 = vmatprep.subr.mxu0 0.0
        %905 = vmatpush1.xpose.msra.mxu0 0.0
        %906 = vmatprep.subr.mxu0 0.0
        %907 = vmatpush1.xpose.msra.mxu0 0.0
        %908 = vmatprep.subr.mxu0 0.0
        %909 = vmatpush1.xpose.msra.mxu0 0.0
        %910 = vmatprep.subr.mxu0 0.0
        %911 = vmatpush1.xpose.msra.mxu0 0.0
        %912 = vmatprep.subr.mxu0 0.0
        %913 = vmatpush1.xpose.msra.mxu0 0.0
        %914 = vmatprep.subr.mxu0 0.0
        %915 = vmatpush1.xpose.msra.mxu0 0.0
        %916 = vmatprep.subr.mxu0 0.0
        %917 = vmatpush1.xpose.msra.mxu0 0.0
        %918 = vmatprep.subr.mxu0 0.0
        %919 = vmatpush1.xpose.msra.mxu0 0.0
        %920 = vmatprep.subr.mxu0 0.0
        %921 = vmatpush1.xpose.msra.mxu0 0.0
        %922 = vmatprep.subr.mxu0 0.0
        %923 = vmatpush1.xpose.msra.mxu0 0.0
        %924 = vmatprep.subr.mxu0 0.0
        %925 = vmatpush1.xpose.msra.mxu0 0.0
        %926 = vmatprep.subr.mxu0 0.0
        %927 = vmatpush1.xpose.msra.mxu0 0.0
        %928 = vmatprep.subr.mxu0 0.0
        %929 = vmatpush1.xpose.msra.mxu0 0.0
        %930 = vmatprep.subr.mxu0 0.0
        %931 = vmatpush1.xpose.msra.mxu0 0.0
        %932 = vmatprep.subr.mxu0 0.0
        %933 = vmatpush1.xpose.msra.mxu0 0.0
        %934 = vmatprep.subr.mxu0 0.0
        %935 = vmatpush1.xpose.msra.mxu0 0.0
        %936 = vmatprep.subr.mxu0 0.0
        %937 = vmatpush1.xpose.msra.mxu0 0.0
        %938 = vmatprep.subr.mxu0 0.0
        %939 = vmatpush1.xpose.msra.mxu0 0.0
        %940 = vmatprep.subr.mxu0 0.0
        %941 = vmatpush1.xpose.msra.mxu0 0.0
        %942 = vmatprep.subr.mxu0 0.0
        %943 = vmatpush1.xpose.msra.mxu0 0.0
        %944 = vmatprep.subr.mxu0 0.0
        %945 = vmatpush1.xpose.msra.mxu0 0.0
        %946 = vmatprep.subr.mxu0 0.0
        %947 = vmatpush1.xpose.msra.mxu0 0.0
        %948 = vmatprep.subr.mxu0 0.0
        %949 = vmatpush1.xpose.msra.mxu0 0.0
        %950 = vmatprep.subr.mxu0 0.0
        %951 = vmatpush1.xpose.msra.mxu0 0.0
        %952 = vmatprep.subr.mxu0 0.0
        %953 = vmatpush1.xpose.msra.mxu0 0.0
        %954 = vmatprep.subr.mxu0 0.0
        %955 = vmatpush1.xpose.msra.mxu0 0.0
        %956 = vmatprep.subr.mxu0 0.0
        %957 = vmatpush1.xpose.msra.mxu0 0.0
        %958 = vmatprep.subr.mxu0 0.0
        %959 = vmatpush1.xpose.msra.mxu0 0.0
        %960 = vmatprep.subr.mxu0 0.0
        %961 = vmatpush1.xpose.msra.mxu0 0.0
        %962 = vmatprep.subr.mxu0 0.0
        %963 = vmatpush1.xpose.msra.mxu0 0.0
        %964 = vmatprep.subr.mxu0 0.0
        %965 = vmatpush1.xpose.msra.mxu0 0.0
        %966 = vmatprep.mubr.f32.mxu0 0.0
        %967 = vmatmul.mubr.f32.gmra.mrb[0].mxu0 %v898
        %v968 = vpop.f32.mrb[0].mxu0
        %v969 = vadd.f32 0.0, %v968
        %v970 = vpop.f32.mrb[0].mxu0
        %971 = vdwg.mxu0
        %v972 = vsel %vm731, %v969, -inf
        %973 = vmax.xlane.f32.xlu0 %v972
        %v974 = vpop.xlane.xlu0 %973
        %v975 = vsub.f32 %v969, %v974
        %v976 = vmul.f32 %v975, 1.442695
        %v977 = vpow.pop %v976
        %v978 = vsel %vm731, %v977, 0.0
        %979 = vadd.xlane.f32.xlu0 %v978
        %v980 = vpop.xlane.xlu0 %979
        %v981 = vrcp.pop %v980
        %v982 = vmul.f32 %v977, %v981
        %s983 = scalar_lea.vmem %s475, 8 [#allocation16]
        %984 = vst.msk [vmem:[%s983] sm:$0xff] %vm731, %v982
        %986 = vrot.lane.b32.xlu0 %v728, 120
        %v987 = vpop.permute.xlu0 %986
        %v990 = vsel %vm731, %v982, 0
        %992 = vmatprep.subr.mxu0 0.0
        %993 = vmatpush1.msra.mxu0 %v987
        %994 = vmatprep.subr.mxu0 0.0
        %995 = vmatpush1.msra.mxu0 0.0
        %996 = vmatprep.subr.mxu0 0.0
        %997 = vmatpush1.msra.mxu0 0.0
        %998 = vmatprep.subr.mxu0 0.0
        %999 = vmatpush1.msra.mxu0 0.0
        %1000 = vmatprep.subr.mxu0 0.0
        %1001 = vmatpush1.msra.mxu0 0.0
        %1002 = vmatprep.subr.mxu0 0.0
        %1003 = vmatpush1.msra.mxu0 0.0
        %1004 = vmatprep.subr.mxu0 0.0
        %1005 = vmatpush1.msra.mxu0 0.0
        %1006 = vmatprep.subr.mxu0 0.0
        %1007 = vmatpush1.msra.mxu0 0.0
        %1008 = vmatprep.subr.mxu0 0.0
        %1009 = vmatpush1.msra.mxu0 0.0
        %1010 = vmatprep.subr.mxu0 0.0
        %1011 = vmatpush1.msra.mxu0 0.0
        %1012 = vmatprep.subr.mxu0 0.0
        %1013 = vmatpush1.msra.mxu0 0.0
        %1014 = vmatprep.subr.mxu0 0.0
        %1015 = vmatpush1.msra.mxu0 0.0
        %1016 = vmatprep.subr.mxu0 0.0
        %1017 = vmatpush1.msra.mxu0 0.0
        %1018 = vmatprep.subr.mxu0 0.0
        %1019 = vmatpush1.msra.mxu0 0.0
        %1020 = vmatprep.subr.mxu0 0.0
        %1021 = vmatpush1.msra.mxu0 0.0
        %1022 = vmatprep.subr.mxu0 0.0
        %1023 = vmatpush1.msra.mxu0 0.0
        %1024 = vmatprep.subr.mxu0 0.0
        %1025 = vmatpush1.msra.mxu0 0.0
        %1026 = vmatprep.subr.mxu0 0.0
        %1027 = vmatpush1.msra.mxu0 0.0
        %1028 = vmatprep.subr.mxu0 0.0
        %1029 = vmatpush1.msra.mxu0 0.0
        %1030 = vmatprep.subr.mxu0 0.0
        %1031 = vmatpush1.msra.mxu0 0.0
        %1032 = vmatprep.subr.mxu0 0.0
        %1033 = vmatpush1.msra.mxu0 0.0
        %1034 = vmatprep.subr.mxu0 0.0
        %1035 = vmatpush1.msra.mxu0 0.0
        %1036 = vmatprep.subr.mxu0 0.0
        %1037 = vmatpush1.msra.mxu0 0.0
        %1038 = vmatprep.subr.mxu0 0.0
        %1039 = vmatpush1.msra.mxu0 0.0
        %1040 = vmatprep.subr.mxu0 0.0
        %1041 = vmatpush1.msra.mxu0 0.0
        %1042 = vmatprep.subr.mxu0 0.0
        %1043 = vmatpush1.msra.mxu0 0.0
        %1044 = vmatprep.subr.mxu0 0.0
        %1045 = vmatpush1.msra.mxu0 0.0
        %1046 = vmatprep.subr.mxu0 0.0
        %1047 = vmatpush1.msra.mxu0 0.0
        %1048 = vmatprep.subr.mxu0 0.0
        %1049 = vmatpush1.msra.mxu0 0.0
        %1050 = vmatprep.subr.mxu0 0.0
        %1051 = vmatpush1.msra.mxu0 0.0
        %1052 = vmatprep.subr.mxu0 0.0
        %1053 = vmatpush1.msra.mxu0 0.0
        %1054 = vmatprep.subr.mxu0 0.0
        %1055 = vmatpush1.msra.mxu0 0.0
        %1056 = vmatprep.mubr.f32.mxu0 0.0
        %1057 = vmatmul.mubr.f32.gmra.mrb[0].mxu0 %v990
        %v1058 = vpop.f32.mrb[0].mxu0
        %v1059 = vadd.f32 0.0, %v1058
        %v1060 = vpop.f32.mrb[0].mxu0
        %1061 = vdwg.mxu0
        %1063 = vrot.lane.b32.xlu0 %v1059, 8
        %v1064 = vpop.permute.xlu0 %1063
        %vm1066 = vcmask 130112
        %1067 = vst.msk [vmem:[#allocation2] sm:$0xff] %vm1066, %v1064
        %1068 = vrot.lane.b32.xlu0 %v554, 112
        %v1069 = vpop.permute.xlu0 %1068
        %1070 = vrot.lane.b32.xlu0 %v643, 112
        %v1071 = vpop.permute.xlu0 %1070
        %v1072 = vsel %vm731, %v1069, 0
        %v1074 = vsel %vm731, %v1071, 0
        %1076 = vmatprep.subr.mxu0 0.0
        %1077 = vmatpush1.xpose.msra.mxu0 %v1074
        %1078 = vmatprep.subr.mxu0 0.0
        %1079 = vmatpush1.xpose.msra.mxu0 0.0
        %1080 = vmatprep.subr.mxu0 0.0
        %1081 = vmatpush1.xpose.msra.mxu0 0.0
        %1082 = vmatprep.subr.mxu0 0.0
        %1083 = vmatpush1.xpose.msra.mxu0 0.0
        %1084 = vmatprep.subr.mxu0 0.0
        %1085 = vmatpush1.xpose.msra.mxu0 0.0
        %1086 = vmatprep.subr.mxu0 0.0
        %1087 = vmatpush1.xpose.msra.mxu0 0.0
        %1088 = vmatprep.subr.mxu0 0.0
        %1089 = vmatpush1.xpose.msra.mxu0 0.0
        %1090 = vmatprep.subr.mxu0 0.0
        %1091 = vmatpush1.xpose.msra.mxu0 0.0
        %1092 = vmatprep.subr.mxu0 0.0
        %1093 = vmatpush1.xpose.msra.mxu0 0.0
        %1094 = vmatprep.subr.mxu0 0.0
        %1095 = vmatpush1.xpose.msra.mxu0 0.0
        %1096 = vmatprep.subr.mxu0 0.0
        %1097 = vmatpush1.xpose.msra.mxu0 0.0
        %1098 = vmatprep.subr.mxu0 0.0
        %1099 = vmatpush1.xpose.msra.mxu0 0.0
        %1100 = vmatprep.subr.mxu0 0.0
        %1101 = vmatpush1.xpose.msra.mxu0 0.0
        %1102 = vmatprep.subr.mxu0 0.0
        %1103 = vmatpush1.xpose.msra.mxu0 0.0
        %1104 = vmatprep.subr.mxu0 0.0
        %1105 = vmatpush1.xpose.msra.mxu0 0.0
        %1106 = vmatprep.subr.mxu0 0.0
        %1107 = vmatpush1.xpose.msra.mxu0 0.0
        %1108 = vmatprep.subr.mxu0 0.0
        %1109 = vmatpush1.xpose.msra.mxu0 0.0
        %1110 = vmatprep.subr.mxu0 0.0
        %1111 = vmatpush1.xpose.msra.mxu0 0.0
        %1112 = vmatprep.subr.mxu0 0.0
        %1113 = vmatpush1.xpose.msra.mxu0 0.0
        %1114 = vmatprep.subr.mxu0 0.0
        %1115 = vmatpush1.xpose.msra.mxu0 0.0
        %1116 = vmatprep.subr.mxu0 0.0
        %1117 = vmatpush1.xpose.msra.mxu0 0.0
        %1118 = vmatprep.subr.mxu0 0.0
        %1119 = vmatpush1.xpose.msra.mxu0 0.0
        %1120 = vmatprep.subr.mxu0 0.0
        %1121 = vmatpush1.xpose.msra.mxu0 0.0
        %1122 = vmatprep.subr.mxu0 0.0
        %1123 = vmatpush1.xpose.msra.mxu0 0.0
        %1124 = vmatprep.subr.mxu0 0.0
        %1125 = vmatpush1.xpose.msra.mxu0 0.0
        %1126 = vmatprep.subr.mxu0 0.0
        %1127 = vmatpush1.xpose.msra.mxu0 0.0
        %1128 = vmatprep.subr.mxu0 0.0
        %1129 = vmatpush1.xpose.msra.mxu0 0.0
        %1130 = vmatprep.subr.mxu0 0.0
        %1131 = vmatpush1.xpose.msra.mxu0 0.0
        %1132 = vmatprep.subr.mxu0 0.0
        %1133 = vmatpush1.xpose.msra.mxu0 0.0
        %1134 = vmatprep.subr.mxu0 0.0
        %1135 = vmatpush1.xpose.msra.mxu0 0.0
        %1136 = vmatprep.subr.mxu0 0.0
        %1137 = vmatpush1.xpose.msra.mxu0 0.0
        %1138 = vmatprep.subr.mxu0 0.0
        %1139 = vmatpush1.xpose.msra.mxu0 0.0
        %1140 = vmatprep.mubr.f32.mxu0 0.0
        %1141 = vmatmul.mubr.f32.gmra.mrb[0].mxu0 %v1072
        %v1142 = vpop.f32.mrb[0].mxu0
        %v1143 = vadd.f32 0.0, %v1142
        %v1144 = vpop.f32.mrb[0].mxu0
        %1145 = vdwg.mxu0
        %v1146 = vsel %vm731, %v1143, -inf
        %1147 = vmax.xlane.f32.xlu0 %v1146
        %v1148 = vpop.xlane.xlu0 %1147
        %v1149 = vsub.f32 %v1143, %v1148
        %v1150 = vmul.f32 %v1149, 1.442695
        %v1151 = vpow.pop %v1150
        %v1152 = vsel %vm731, %v1151, 0.0
        %1153 = vadd.xlane.f32.xlu0 %v1152
        %v1154 = vpop.xlane.xlu0 %1153
        %v1155 = vrcp.pop %v1154
        %v1156 = vmul.f32 %v1151, %v1155
        %s1157 = scalar_lea.vmem %s475, 16 [#allocation16]
        %1158 = vst.msk [vmem:[%s1157] sm:$0xff] %vm731, %v1156
        %1159 = vrot.lane.b32.xlu0 %v728, 112
        %v1160 = vpop.permute.xlu0 %1159
        %v1163 = vsel %vm731, %v1156, 0
        %1165 = vmatprep.subr.mxu0 0.0
        %1166 = vmatpush1.msra.mxu0 %v1160
        %1167 = vmatprep.subr.mxu0 0.0
        %1168 = vmatpush1.msra.mxu0 0.0
        %1169 = vmatprep.subr.mxu0 0.0
        %1170 = vmatpush1.msra.mxu0 0.0
        %1171 = vmatprep.subr.mxu0 0.0
        %1172 = vmatpush1.msra.mxu0 0.0
        %1173 = vmatprep.subr.mxu0 0.0
        %1174 = vmatpush1.msra.mxu0 0.0
        %1175 = vmatprep.subr.mxu0 0.0
        %1176 = vmatpush1.msra.mxu0 0.0
        %1177 = vmatprep.subr.mxu0 0.0
        %1178 = vmatpush1.msra.mxu0 0.0
        %1179 = vmatprep.subr.mxu0 0.0
        %1180 = vmatpush1.msra.mxu0 0.0
        %1181 = vmatprep.subr.mxu0 0.0
        %1182 = vmatpush1.msra.mxu0 0.0
        %1183 = vmatprep.subr.mxu0 0.0
        %1184 = vmatpush1.msra.mxu0 0.0
        %1185 = vmatprep.subr.mxu0 0.0
        %1186 = vmatpush1.msra.mxu0 0.0
        %1187 = vmatprep.subr.mxu0 0.0
        %1188 = vmatpush1.msra.mxu0 0.0
        %1189 = vmatprep.subr.mxu0 0.0
        %1190 = vmatpush1.msra.mxu0 0.0
        %1191 = vmatprep.subr.mxu0 0.0
        %1192 = vmatpush1.msra.mxu0 0.0
        %1193 = vmatprep.subr.mxu0 0.0
        %1194 = vmatpush1.msra.mxu0 0.0
        %1195 = vmatprep.subr.mxu0 0.0
        %1196 = vmatpush1.msra.mxu0 0.0
        %1197 = vmatprep.subr.mxu0 0.0
        %1198 = vmatpush1.msra.mxu0 0.0
        %1199 = vmatprep.subr.mxu0 0.0
        %1200 = vmatpush1.msra.mxu0 0.0
        %1201 = vmatprep.subr.mxu0 0.0
        %1202 = vmatpush1.msra.mxu0 0.0
        %1203 = vmatprep.subr.mxu0 0.0
        %1204 = vmatpush1.msra.mxu0 0.0
        %1205 = vmatprep.subr.mxu0 0.0
        %1206 = vmatpush1.msra.mxu0 0.0
        %1207 = vmatprep.subr.mxu0 0.0
        %1208 = vmatpush1.msra.mxu0 0.0
        %1209 = vmatprep.subr.mxu0 0.0
        %1210 = vmatpush1.msra.mxu0 0.0
        %1211 = vmatprep.subr.mxu0 0.0
        %1212 = vmatpush1.msra.mxu0 0.0
        %1213 = vmatprep.subr.mxu0 0.0
        %1214 = vmatpush1.msra.mxu0 0.0
        %1215 = vmatprep.subr.mxu0 0.0
        %1216 = vmatpush1.msra.mxu0 0.0
        %1217 = vmatprep.subr.mxu0 0.0
        %1218 = vmatpush1.msra.mxu0 0.0
        %1219 = vmatprep.subr.mxu0 0.0
        %1220 = vmatpush1.msra.mxu0 0.0
        %1221 = vmatprep.subr.mxu0 0.0
        %1222 = vmatpush1.msra.mxu0 0.0
        %1223 = vmatprep.subr.mxu0 0.0
        %1224 = vmatpush1.msra.mxu0 0.0
        %1225 = vmatprep.subr.mxu0 0.0
        %1226 = vmatpush1.msra.mxu0 0.0
        %1227 = vmatprep.subr.mxu0 0.0
        %1228 = vmatpush1.msra.mxu0 0.0
        %1229 = vmatprep.mubr.f32.mxu0 0.0
        %1230 = vmatmul.mubr.f32.gmra.mrb[0].mxu0 %v1163
        %v1231 = vpop.f32.mrb[0].mxu0
        %v1232 = vadd.f32 0.0, %v1231
        %v1233 = vpop.f32.mrb[0].mxu0
        %1234 = vdwg.mxu0
        %1236 = vrot.lane.b32.xlu0 %v1232, 16
        %v1237 = vpop.permute.xlu0 %1236
        %vm1239 = vcmask 195712
        %1240 = vst.msk [vmem:[#allocation2] sm:$0xff] %vm1239, %v1237
        %1241 = vrot.lane.b32.xlu0 %v554, 104
        %v1242 = vpop.permute.xlu0 %1241
        %1243 = vrot.lane.b32.xlu0 %v643, 104
        %v1244 = vpop.permute.xlu0 %1243
        %v1245 = vsel %vm731, %v1242, 0
        %v1247 = vsel %vm731, %v1244, 0
        %1249 = vmatprep.subr.mxu0 0.0
        %1250 = vmatpush1.xpose.msra.mxu0 %v1247
        %1251 = vmatprep.subr.mxu0 0.0
        %1252 = vmatpush1.xpose.msra.mxu0 0.0
        %1253 = vmatprep.subr.mxu0 0.0
        %1254 = vmatpush1.xpose.msra.mxu0 0.0
        %1255 = vmatprep.subr.mxu0 0.0
        %1256 = vmatpush1.xpose.msra.mxu0 0.0
        %1257 = vmatprep.subr.mxu0 0.0
        %1258 = vmatpush1.xpose.msra.mxu0 0.0
        %1259 = vmatprep.subr.mxu0 0.0
        %1260 = vmatpush1.xpose.msra.mxu0 0.0
        %1261 = vmatprep.subr.mxu0 0.0
        %1262 = vmatpush1.xpose.msra.mxu0 0.0
        %1263 = vmatprep.subr.mxu0 0.0
        %1264 = vmatpush1.xpose.msra.mxu0 0.0
        %1265 = vmatprep.subr.mxu0 0.0
        %1266 = vmatpush1.xpose.msra.mxu0 0.0
        %1267 = vmatprep.subr.mxu0 0.0
        %1268 = vmatpush1.xpose.msra.mxu0 0.0
        %1269 = vmatprep.subr.mxu0 0.0
        %1270 = vmatpush1.xpose.msra.mxu0 0.0
        %1271 = vmatprep.subr.mxu0 0.0
        %1272 = vmatpush1.xpose.msra.mxu0 0.0
        %1273 = vmatprep.subr.mxu0 0.0
        %1274 = vmatpush1.xpose.msra.mxu0 0.0
        %1275 = vmatprep.subr.mxu0 0.0
        %1276 = vmatpush1.xpose.msra.mxu0 0.0
        %1277 = vmatprep.subr.mxu0 0.0
        %1278 = vmatpush1.xpose.msra.mxu0 0.0
        %1279 = vmatprep.subr.mxu0 0.0
        %1280 = vmatpush1.xpose.msra.mxu0 0.0
        %1281 = vmatprep.subr.mxu0 0.0
        %1282 = vmatpush1.xpose.msra.mxu0 0.0
        %1283 = vmatprep.subr.mxu0 0.0
        %1284 = vmatpush1.xpose.msra.mxu0 0.0
        %1285 = vmatprep.subr.mxu0 0.0
        %1286 = vmatpush1.xpose.msra.mxu0 0.0
        %1287 = vmatprep.subr.mxu0 0.0
        %1288 = vmatpush1.xpose.msra.mxu0 0.0
        %1289 = vmatprep.subr.mxu0 0.0
        %1290 = vmatpush1.xpose.msra.mxu0 0.0
        %1291 = vmatprep.subr.mxu0 0.0
        %1292 = vmatpush1.xpose.msra.mxu0 0.0
        %1293 = vmatprep.subr.mxu0 0.0
        %1294 = vmatpush1.xpose.msra.mxu0 0.0
        %1295 = vmatprep.subr.mxu0 0.0
        %1296 = vmatpush1.xpose.msra.mxu0 0.0
        %1297 = vmatprep.subr.mxu0 0.0
        %1298 = vmatpush1.xpose.msra.mxu0 0.0
        %1299 = vmatprep.subr.mxu0 0.0
        %1300 = vmatpush1.xpose.msra.mxu0 0.0
        %1301 = vmatprep.subr.mxu0 0.0
        %1302 = vmatpush1.xpose.msra.mxu0 0.0
        %1303 = vmatprep.subr.mxu0 0.0
        %1304 = vmatpush1.xpose.msra.mxu0 0.0
        %1305 = vmatprep.subr.mxu0 0.0
        %1306 = vmatpush1.xpose.msra.mxu0 0.0
        %1307 = vmatprep.subr.mxu0 0.0
        %1308 = vmatpush1.xpose.msra.mxu0 0.0
        %1309 = vmatprep.subr.mxu0 0.0
        %1310 = vmatpush1.xpose.msra.mxu0 0.0
        %1311 = vmatprep.subr.mxu0 0.0
        %1312 = vmatpush1.xpose.msra.mxu0 0.0
        %1313 = vmatprep.mubr.f32.mxu0 0.0
        %1314 = vmatmul.mubr.f32.gmra.mrb[0].mxu0 %v1245
        %v1315 = vpop.f32.mrb[0].mxu0
        %v1316 = vadd.f32 0.0, %v1315
        %v1317 = vpop.f32.mrb[0].mxu0
        %1318 = vdwg.mxu0
        %v1319 = vsel %vm731, %v1316, -inf
        %1320 = vmax.xlane.f32.xlu0 %v1319
        %v1321 = vpop.xlane.xlu0 %1320
        %v1322 = vsub.f32 %v1316, %v1321
        %v1323 = vmul.f32 %v1322, 1.442695
        %v1324 = vpow.pop %v1323
        %v1325 = vsel %vm731, %v1324, 0.0
        %1326 = vadd.xlane.f32.xlu0 %v1325
        %v1327 = vpop.xlane.xlu0 %1326
        %v1328 = vrcp.pop %v1327
        %v1329 = vmul.f32 %v1324, %v1328
        %s1330 = scalar_lea.vmem %s475, 24 [#allocation16]
        %1331 = vst.msk [vmem:[%s1330] sm:$0xff] %vm731, %v1329
        %1332 = vrot.lane.b32.xlu0 %v728, 104
        %v1333 = vpop.permute.xlu0 %1332
        %v1336 = vsel %vm731, %v1329, 0
        %1338 = vmatprep.subr.mxu0 0.0
        %1339 = vmatpush1.msra.mxu0 %v1333
        %1340 = vmatprep.subr.mxu0 0.0
        %1341 = vmatpush1.msra.mxu0 0.0
        %1342 = vmatprep.subr.mxu0 0.0
        %1343 = vmatpush1.msra.mxu0 0.0
        %1344 = vmatprep.subr.mxu0 0.0
        %1345 = vmatpush1.msra.mxu0 0.0
        %1346 = vmatprep.subr.mxu0 0.0
        %1347 = vmatpush1.msra.mxu0 0.0
        %1348 = vmatprep.subr.mxu0 0.0
        %1349 = vmatpush1.msra.mxu0 0.0
        %1350 = vmatprep.subr.mxu0 0.0
        %1351 = vmatpush1.msra.mxu0 0.0
        %1352 = vmatprep.subr.mxu0 0.0
        %1353 = vmatpush1.msra.mxu0 0.0
        %1354 = vmatprep.subr.mxu0 0.0
        %1355 = vmatpush1.msra.mxu0 0.0
        %1356 = vmatprep.subr.mxu0 0.0
        %1357 = vmatpush1.msra.mxu0 0.0
        %1358 = vmatprep.subr.mxu0 0.0
        %1359 = vmatpush1.msra.mxu0 0.0
        %1360 = vmatprep.subr.mxu0 0.0
        %1361 = vmatpush1.msra.mxu0 0.0
        %1362 = vmatprep.subr.mxu0 0.0
        %1363 = vmatpush1.msra.mxu0 0.0
        %1364 = vmatprep.subr.mxu0 0.0
        %1365 = vmatpush1.msra.mxu0 0.0
        %1366 = vmatprep.subr.mxu0 0.0
        %1367 = vmatpush1.msra.mxu0 0.0
        %1368 = vmatprep.subr.mxu0 0.0
        %1369 = vmatpush1.msra.mxu0 0.0
        %1370 = vmatprep.subr.mxu0 0.0
        %1371 = vmatpush1.msra.mxu0 0.0
        %1372 = vmatprep.subr.mxu0 0.0
        %1373 = vmatpush1.msra.mxu0 0.0
        %1374 = vmatprep.subr.mxu0 0.0
        %1375 = vmatpush1.msra.mxu0 0.0
        %1376 = vmatprep.subr.mxu0 0.0
        %1377 = vmatpush1.msra.mxu0 0.0
        %1378 = vmatprep.subr.mxu0 0.0
        %1379 = vmatpush1.msra.mxu0 0.0
        %1380 = vmatprep.subr.mxu0 0.0
        %1381 = vmatpush1.msra.mxu0 0.0
        %1382 = vmatprep.subr.mxu0 0.0
        %1383 = vmatpush1.msra.mxu0 0.0
        %1384 = vmatprep.subr.mxu0 0.0
        %1385 = vmatpush1.msra.mxu0 0.0
        %1386 = vmatprep.subr.mxu0 0.0
        %1387 = vmatpush1.msra.mxu0 0.0
        %1388 = vmatprep.subr.mxu0 0.0
        %1389 = vmatpush1.msra.mxu0 0.0
        %1390 = vmatprep.subr.mxu0 0.0
        %1391 = vmatpush1.msra.mxu0 0.0
        %1392 = vmatprep.subr.mxu0 0.0
        %1393 = vmatpush1.msra.mxu0 0.0
        %1394 = vmatprep.subr.mxu0 0.0
        %1395 = vmatpush1.msra.mxu0 0.0
        %1396 = vmatprep.subr.mxu0 0.0
        %1397 = vmatpush1.msra.mxu0 0.0
        %1398 = vmatprep.subr.mxu0 0.0
        %1399 = vmatpush1.msra.mxu0 0.0
        %1400 = vmatprep.subr.mxu0 0.0
        %1401 = vmatpush1.msra.mxu0 0.0
        %1402 = vmatprep.mubr.f32.mxu0 0.0
        %1403 = vmatmul.mubr.f32.gmra.mrb[0].mxu0 %v1336
        %v1404 = vpop.f32.mrb[0].mxu0
        %v1405 = vadd.f32 0.0, %v1404
        %v1406 = vpop.f32.mrb[0].mxu0
        %1407 = vdwg.mxu0
        %1409 = vrot.lane.b32.xlu0 %v1405, 24
        %v1410 = vpop.permute.xlu0 %1409
        %vm1412 = vcmask 261312
        %1413 = vst.msk [vmem:[#allocation2] sm:$0xff] %vm1412, %v1410
        %v1414 = vld [vmem:[#allocation2] sm:$0xff]
        %v1415 = vld [vmem:[#allocation11] sm:$0xff]
        %v1416 = vld [vmem:[#allocation11 + $0x8] sm:$0xff]
        %v1417 = vld [vmem:[#allocation11 + $0x10] sm:$0xff]
        %v1418 = vld [vmem:[#allocation11 + $0x18] sm:$0xff]
        %v1420 = vsel %vm483, %v1414, 0
        %1422 = vmatprep.subr.mxu0 0.0
        %1423 = vmatpush1.msra.mxu0 %v1415
        %1424 = vmatprep.subr.mxu0 0.0
        %1425 = vmatpush1.msra.mxu0 %v1416
        %1426 = vmatprep.subr.mxu0 0.0
        %1427 = vmatpush1.msra.mxu0 %v1417
        %1428 = vmatprep.subr.mxu0 0.0
        %1429 = vmatpush1.msra.mxu0 %v1418
        %1430 = vmatprep.subr.mxu0 0.0
        %1431 = vmatpush1.msra.mxu0 0.0
        %1432 = vmatprep.subr.mxu0 0.0
        %1433 = vmatpush1.msra.mxu0 0.0
        %1434 = vmatprep.subr.mxu0 0.0
        %1435 = vmatpush1.msra.mxu0 0.0
        %1436 = vmatprep.subr.mxu0 0.0
        %1437 = vmatpush1.msra.mxu0 0.0
        %1438 = vmatprep.subr.mxu0 0.0
        %1439 = vmatpush1.msra.mxu0 0.0
        %1440 = vmatprep.subr.mxu0 0.0
        %1441 = vmatpush1.msra.mxu0 0.0
        %1442 = vmatprep.subr.mxu0 0.0
        %1443 = vmatpush1.msra.mxu0 0.0
        %1444 = vmatprep.subr.mxu0 0.0
        %1445 = vmatpush1.msra.mxu0 0.0
        %1446 = vmatprep.subr.mxu0 0.0
        %1447 = vmatpush1.msra.mxu0 0.0
        %1448 = vmatprep.subr.mxu0 0.0
        %1449 = vmatpush1.msra.mxu0 0.0
        %1450 = vmatprep.subr.mxu0 0.0
        %1451 = vmatpush1.msra.mxu0 0.0
        %1452 = vmatprep.subr.mxu0 0.0
        %1453 = vmatpush1.msra.mxu0 0.0
        %1454 = vmatprep.subr.mxu0 0.0
        %1455 = vmatpush1.msra.mxu0 0.0
        %1456 = vmatprep.subr.mxu0 0.0
        %1457 = vmatpush1.msra.mxu0 0.0
        %1458 = vmatprep.subr.mxu0 0.0
        %1459 = vmatpush1.msra.mxu0 0.0
        %1460 = vmatprep.subr.mxu0 0.0
        %1461 = vmatpush1.msra.mxu0 0.0
        %1462 = vmatprep.subr.mxu0 0.0
        %1463 = vmatpush1.msra.mxu0 0.0
        %1464 = vmatprep.subr.mxu0 0.0
        %1465 = vmatpush1.msra.mxu0 0.0
        %1466 = vmatprep.subr.mxu0 0.0
        %1467 = vmatpush1.msra.mxu0 0.0
        %1468 = vmatprep.subr.mxu0 0.0
        %1469 = vmatpush1.msra.mxu0 0.0
        %1470 = vmatprep.subr.mxu0 0.0
        %1471 = vmatpush1.msra.mxu0 0.0
        %1472 = vmatprep.subr.mxu0 0.0
        %1473 = vmatpush1.msra.mxu0 0.0
        %1474 = vmatprep.subr.mxu0 0.0
        %1475 = vmatpush1.msra.mxu0 0.0
        %1476 = vmatprep.subr.mxu0 0.0
        %1477 = vmatpush1.msra.mxu0 0.0
        %1478 = vmatprep.subr.mxu0 0.0
        %1479 = vmatpush1.msra.mxu0 0.0
        %1480 = vmatprep.subr.mxu0 0.0
        %1481 = vmatpush1.msra.mxu0 0.0
        %1482 = vmatprep.subr.mxu0 0.0
        %1483 = vmatpush1.msra.mxu0 0.0
        %1484 = vmatprep.subr.mxu0 0.0
        %1485 = vmatpush1.msra.mxu0 0.0
        %1486 = vmatprep.mubr.f32.mxu0 0.0
        %1487 = vmatmul.mubr.f32.gmra.mrb[0].mxu0 %v1420
        %v1488 = vpop.f32.mrb[0].mxu0
        %v1489 = vadd.f32 %v476, %v1488
        %v1490 = vpop.f32.mrb[0].mxu0
        %1491 = vdwg.mxu0
        %v1492 = vsel %vm483, %v1489, 0.0
        %1493 = vadd.xlane.f32.xlu0 %v1492
        %v1494 = vpop.xlane.xlu0 %1493
        %v1495 = vrcp.pop 32.0
        %v1496 = vmul.f32 %v1494, %v1495
        %v1497 = vsub.f32 %v1489, %v1496
        %v1498 = vmul.f32 %v1497, %v1497
        %v1499 = vsel %vm483, %v1498, 0.0
        %1500 = vadd.xlane.f32.xlu0 %v1499
        %v1501 = vpop.xlane.xlu0 %1500
        %v1502 = vmul.f32 %v1501, %v1495
        %v1503 = vadd.f32 %v1502, 1e-05
        %v1504 = vrsqrt.pop %v1503
        %v1505 = vmul.f32 %v1497, %v1504
        %v1506 = vld [vmem:[#allocation12] sm:$0x1]
        %v1508 = vlaneseq
        %v1509 = vshrl.u32 %v1508, 7
        %v1510 = vsub.s32 0, %v1509
        %v1511 = vrot.slane %v1506, %v1510
        %v1513 = vmul.f32 %v1505, %v1511
        %v1514 = vld [vmem:[#allocation14] sm:$0x1]
        %v1516 = vlaneseq
        %v1517 = vshrl.u32 %v1516, 7
        %v1518 = vsub.s32 0, %v1517
        %v1519 = vrot.slane %v1514, %v1518
        %v1521 = vadd.f32 %v1513, %v1519
        %1522 = vst.msk [vmem:[%s468] sm:$0xff] %vm483, %v1521
        %s1523 = sand.u32 %s220, 1
        %s1524 = scalar_lea.sflag [#allocation5], %s1523
        %s1525 = sand.u32 %s220, 1
        %s1526 = smul.addr %s1525, 8
        %s1527 = scalar_lea.vmem [#allocation15], %s1526
        %s1528 = sand.u32 %s248, 1
        %s1529 = scalar_lea.sflag [#allocation17], %s1528
        %s1530 = sand.u32 %s248, 1
        %s1531 = smul.addr %s1530, 32
        %s1532 = scalar_lea.vmem [#allocation16], %s1531
        // Predicated region
        $region77: #{tpu_custom_call.1} parent=47 // pred_check
          %p1533 = pneg %p230
        $region78: #{tpu_custom_call.1} parent=47 // pred_check_branch
          %1535 = sbr.rel (%p1533) target = $region80
        $region79: #{tpu_custom_call.1} parent=47 // pred_region
          %s1537 = ssub.s32 128, 128
          %1538 = vsyncadd %s1524, %s1537
          %s1539 = sadd.s32 %s39, %s38
          %s1540 = smul.addr %s1539, 128
          %s1541 = scalar_lea.hbm %s7, %s1540
          %s1543 = sshll.u32 %s1527, 4
          %s1544 = int_to_ptr.vmem [resolvable:$true] %s1543
          %1546 = dma.vmem_to_hbm [thread:$0]  %s1544, 128, %s1541, %s1524
        $region80: #{tpu_custom_call.1} parent=47 // pred_fallthru
          _
        // Predicated region
        $region81: #{tpu_custom_call.1} parent=47 // pred_check
          %p1547 = pneg %p258
        $region82: #{tpu_custom_call.1} parent=47 // pred_check_branch
          %1549 = sbr.rel (%p1547) target = $region84
        $region83: #{tpu_custom_call.1} parent=47 // pred_region
          %s1551 = ssub.s32 512, 512
          %1552 = vsyncadd %s1529, %s1551
          %s1553 = sadd.s32 %s39, %s38
          %s1554 = smul.addr %s1553, 128
          %s1555 = scalar_lea.hbm %s8, %s1554
          %s1556 = sshll.u32 %s1532, 4
          %s1557 = int_to_ptr.vmem [resolvable:$true] %s1556
          %1562 = dma.vmem_to_hbm [thread:$0]  %s1557, 512, %s1555, %s1529, 128, 256, 8
        $region84: #{tpu_custom_call.1} parent=47 // pred_fallthru
          _
      $region48: #{tpu_custom_call.1} parent=5 // pred_fallthru
        _
      %p1563 = scmp.le.s32.totalorder 2, %s29
      // Predicated region
      $region85: #{tpu_custom_call.1} parent=5 // pred_check
        %p1564 = pneg %p1563
      $region86: #{tpu_custom_call.1} parent=5 // pred_check_branch
        %1566 = sbr.rel (%p1564) target = $region88
      $region87: #{tpu_custom_call.1} parent=5 // pred_region
        %s1567 = ssub.s32 %s29, 2
        // Predicated region
        $region89: #{tpu_custom_call.1} parent=87 // pred_check
          %p1568 = pneg %p236
        $region90: #{tpu_custom_call.1} parent=87 // pred_check_branch
          %1570 = sbr.rel (%p1568) target = $region92
        $region91: #{tpu_custom_call.1} parent=87 // pred_region
          %s1571 = sand.u32 %s221, 1
          %s1572 = scalar_lea.sflag [#allocation5], %s1571
          %s1573 = sand.u32 %s221, 1
          %s1574 = smul.addr %s1573, 8
          %s1575 = scalar_lea.vmem [#allocation15], %s1574
          %1576 = dma.done %s1572, 128
        $region92: #{tpu_custom_call.1} parent=87 // pred_fallthru
          _
        // Predicated region
        $region93: #{tpu_custom_call.1} parent=87 // pred_check
          %p1577 = pneg %p264
        $region94: #{tpu_custom_call.1} parent=87 // pred_check_branch
          %1579 = sbr.rel (%p1577) target = $region96
        $region95: #{tpu_custom_call.1} parent=87 // pred_region
          %s1580 = sand.u32 %s249, 1
          %s1581 = scalar_lea.sflag [#allocation17], %s1580
          %s1582 = sand.u32 %s249, 1
          %s1583 = smul.addr %s1582, 32
          %s1584 = scalar_lea.vmem [#allocation16], %s1583
          %1585 = dma.done %s1581, 512
        $region96: #{tpu_custom_call.1} parent=87 // pred_fallthru
          _
      $region88: #{tpu_custom_call.1} parent=5 // pred_fallthru
        _
    $region6: #{tpu_custom_call.1} parent=1 // loop_footer
      %s33 = sadd.s32 1, %s29
    $region7: #{tpu_custom_call.1} parent=1 // loop_footer_branch
      %28 = sbr.rel target = $region3
    $region8: #{tpu_custom_call.1} parent=1 // loop_exit
      _
    %1586 = vsyncpa [#allocation4], 1
    %s1587 = scalar_lea.sflag [#allocation4], 1
    %1588 = vsyncpa %s1587, 1
    %1589 = vsyncpa [#allocation7], 1
    %s1590 = scalar_lea.sflag [#allocation7], 1
    %1591 = vsyncpa %s1590, 1
    %1592 = vsyncpa [#allocation10], 1
    %1593 = vsyncpa [#allocation13], 1
    %1594 = vsyncpa [#allocation5], 1
    %s1595 = scalar_lea.sflag [#allocation5], 1
    %1596 = vsyncpa %s1595, 1
    %1597 = vsyncpa [#allocation17], 1
    %s1598 = scalar_lea.sflag [#allocation17], 1
    %1599 = vsyncpa %s1598, 1

</llo_original>
